<compile_context>
chip_gen: v7x
topology: tpu7x:2x2x1
jax: 0.10.0
libtpu: 0.0.40
codegen_flags: <defaults>
</compile_context>

<pallas_src>
import functools

import jax
import jax.numpy as jnp
from jax.experimental import pallas as pl
from jax.experimental.pallas import tpu as pltpu

NEG_SLOPE = 1.0 / 20.0  # LeakyReLU(1/20)


def _shift_left(x, d):
    # result[:, j] = x[:, j + d]; wrapped values only ever land on columns we never read.
    return jnp.concatenate([x[:, d:], x[:, :d]], axis=1)


# ---------------- Fused Pallas kernel ----------------

def cnn_fused_kernel(px_ref, par_ref, o_ref, *, bt, cw):
    # px_ref : (48, 64*cw) bf16 -- conv1 im2col, rows k = ci*16 + kh*4 + kw, columns
    #          (q, cell) with q = dr*8+dc the position inside the 8x8 pool window and
    #          cell = (pr*5+pc)*bt + b the (pool cell, sample) index, padded to cw lanes.
    # par_ref: (32, 128) f32 packed parameters (see cnn_forward for the layout).
    # o_ref  : (6, bt) f32.
    ns = bt * 25
    par = par_ref[...]

    # conv1: single K=48 bf16 MXU matmul; channels on sublanes, lane-dense N = 64*cw.
    w1 = par[0:8, 0:48].astype(jnp.bfloat16)
    y1 = jnp.dot(w1, px_ref[...], preferred_element_type=jnp.float32)    # (8, 64*cw)

    # MaxPool2d(8,8): pairwise max tree over the 64 window positions; each chunk is a
    # lane-tile-aligned width-cw slice, so the slices are free vreg selections.
    parts = [y1[:, k * cw:(k + 1) * cw] for k in range(64)]
    while len(parts) > 1:
        parts = [jnp.maximum(parts[2 * i], parts[2 * i + 1])
                 for i in range(len(parts) // 2)]
    # bias + LeakyReLU after the pool (both commute with max) -> runs on (8, bt*25).
    z1 = parts[0][:, :ns] + par[0:8, 48:49]
    pooled = jnp.maximum(z1, z1 * NEG_SLOPE)                             # (8, bt*25)

    # conv2 (2x2): im2col = 3 small lane shifts of the pooled 5x5 map (one 5x5 grid step
    # = bt lanes), concatenated along sublane-aligned row groups -> one K=32 matmul.
    p2 = jnp.concatenate(
        [pooled,
         _shift_left(pooled, 1 * bt),    # (kh, kw) = (0, 1)
         _shift_left(pooled, 5 * bt),    # (1, 0)
         _shift_left(pooled, 6 * bt)],   # (1, 1)
        axis=0)                                                          # (32, bt*25)
    y2 = jnp.dot(par[8:24, 0:32], p2, preferred_element_type=jnp.float32)  # (16, bt*25)

    # MaxPool2d(4,4) over the 4x4 conv2 output: shifted-max tree over the 5x5 grid
    # (valid cells r<4, c<4); the pooled value for sample b lands at column b.
    m = jnp.maximum(y2, _shift_left(y2, 1 * bt))
    m = jnp.maximum(m, _shift_left(m, 2 * bt))
    m = jnp.maximum(m, _shift_left(m, 5 * bt))
    m = jnp.maximum(m, _shift_left(m, 10 * bt))
    z2 = m + par[8:24, 32:33]
    z2 = jnp.maximum(z2, z2 * NEG_SLOPE)

    feat = z2[:, 0:bt]                                                   # (16, bt)
    out = jnp.dot(par[24:30, 0:16], feat, preferred_element_type=jnp.float32)
    o_ref[...] = out + par[24:30, 16:17]                                 # (6, bt)


# ---------------- Wrapper ----------------

def cnn_forward(x, w1, b1, w2, b2, w3, b3, *, b_tile=10):
    # b_tile: samples per grid step.  bt*25 is padded to a multiple of 128 lanes, so
    # bt in {5,10,20,40} wastes ~2% (vs 28% for 8/16/32).  Raise to 20/40 on v5e/v6e
    # (128 MiB VMEM, single core); keep ~10 and an even grid on v7x (64 MiB, 2 cores).
    B = x.shape[0]
    assert x.shape[1:] == (3, 48, 48), x.shape

    bt = max(1, min(b_tile, B))
    g = pl.cdiv(B, bt)
    bp = g * bt
    ns = bt * 25
    cw = ((ns + 127) // 128) * 128            # lane-tile aligned chunk width per window pos

    xp = x
    if bp != B:
        xp = jnp.pad(xp, ((0, bp - B), (0, 0), (0, 0), (0, 0)))
    xp = xp.astype(jnp.bfloat16)              # bf16 MXU operand (f32 accumulation in-kernel)

    # Host-side im2col into the kernel's (K, window-pos, cell) layout:
    #   P[k, q*cw + (pr*5+pc)*bt + b] = x[b, ci, 8*pr+dr+kh, 8*pc+dc+kw]
    # with k = ci*16 + kh*4 + kw and q = dr*8 + dc.  This permutation is what makes every
    # in-kernel op relayout-free (pool = aligned chunk maxes, conv2 patches = lane shifts).
    taps = [xp[:, :, kh:kh + 40, kw:kw + 40] for kh in range(4) for kw in range(4)]
    p = jnp.stack(taps, axis=2)                              # (bp, 3, 16, 40, 40)
    p = p.reshape(g, bt, 3, 16, 5, 8, 5, 8)                  # (g, b, ci, t, pr, dr, pc, dc)
    p = jnp.transpose(p, (0, 2, 3, 5, 7, 4, 6, 1))           # (g, ci, t, dr, dc, pr, pc, b)
    p = p.reshape(g, 48, 64, ns)
    p = jnp.pad(p, ((0, 0), (0, 0), (0, 0), (0, cw - ns)))
    p = p.reshape(g, 48, 64 * cw)

    # Pack all parameters into ONE (32, 128) f32 block (one DMA / BlockSpec instead of 6).
    #   rows 0:8  : w1 (8,48) at cols 0:48, b1 at col 48
    #   rows 8:24 : w2 (16,32) at cols 0:32 (col = kh*16+kw*8+ci), b2 at col 32
    #   rows 24:30: w3 (6,16) at cols 0:16, b3 at col 16
    w1m = w1.reshape(8, 48).astype(jnp.float32)              # (co, ci*16 + kh*4 + kw)
    w2m = jnp.transpose(w2, (0, 2, 3, 1)).reshape(16, 32).astype(jnp.float32)
    par = jnp.zeros((32, 128), jnp.float32)
    par = par.at[0:8, 0:48].set(w1m)
    par = par.at[0:8, 48].set(b1.astype(jnp.float32))
    par = par.at[8:24, 0:32].set(w2m)
    par = par.at[8:24, 32].set(b2.astype(jnp.float32))
    par = par.at[24:30, 0:16].set(w3.astype(jnp.float32))
    par = par.at[24:30, 16].set(b3.astype(jnp.float32))

    out = pl.pallas_call(
        functools.partial(cnn_fused_kernel, bt=bt, cw=cw),
        out_shape=jax.ShapeDtypeStruct((g, 6, bt), jnp.float32),
        grid=(g,),
        in_specs=[
            pl.BlockSpec((None, 48, 64 * cw), lambda i: (i, 0, 0)),
            pl.BlockSpec((32, 128), lambda i: (0, 0)),
        ],
        out_specs=pl.BlockSpec((None, 6, bt), lambda i: (i, 0, 0)),
        compiler_params=pltpu.CompilerParams(
            dimension_semantics=("parallel",),
            # ~5-13 MB working set for bt=10..40; 48 MiB keeps margin under v7x's 64 MiB
            # physical VMEM (raise toward ~96 MiB on v5e/v6e if b_tile is pushed up).
            vmem_limit_bytes=48 * 1024 * 1024,
        ),
    )(p, par)
    return jnp.transpose(out, (0, 2, 1)).reshape(bp, 6)[:B]


# ---------------- Pure-JAX reference (PyTorch semantics) ----------------

def cnn_reference(x, w1, b1, w2, b2, w3, b3):
    hi = jax.lax.Precision.HIGHEST

    def conv(x, w, b):
        y = jax.lax.conv_general_dilated(x, w, (1, 1), "VALID",
                                         dimension_numbers=("NCHW", "OIHW", "NCHW"),
                                         precision=hi)
        return y + b[None, :, None, None]

    def leaky(y):
        return jnp.where(y > 0, y, y * NEG_SLOPE)

    def maxpool(y, k):
        return jax.lax.reduce_window(y, -jnp.inf, jax.lax.max,
                                     (1, 1, k, k), (1, 1, k, k), "VALID")

    y = maxpool(leaky(conv(x, w1, b1)), 8)
    y = maxpool(leaky(conv(y, w2, b2)), 4)
    y = y.reshape(y.shape[0], -1)
    return jnp.dot(y, w3.T, precision=hi) + b3


if __name__ == "__main__":
    key = jax.random.PRNGKey(0)
    k1, k2, k3, k4, k5, k6, kx = jax.random.split(key, 7)

    # deterministic synthetic parameters (PyTorch shapes: OIHW conv weights, (out,in) linear)
    w1 = jax.random.normal(k1, (8, 3, 4, 4), jnp.float32) * 0.1
    b1 = jax.random.normal(k2, (8,), jnp.float32) * 0.1
    w2 = jax.random.normal(k3, (16, 8, 2, 2), jnp.float32) * 0.1
    b2 = jax.random.normal(k4, (16,), jnp.float32) * 0.1
    w3 = jax.random.normal(k5, (6, 16), jnp.float32) * 0.1
    b3 = jax.random.normal(k6, (6,), jnp.float32) * 0.1

    # batch 20 with b_tile=10 -> grid of 2 batch blocks (keeps both v7x TensorCores busy)
    x = jax.random.normal(kx, (20, 3, 48, 48), jnp.float32)

    fwd = jax.jit(cnn_forward)
    out = jax.block_until_ready(fwd(x, w1, b1, w2, b2, w3, b3))

    ref = cnn_reference(x, w1, b1, w2, b2, w3, b3)
    assert out.shape == (20, 6), out.shape
    # conv1 runs with bf16 MXU operands (f32 accumulation); observed max abs error ~1e-3,
    # tolerance set to 2e-2 per the review's bf16 caveat to keep a safety margin.
    assert jnp.allclose(out, ref, atol=2e-2, rtol=2e-2), (out, ref)

    print("KERNEL_OK")
</pallas_src>

<mosaic_0001>
module attributes {stable_mosaic.version = 11 : i64} {
  func.func @cnn_fused_kernel(%arg0: i32, %arg1: memref<1x48x16384xbf16, #tpu.memory_space<vmem>>, %arg2: memref<32x128xf32, #tpu.memory_space<vmem>>, %arg3: memref<1x6x10xf32, #tpu.memory_space<vmem>>) attributes {dimension_semantics = [#tpu.dimension_semantics<parallel>], iteration_bounds = array<i64: 2>, scalar_prefetch = 0 : i64, scratch_operands = 0 : i64, tpu.core_type = #tpu.core_type<tc>, window_params = [{transform_indices = @transform_0, window_bounds = array<i64: 1, 48, 16384>}, {pipeline_mode = #tpu.pipeline_mode<synchronous>, transform_indices = @transform_1, window_bounds = array<i64: 32, 128>}, {transform_indices = @transform_2, window_bounds = array<i64: 1, 6, 10>}]} {
    %c0 = arith.constant 0 : index
    %c0_0 = arith.constant 0 : index
    %0 = vector.load %arg2[%c0, %c0_0] : memref<32x128xf32, #tpu.memory_space<vmem>>, vector<32x128xf32>
    %1 = vector.extract_strided_slice %0 {offsets = [0, 0], sizes = [8, 48], strides = [1, 1]} : vector<32x128xf32> to vector<8x48xf32>
    %2 = arith.truncf %1 : vector<8x48xf32> to vector<8x48xbf16>
    %c0_1 = arith.constant 0 : index
    %c0_2 = arith.constant 0 : index
    %c0_3 = arith.constant 0 : index
    %3 = vector.load %arg1[%c0_1, %c0_2, %c0_3] : memref<1x48x16384xbf16, #tpu.memory_space<vmem>>, vector<1x48x16384xbf16>
    %4 = vector.shape_cast %3 : vector<1x48x16384xbf16> to vector<48x16384xbf16>
    %cst = arith.constant dense<0.000000e+00> : vector<8x16384xf32>
    %5 = tpu.matmul %2, %4, %cst {dimension_numbers = #tpu.dot_dimension_numbers<[1], [0], [0], [1], [0, 0, 1, 1], [], []>} : vector<8x48xbf16>, vector<48x16384xbf16>, vector<8x16384xf32> -> vector<8x16384xf32>
    %6 = vector.extract_strided_slice %5 {offsets = [0, 0], sizes = [8, 256], strides = [1, 1]} : vector<8x16384xf32> to vector<8x256xf32>
    %7 = vector.extract_strided_slice %5 {offsets = [0, 256], sizes = [8, 256], strides = [1, 1]} : vector<8x16384xf32> to vector<8x256xf32>
    %8 = vector.extract_strided_slice %5 {offsets = [0, 512], sizes = [8, 256], strides = [1, 1]} : vector<8x16384xf32> to vector<8x256xf32>
    %9 = vector.extract_strided_slice %5 {offsets = [0, 768], sizes = [8, 256], strides = [1, 1]} : vector<8x16384xf32> to vector<8x256xf32>
    %10 = vector.extract_strided_slice %5 {offsets = [0, 1024], sizes = [8, 256], strides = [1, 1]} : vector<8x16384xf32> to vector<8x256xf32>
    %11 = vector.extract_strided_slice %5 {offsets = [0, 1280], sizes = [8, 256], strides = [1, 1]} : vector<8x16384xf32> to vector<8x256xf32>
    %12 = vector.extract_strided_slice %5 {offsets = [0, 1536], sizes = [8, 256], strides = [1, 1]} : vector<8x16384xf32> to vector<8x256xf32>
    %13 = vector.extract_strided_slice %5 {offsets = [0, 1792], sizes = [8, 256], strides = [1, 1]} : vector<8x16384xf32> to vector<8x256xf32>
    %14 = vector.extract_strided_slice %5 {offsets = [0, 2048], sizes = [8, 256], strides = [1, 1]} : vector<8x16384xf32> to vector<8x256xf32>
    %15 = vector.extract_strided_slice %5 {offsets = [0, 2304], sizes = [8, 256], strides = [1, 1]} : vector<8x16384xf32> to vector<8x256xf32>
    %16 = vector.extract_strided_slice %5 {offsets = [0, 2560], sizes = [8, 256], strides = [1, 1]} : vector<8x16384xf32> to vector<8x256xf32>
    %17 = vector.extract_strided_slice %5 {offsets = [0, 2816], sizes = [8, 256], strides = [1, 1]} : vector<8x16384xf32> to vector<8x256xf32>
    %18 = vector.extract_strided_slice %5 {offsets = [0, 3072], sizes = [8, 256], strides = [1, 1]} : vector<8x16384xf32> to vector<8x256xf32>
    %19 = vector.extract_strided_slice %5 {offsets = [0, 3328], sizes = [8, 256], strides = [1, 1]} : vector<8x16384xf32> to vector<8x256xf32>
    %20 = vector.extract_strided_slice %5 {offsets = [0, 3584], sizes = [8, 256], strides = [1, 1]} : vector<8x16384xf32> to vector<8x256xf32>
    %21 = vector.extract_strided_slice %5 {offsets = [0, 3840], sizes = [8, 256], strides = [1, 1]} : vector<8x16384xf32> to vector<8x256xf32>
    %22 = vector.extract_strided_slice %5 {offsets = [0, 4096], sizes = [8, 256], strides = [1, 1]} : vector<8x16384xf32> to vector<8x256xf32>
    %23 = vector.extract_strided_slice %5 {offsets = [0, 4352], sizes = [8, 256], strides = [1, 1]} : vector<8x16384xf32> to vector<8x256xf32>
    %24 = vector.extract_strided_slice %5 {offsets = [0, 4608], sizes = [8, 256], strides = [1, 1]} : vector<8x16384xf32> to vector<8x256xf32>
    %25 = vector.extract_strided_slice %5 {offsets = [0, 4864], sizes = [8, 256], strides = [1, 1]} : vector<8x16384xf32> to vector<8x256xf32>
    %26 = vector.extract_strided_slice %5 {offsets = [0, 5120], sizes = [8, 256], strides = [1, 1]} : vector<8x16384xf32> to vector<8x256xf32>
    %27 = vector.extract_strided_slice %5 {offsets = [0, 5376], sizes = [8, 256], strides = [1, 1]} : vector<8x16384xf32> to vector<8x256xf32>
    %28 = vector.extract_strided_slice %5 {offsets = [0, 5632], sizes = [8, 256], strides = [1, 1]} : vector<8x16384xf32> to vector<8x256xf32>
    %29 = vector.extract_strided_slice %5 {offsets = [0, 5888], sizes = [8, 256], strides = [1, 1]} : vector<8x16384xf32> to vector<8x256xf32>
    %30 = vector.extract_strided_slice %5 {offsets = [0, 6144], sizes = [8, 256], strides = [1, 1]} : vector<8x16384xf32> to vector<8x256xf32>
    %31 = vector.extract_strided_slice %5 {offsets = [0, 6400], sizes = [8, 256], strides = [1, 1]} : vector<8x16384xf32> to vector<8x256xf32>
    %32 = vector.extract_strided_slice %5 {offsets = [0, 6656], sizes = [8, 256], strides = [1, 1]} : vector<8x16384xf32> to vector<8x256xf32>
    %33 = vector.extract_strided_slice %5 {offsets = [0, 6912], sizes = [8, 256], strides = [1, 1]} : vector<8x16384xf32> to vector<8x256xf32>
    %34 = vector.extract_strided_slice %5 {offsets = [0, 7168], sizes = [8, 256], strides = [1, 1]} : vector<8x16384xf32> to vector<8x256xf32>
    %35 = vector.extract_strided_slice %5 {offsets = [0, 7424], sizes = [8, 256], strides = [1, 1]} : vector<8x16384xf32> to vector<8x256xf32>
    %36 = vector.extract_strided_slice %5 {offsets = [0, 7680], sizes = [8, 256], strides = [1, 1]} : vector<8x16384xf32> to vector<8x256xf32>
    %37 = vector.extract_strided_slice %5 {offsets = [0, 7936], sizes = [8, 256], strides = [1, 1]} : vector<8x16384xf32> to vector<8x256xf32>
    %38 = vector.extract_strided_slice %5 {offsets = [0, 8192], sizes = [8, 256], strides = [1, 1]} : vector<8x16384xf32> to vector<8x256xf32>
    %39 = vector.extract_strided_slice %5 {offsets = [0, 8448], sizes = [8, 256], strides = [1, 1]} : vector<8x16384xf32> to vector<8x256xf32>
    %40 = vector.extract_strided_slice %5 {offsets = [0, 8704], sizes = [8, 256], strides = [1, 1]} : vector<8x16384xf32> to vector<8x256xf32>
    %41 = vector.extract_strided_slice %5 {offsets = [0, 8960], sizes = [8, 256], strides = [1, 1]} : vector<8x16384xf32> to vector<8x256xf32>
    %42 = vector.extract_strided_slice %5 {offsets = [0, 9216], sizes = [8, 256], strides = [1, 1]} : vector<8x16384xf32> to vector<8x256xf32>
    %43 = vector.extract_strided_slice %5 {offsets = [0, 9472], sizes = [8, 256], strides = [1, 1]} : vector<8x16384xf32> to vector<8x256xf32>
    %44 = vector.extract_strided_slice %5 {offsets = [0, 9728], sizes = [8, 256], strides = [1, 1]} : vector<8x16384xf32> to vector<8x256xf32>
    %45 = vector.extract_strided_slice %5 {offsets = [0, 9984], sizes = [8, 256], strides = [1, 1]} : vector<8x16384xf32> to vector<8x256xf32>
    %46 = vector.extract_strided_slice %5 {offsets = [0, 10240], sizes = [8, 256], strides = [1, 1]} : vector<8x16384xf32> to vector<8x256xf32>
    %47 = vector.extract_strided_slice %5 {offsets = [0, 10496], sizes = [8, 256], strides = [1, 1]} : vector<8x16384xf32> to vector<8x256xf32>
    %48 = vector.extract_strided_slice %5 {offsets = [0, 10752], sizes = [8, 256], strides = [1, 1]} : vector<8x16384xf32> to vector<8x256xf32>
    %49 = vector.extract_strided_slice %5 {offsets = [0, 11008], sizes = [8, 256], strides = [1, 1]} : vector<8x16384xf32> to vector<8x256xf32>
    %50 = vector.extract_strided_slice %5 {offsets = [0, 11264], sizes = [8, 256], strides = [1, 1]} : vector<8x16384xf32> to vector<8x256xf32>
    %51 = vector.extract_strided_slice %5 {offsets = [0, 11520], sizes = [8, 256], strides = [1, 1]} : vector<8x16384xf32> to vector<8x256xf32>
    %52 = vector.extract_strided_slice %5 {offsets = [0, 11776], sizes = [8, 256], strides = [1, 1]} : vector<8x16384xf32> to vector<8x256xf32>
    %53 = vector.extract_strided_slice %5 {offsets = [0, 12032], sizes = [8, 256], strides = [1, 1]} : vector<8x16384xf32> to vector<8x256xf32>
    %54 = vector.extract_strided_slice %5 {offsets = [0, 12288], sizes = [8, 256], strides = [1, 1]} : vector<8x16384xf32> to vector<8x256xf32>
    %55 = vector.extract_strided_slice %5 {offsets = [0, 12544], sizes = [8, 256], strides = [1, 1]} : vector<8x16384xf32> to vector<8x256xf32>
    %56 = vector.extract_strided_slice %5 {offsets = [0, 12800], sizes = [8, 256], strides = [1, 1]} : vector<8x16384xf32> to vector<8x256xf32>
    %57 = vector.extract_strided_slice %5 {offsets = [0, 13056], sizes = [8, 256], strides = [1, 1]} : vector<8x16384xf32> to vector<8x256xf32>
    %58 = vector.extract_strided_slice %5 {offsets = [0, 13312], sizes = [8, 256], strides = [1, 1]} : vector<8x16384xf32> to vector<8x256xf32>
    %59 = vector.extract_strided_slice %5 {offsets = [0, 13568], sizes = [8, 256], strides = [1, 1]} : vector<8x16384xf32> to vector<8x256xf32>
    %60 = vector.extract_strided_slice %5 {offsets = [0, 13824], sizes = [8, 256], strides = [1, 1]} : vector<8x16384xf32> to vector<8x256xf32>
    %61 = vector.extract_strided_slice %5 {offsets = [0, 14080], sizes = [8, 256], strides = [1, 1]} : vector<8x16384xf32> to vector<8x256xf32>
    %62 = vector.extract_strided_slice %5 {offsets = [0, 14336], sizes = [8, 256], strides = [1, 1]} : vector<8x16384xf32> to vector<8x256xf32>
    %63 = vector.extract_strided_slice %5 {offsets = [0, 14592], sizes = [8, 256], strides = [1, 1]} : vector<8x16384xf32> to vector<8x256xf32>
    %64 = vector.extract_strided_slice %5 {offsets = [0, 14848], sizes = [8, 256], strides = [1, 1]} : vector<8x16384xf32> to vector<8x256xf32>
    %65 = vector.extract_strided_slice %5 {offsets = [0, 15104], sizes = [8, 256], strides = [1, 1]} : vector<8x16384xf32> to vector<8x256xf32>
    %66 = vector.extract_strided_slice %5 {offsets = [0, 15360], sizes = [8, 256], strides = [1, 1]} : vector<8x16384xf32> to vector<8x256xf32>
    %67 = vector.extract_strided_slice %5 {offsets = [0, 15616], sizes = [8, 256], strides = [1, 1]} : vector<8x16384xf32> to vector<8x256xf32>
    %68 = vector.extract_strided_slice %5 {offsets = [0, 15872], sizes = [8, 256], strides = [1, 1]} : vector<8x16384xf32> to vector<8x256xf32>
    %69 = vector.extract_strided_slice %5 {offsets = [0, 16128], sizes = [8, 256], strides = [1, 1]} : vector<8x16384xf32> to vector<8x256xf32>
    %70 = arith.maximumf %6, %7 : vector<8x256xf32>
    %71 = arith.maximumf %8, %9 : vector<8x256xf32>
    %72 = arith.maximumf %10, %11 : vector<8x256xf32>
    %73 = arith.maximumf %12, %13 : vector<8x256xf32>
    %74 = arith.maximumf %14, %15 : vector<8x256xf32>
    %75 = arith.maximumf %16, %17 : vector<8x256xf32>
    %76 = arith.maximumf %18, %19 : vector<8x256xf32>
    %77 = arith.maximumf %20, %21 : vector<8x256xf32>
    %78 = arith.maximumf %22, %23 : vector<8x256xf32>
    %79 = arith.maximumf %24, %25 : vector<8x256xf32>
    %80 = arith.maximumf %26, %27 : vector<8x256xf32>
    %81 = arith.maximumf %28, %29 : vector<8x256xf32>
    %82 = arith.maximumf %30, %31 : vector<8x256xf32>
    %83 = arith.maximumf %32, %33 : vector<8x256xf32>
    %84 = arith.maximumf %34, %35 : vector<8x256xf32>
    %85 = arith.maximumf %36, %37 : vector<8x256xf32>
    %86 = arith.maximumf %38, %39 : vector<8x256xf32>
    %87 = arith.maximumf %40, %41 : vector<8x256xf32>
    %88 = arith.maximumf %42, %43 : vector<8x256xf32>
    %89 = arith.maximumf %44, %45 : vector<8x256xf32>
    %90 = arith.maximumf %46, %47 : vector<8x256xf32>
    %91 = arith.maximumf %48, %49 : vector<8x256xf32>
    %92 = arith.maximumf %50, %51 : vector<8x256xf32>
    %93 = arith.maximumf %52, %53 : vector<8x256xf32>
    %94 = arith.maximumf %54, %55 : vector<8x256xf32>
    %95 = arith.maximumf %56, %57 : vector<8x256xf32>
    %96 = arith.maximumf %58, %59 : vector<8x256xf32>
    %97 = arith.maximumf %60, %61 : vector<8x256xf32>
    %98 = arith.maximumf %62, %63 : vector<8x256xf32>
    %99 = arith.maximumf %64, %65 : vector<8x256xf32>
    %100 = arith.maximumf %66, %67 : vector<8x256xf32>
    %101 = arith.maximumf %68, %69 : vector<8x256xf32>
    %102 = arith.maximumf %70, %71 : vector<8x256xf32>
    %103 = arith.maximumf %72, %73 : vector<8x256xf32>
    %104 = arith.maximumf %74, %75 : vector<8x256xf32>
    %105 = arith.maximumf %76, %77 : vector<8x256xf32>
    %106 = arith.maximumf %78, %79 : vector<8x256xf32>
    %107 = arith.maximumf %80, %81 : vector<8x256xf32>
    %108 = arith.maximumf %82, %83 : vector<8x256xf32>
    %109 = arith.maximumf %84, %85 : vector<8x256xf32>
    %110 = arith.maximumf %86, %87 : vector<8x256xf32>
    %111 = arith.maximumf %88, %89 : vector<8x256xf32>
    %112 = arith.maximumf %90, %91 : vector<8x256xf32>
    %113 = arith.maximumf %92, %93 : vector<8x256xf32>
    %114 = arith.maximumf %94, %95 : vector<8x256xf32>
    %115 = arith.maximumf %96, %97 : vector<8x256xf32>
    %116 = arith.maximumf %98, %99 : vector<8x256xf32>
    %117 = arith.maximumf %100, %101 : vector<8x256xf32>
    %118 = arith.maximumf %102, %103 : vector<8x256xf32>
    %119 = arith.maximumf %104, %105 : vector<8x256xf32>
    %120 = arith.maximumf %106, %107 : vector<8x256xf32>
    %121 = arith.maximumf %108, %109 : vector<8x256xf32>
    %122 = arith.maximumf %110, %111 : vector<8x256xf32>
    %123 = arith.maximumf %112, %113 : vector<8x256xf32>
    %124 = arith.maximumf %114, %115 : vector<8x256xf32>
    %125 = arith.maximumf %116, %117 : vector<8x256xf32>
    %126 = arith.maximumf %118, %119 : vector<8x256xf32>
    %127 = arith.maximumf %120, %121 : vector<8x256xf32>
    %128 = arith.maximumf %122, %123 : vector<8x256xf32>
    %129 = arith.maximumf %124, %125 : vector<8x256xf32>
    %130 = arith.maximumf %126, %127 : vector<8x256xf32>
    %131 = arith.maximumf %128, %129 : vector<8x256xf32>
    %132 = arith.maximumf %130, %131 : vector<8x256xf32>
    %133 = vector.extract_strided_slice %132 {offsets = [0, 0], sizes = [8, 250], strides = [1, 1]} : vector<8x256xf32> to vector<8x250xf32>
    %134 = vector.extract_strided_slice %0 {offsets = [0, 48], sizes = [8, 1], strides = [1, 1]} : vector<32x128xf32> to vector<8x1xf32>
    %135 = vector.broadcast %134 : vector<8x1xf32> to vector<8x250xf32>
    %136 = arith.addf %133, %135 : vector<8x250xf32>
    %cst_4 = arith.constant 5.000000e-02 : f32
    %137 = vector.broadcast %cst_4 : f32 to vector<8x250xf32>
    %138 = arith.mulf %136, %137 : vector<8x250xf32>
    %139 = arith.maximumf %136, %138 : vector<8x250xf32>
    %140 = vector.extract_strided_slice %139 {offsets = [0, 10], sizes = [8, 240], strides = [1, 1]} : vector<8x250xf32> to vector<8x240xf32>
    %141 = vector.extract_strided_slice %139 {offsets = [0, 0], sizes = [8, 10], strides = [1, 1]} : vector<8x250xf32> to vector<8x10xf32>
    %142 = tpu.concatenate %140, %141 in 1 : vector<8x240xf32>, vector<8x10xf32> -> vector<8x250xf32>
    %143 = vector.extract_strided_slice %139 {offsets = [0, 50], sizes = [8, 200], strides = [1, 1]} : vector<8x250xf32> to vector<8x200xf32>
    %144 = vector.extract_strided_slice %139 {offsets = [0, 0], sizes = [8, 50], strides = [1, 1]} : vector<8x250xf32> to vector<8x50xf32>
    %145 = tpu.concatenate %143, %144 in 1 : vector<8x200xf32>, vector<8x50xf32> -> vector<8x250xf32>
    %146 = vector.extract_strided_slice %139 {offsets = [0, 60], sizes = [8, 190], strides = [1, 1]} : vector<8x250xf32> to vector<8x190xf32>
    %147 = vector.extract_strided_slice %139 {offsets = [0, 0], sizes = [8, 60], strides = [1, 1]} : vector<8x250xf32> to vector<8x60xf32>
    %148 = tpu.concatenate %146, %147 in 1 : vector<8x190xf32>, vector<8x60xf32> -> vector<8x250xf32>
    %149 = tpu.concatenate %139, %142, %145, %148 in 0 : vector<8x250xf32>, vector<8x250xf32>, vector<8x250xf32>, vector<8x250xf32> -> vector<32x250xf32>
    %150 = vector.extract_strided_slice %0 {offsets = [8, 0], sizes = [16, 32], strides = [1, 1]} : vector<32x128xf32> to vector<16x32xf32>
    %cst_5 = arith.constant dense<0.000000e+00> : vector<16x250xf32>
    %151 = tpu.matmul %150, %149, %cst_5 {dimension_numbers = #tpu.dot_dimension_numbers<[1], [0], [0], [1], [0, 0, 1, 1], [], []>} : vector<16x32xf32>, vector<32x250xf32>, vector<16x250xf32> -> vector<16x250xf32>
    %152 = vector.extract_strided_slice %151 {offsets = [0, 10], sizes = [16, 240], strides = [1, 1]} : vector<16x250xf32> to vector<16x240xf32>
    %153 = vector.extract_strided_slice %151 {offsets = [0, 0], sizes = [16, 10], strides = [1, 1]} : vector<16x250xf32> to vector<16x10xf32>
    %154 = tpu.concatenate %152, %153 in 1 : vector<16x240xf32>, vector<16x10xf32> -> vector<16x250xf32>
    %155 = arith.maximumf %151, %154 : vector<16x250xf32>
    %156 = vector.extract_strided_slice %155 {offsets = [0, 20], sizes = [16, 230], strides = [1, 1]} : vector<16x250xf32> to vector<16x230xf32>
    %157 = vector.extract_strided_slice %155 {offsets = [0, 0], sizes = [16, 20], strides = [1, 1]} : vector<16x250xf32> to vector<16x20xf32>
    %158 = tpu.concatenate %156, %157 in 1 : vector<16x230xf32>, vector<16x20xf32> -> vector<16x250xf32>
    %159 = arith.maximumf %155, %158 : vector<16x250xf32>
    %160 = vector.extract_strided_slice %159 {offsets = [0, 50], sizes = [16, 200], strides = [1, 1]} : vector<16x250xf32> to vector<16x200xf32>
    %161 = vector.extract_strided_slice %159 {offsets = [0, 0], sizes = [16, 50], strides = [1, 1]} : vector<16x250xf32> to vector<16x50xf32>
    %162 = tpu.concatenate %160, %161 in 1 : vector<16x200xf32>, vector<16x50xf32> -> vector<16x250xf32>
    %163 = arith.maximumf %159, %162 : vector<16x250xf32>
    %164 = vector.extract_strided_slice %163 {offsets = [0, 100], sizes = [16, 150], strides = [1, 1]} : vector<16x250xf32> to vector<16x150xf32>
    %165 = vector.extract_strided_slice %163 {offsets = [0, 0], sizes = [16, 100], strides = [1, 1]} : vector<16x250xf32> to vector<16x100xf32>
    %166 = tpu.concatenate %164, %165 in 1 : vector<16x150xf32>, vector<16x100xf32> -> vector<16x250xf32>
    %167 = arith.maximumf %163, %166 : vector<16x250xf32>
    %168 = vector.extract_strided_slice %0 {offsets = [8, 32], sizes = [16, 1], strides = [1, 1]} : vector<32x128xf32> to vector<16x1xf32>
    %169 = vector.broadcast %168 : vector<16x1xf32> to vector<16x250xf32>
    %170 = arith.addf %167, %169 : vector<16x250xf32>
    %cst_6 = arith.constant 5.000000e-02 : f32
    %171 = vector.broadcast %cst_6 : f32 to vector<16x250xf32>
    %172 = arith.mulf %170, %171 : vector<16x250xf32>
    %173 = arith.maximumf %170, %172 : vector<16x250xf32>
    %174 = vector.extract_strided_slice %173 {offsets = [0, 0], sizes = [16, 10], strides = [1, 1]} : vector<16x250xf32> to vector<16x10xf32>
    %175 = vector.extract_strided_slice %0 {offsets = [24, 0], sizes = [6, 16], strides = [1, 1]} : vector<32x128xf32> to vector<6x16xf32>
    %cst_7 = arith.constant dense<0.000000e+00> : vector<6x10xf32>
    %176 = tpu.matmul %175, %174, %cst_7 {dimension_numbers = #tpu.dot_dimension_numbers<[1], [0], [0], [1], [0, 0, 1, 1], [], []>} : vector<6x16xf32>, vector<16x10xf32>, vector<6x10xf32> -> vector<6x10xf32>
    %177 = vector.extract_strided_slice %0 {offsets = [24, 16], sizes = [6, 1], strides = [1, 1]} : vector<32x128xf32> to vector<6x1xf32>
    %178 = vector.broadcast %177 : vector<6x1xf32> to vector<6x10xf32>
    %179 = arith.addf %176, %178 : vector<6x10xf32>
    %c0_8 = arith.constant 0 : index
    %c0_9 = arith.constant 0 : index
    %c0_10 = arith.constant 0 : index
    %180 = vector.load %arg3[%c0_8, %c0_9, %c0_10] : memref<1x6x10xf32, #tpu.memory_space<vmem>>, vector<1x6x10xf32>
    %181 = vector.shape_cast %180 : vector<1x6x10xf32> to vector<6x10xf32>
    %182 = vector.shape_cast %179 : vector<6x10xf32> to vector<1x6x10xf32>
    tpu.vector_store %arg3[%c0_8, %c0_9, %c0_10], %182 {strides = array<i32>} : memref<1x6x10xf32, #tpu.memory_space<vmem>>, vector<1x6x10xf32>,
    return
  }
  func.func @transform_0(%arg0: i32) -> (i32, i32, i32) {
    %c0_i32 = arith.constant 0 : i32
    %c0_i32_0 = arith.constant 0 : i32
    %c0_i32_1 = arith.constant 0 : i32
    return %arg0, %c0_i32, %c0_i32_0 : i32, i32, i32
  }
  func.func @transform_1(%arg0: i32) -> (i32, i32) {
    %c0_i32 = arith.constant 0 : i32
    %c0_i32_0 = arith.constant 0 : i32
    %c0_i32_1 = arith.constant 0 : i32
    return %c0_i32, %c0_i32_0 : i32, i32
  }
  func.func @transform_2(%arg0: i32) -> (i32, i32, i32) {
    %c0_i32 = arith.constant 0 : i32
    %c0_i32_0 = arith.constant 0 : i32
    %c0_i32_1 = arith.constant 0 : i32
    return %arg0, %c0_i32, %c0_i32_0 : i32, i32, i32
  }
}

</mosaic_0001>

<llo_original>
// kernel: cnn_forward.1
$region0: #{cnn_forward.1}
  #allocation0 [shape = 'u32[]', space=smem, size = 0x4, offset = 0x4, fixed_abs, tag = 'smem constant byte address 0x4 - core index']
  #allocation1 [shape = 'u32[144,128]{1,0:T(1,128)}', space=vmem, size = 0x12000, scoped, tag = 'internal scratch']
  %s0 = inlined_call_operand.vmem [shape: bf16[2,48,16384], index: 0, kind: input, shape index: {}]
  %s1 = inlined_call_operand.vmem [shape: f32[32,128], index: 1, kind: input, shape index: {}]
  %s2 = inlined_call_operand.vmem [shape: f32[2,6,10], index: 2, kind: output, shape index: {}]
  %s3 = sld [smem:[#allocation0]]
  $region41: #{cnn_forward.1} parent=0
    _
  %s5 = ssub.s32 1, %s3
  %s6 = scalar_select 0, %s5, %s3
  loop: start=0, step=1, limit=4
  $region2: #{cnn_forward.1} parent=0 // loop_pre_header
    _
  $region3: #{cnn_forward.1} parent=0 // loop_header
    %s8 = sphi 0, %s12
    %p9 = scmp.ge.s32.totalorder %s8, 4
    %s18 = sphi 0, %s20
    %s21 = sphi 0, %s18
    %s22 = sphi 0, %s21
    %s38 = sphi 0, %s22
    %s42 = sphi 0, %s42
    %s44 = sphi 0, %s42
    %s45 = sphi 0, %s44
    %s59 = sphi 0, %s45
    %s65 = sphi 0, %s67
    %s68 = sphi 0, %s65
    %s69 = sphi 0, %s68
    %s85 = sphi 0, %s69
  $region4: #{cnn_forward.1} parent=0 // loop_header_branch
    %11 = sbr.rel (%p9) target = $region8
  $region5: #{cnn_forward.1} parent=0 // loop_body
    %s13 = ssub.s32 %s8, 1
    %s14 = ssub.s32 %s8, 2
    %s15 = sadd.s32 %s8, 1
    %s16 = ssub.s32 %s8, %s15
    %p17 = scmp.eq.s32.totalorder %s16, 0
    %s19 = sadd.s32 %s18, 1
    %s20 = scalar_select %p17, %s18, %s19
    %p23 = pneg %p17
    %p24 = scmp.eq.s32.totalorder %s8, 1
    %p25 = por %p23, %p24
    %p26 = scmp.ne.s32.totalorder %s18, %s21
    %p27 = scmp.eq.s32.totalorder %s8, 0
    %p28 = por %p26, %p27
    %p29 = scmp.ne.s32.totalorder %s18, %s21
    %p30 = scmp.eq.s32.totalorder %s13, 1
    %p31 = por %p29, %p30
    %p32 = scmp.ne.s32.totalorder %s21, %s22
    %p33 = scmp.eq.s32.totalorder %s13, 0
    %p34 = por %p32, %p33
    %p35 = scmp.ne.s32.totalorder %s21, %s22
    %p36 = scmp.eq.s32.totalorder %s14, 1
    %p37 = por %p35, %p36
    %p39 = scmp.ne.s32.totalorder %s22, %s38
    %p40 = scmp.eq.s32.totalorder %s14, 0
    %p41 = por %p39, %p40
    %s43 = sadd.s32 %s42, 1
    %p46 = scmp.eq.s32.totalorder %s8, 1
    %p47 = scmp.ne.s32.totalorder %s42, %s44
    %p48 = scmp.eq.s32.totalorder %s8, 0
    %p49 = por %p47, %p48
    %p50 = scmp.ne.s32.totalorder %s42, %s44
    %p51 = scmp.eq.s32.totalorder %s13, 1
    %p52 = por %p50, %p51
    %p53 = scmp.ne.s32.totalorder %s44, %s45
    %p54 = scmp.eq.s32.totalorder %s13, 0
    %p55 = por %p53, %p54
    %p56 = scmp.ne.s32.totalorder %s44, %s45
    %p57 = scmp.eq.s32.totalorder %s14, 1
    %p58 = por %p56, %p57
    %p60 = scmp.ne.s32.totalorder %s45, %s59
    %p61 = scmp.eq.s32.totalorder %s14, 0
    %p62 = por %p60, %p61
    %s63 = ssub.s32 %s8, %s15
    %p64 = scmp.eq.s32.totalorder %s63, 0
    %s66 = sadd.s32 %s65, 1
    %s67 = scalar_select %p64, %s65, %s66
    %p70 = pneg %p64
    %p71 = scmp.eq.s32.totalorder %s8, 1
    %p72 = por %p70, %p71
    %p73 = scmp.ne.s32.totalorder %s65, %s68
    %p74 = scmp.eq.s32.totalorder %s8, 0
    %p75 = por %p73, %p74
    %p76 = scmp.ne.s32.totalorder %s65, %s68
    %p77 = scmp.eq.s32.totalorder %s13, 1
    %p78 = por %p76, %p77
    %p79 = scmp.ne.s32.totalorder %s68, %s69
    %p80 = scmp.eq.s32.totalorder %s13, 0
    %p81 = por %p79, %p80
    %p82 = scmp.ne.s32.totalorder %s68, %s69
    %p83 = scmp.eq.s32.totalorder %s14, 1
    %p84 = por %p82, %p83
    %p86 = scmp.ne.s32.totalorder %s69, %s85
    %p87 = scmp.eq.s32.totalorder %s14, 0
    %p88 = por %p86, %p87
    %p89 = scmp.le.s32.totalorder 1, %s8
    %p90 = scmp.lt.s32.totalorder %s8, 3
    %p91 = pnand %p89, %p90
    %p92 = pneg %p91
    // Predicated region
    $region9: #{cnn_forward.1} parent=5 // pred_check
      _
    $region10: #{cnn_forward.1} parent=5 // pred_check_branch
      %94 = sbr.rel (%p91) target = $region12
    $region11: #{cnn_forward.1} parent=5 // pred_region
      %s95 = ssub.s32 %s8, 1
      // Predicated region
      $region13: #{cnn_forward.1} parent=11 // pred_check
        %p96 = pneg %p55
      $region14: #{cnn_forward.1} parent=11 // pred_check_branch
        %98 = sbr.rel (%p96) target = $region16
      $region15: #{cnn_forward.1} parent=11 // pred_region
        _
      $region16: #{cnn_forward.1} parent=11 // pred_fallthru
        _
    $region12: #{cnn_forward.1} parent=5 // pred_fallthru
      _
    %p99 = scmp.lt.s32.totalorder %s8, 2
    // Predicated region
    $region17: #{cnn_forward.1} parent=5 // pred_check
      %p100 = pneg %p99
    $region18: #{cnn_forward.1} parent=5 // pred_check_branch
      %102 = sbr.rel (%p100) target = $region20
    $region19: #{cnn_forward.1} parent=5 // pred_region
      // Predicated region
      $region21: #{cnn_forward.1} parent=19 // pred_check
        %p103 = pneg %p28
      $region22: #{cnn_forward.1} parent=19 // pred_check_branch
        %105 = sbr.rel (%p103) target = $region24
      $region23: #{cnn_forward.1} parent=19 // pred_region
        %p106 = scmp.lt.s32.totalorder %s8, 1
        %s107 = scalar_select %p106, %s8, 1
        %s108 = smul.addr %s107, 768
        %s109 = smul.addr %s108, 4
        %s110 = scalar_lea.vmem %s0, %s109
      $region24: #{cnn_forward.1} parent=19 // pred_fallthru
        _
    $region20: #{cnn_forward.1} parent=5 // pred_fallthru
      _
    %p111 = scmp.le.s32.totalorder 1, %s8
    %p112 = scmp.lt.s32.totalorder %s8, 3
    %p113 = pnand %p111, %p112
    %p114 = pneg %p113
    // Predicated region
    $region25: #{cnn_forward.1} parent=5 // pred_check
      _
    $region26: #{cnn_forward.1} parent=5 // pred_check_branch
      %116 = sbr.rel (%p113) target = $region28
    $region27: #{cnn_forward.1} parent=5 // pred_region
      %s117 = ssub.s32 %s8, 1
      %p118 = scmp.lt.s32.totalorder %s13, 1
      %s119 = scalar_select %p118, %s13, 1
      %s120 = smul.addr %s119, 768
      %s121 = smul.addr %s120, 4
      %s122 = scalar_lea.vmem %s0, %s121
      %p123 = pneg %p34
      %p124 = pneg %p31
      %p125 = pneg %p55
      %p126 = pneg %p52
      %p127 = pneg %p81
      %p128 = pneg %p78
      %p129 = scmp.lt.s32.totalorder %s13, 1
      %s130 = scalar_select %p129, %s13, 1
      %s131 = smul.addr %s130, 8
      %s132 = scalar_lea.vmem %s2, %s131
      %p133 = scmp.lt.s32.totalorder %s13, 1
      %s134 = scalar_select %p133, %s13, 1
      %s135 = smul.addr %s134, 768
      %s136 = smul.addr %s135, 4
      %s137 = scalar_lea.vmem %s0, %s136
      %p138 = scmp.lt.s32.totalorder %s13, 1
      %s139 = scalar_select %p138, %s13, 1
      %s140 = smul.addr %s139, 8
      %s141 = scalar_lea.vmem %s2, %s140
      %v143 = vld [vmem:[%s1] sm:$0xff]
      %v144 = vld [vmem:[%s1 + $0x8] sm:$0xff]
      %v145 = vld [vmem:[%s1 + $0x10] sm:$0xff]
      %v146 = vld [vmem:[%s1 + $0x18] sm:$0xff]
      %v147 = vpack.c.bf16 %v143, %v143
      %v148 = vld [vmem:[%s137] sm:$0xff]
      %v149 = vld [vmem:[%s137 + $0x8] sm:$0xff]
      %v150 = vld [vmem:[%s137 + $0x10] sm:$0xff]
      %v151 = vld [vmem:[%s137 + $0x18] sm:$0xff]
      %v152 = vld [vmem:[%s137 + $0x20] sm:$0xff]
      %v153 = vld [vmem:[%s137 + $0x28] sm:$0xff]
      %v154 = vld [vmem:[%s137 + $0x30] sm:$0xff]
      %v155 = vld [vmem:[%s137 + $0x38] sm:$0xff]
      %v156 = vld [vmem:[%s137 + $0x40] sm:$0xff]
      %v157 = vld [vmem:[%s137 + $0x48] sm:$0xff]
      %v158 = vld [vmem:[%s137 + $0x50] sm:$0xff]
      %v159 = vld [vmem:[%s137 + $0x58] sm:$0xff]
      %v160 = vld [vmem:[%s137 + $0x60] sm:$0xff]
      %v161 = vld [vmem:[%s137 + $0x68] sm:$0xff]
      %v162 = vld [vmem:[%s137 + $0x70] sm:$0xff]
      %v163 = vld [vmem:[%s137 + $0x78] sm:$0xff]
      %v164 = vld [vmem:[%s137 + $0x80] sm:$0xff]
      %v165 = vld [vmem:[%s137 + $0x88] sm:$0xff]
      %v166 = vld [vmem:[%s137 + $0x90] sm:$0xff]
      %v167 = vld [vmem:[%s137 + $0x98] sm:$0xff]
      %v168 = vld [vmem:[%s137 + $0xa0] sm:$0xff]
      %v169 = vld [vmem:[%s137 + $0xa8] sm:$0xff]
      %v170 = vld [vmem:[%s137 + $0xb0] sm:$0xff]
      %v171 = vld [vmem:[%s137 + $0xb8] sm:$0xff]
      %v172 = vld [vmem:[%s137 + $0xc0] sm:$0xff]
      %v173 = vld [vmem:[%s137 + $0xc8] sm:$0xff]
      %v174 = vld [vmem:[%s137 + $0xd0] sm:$0xff]
      %v175 = vld [vmem:[%s137 + $0xd8] sm:$0xff]
      %v176 = vld [vmem:[%s137 + $0xe0] sm:$0xff]
      %v177 = vld [vmem:[%s137 + $0xe8] sm:$0xff]
      %v178 = vld [vmem:[%s137 + $0xf0] sm:$0xff]
      %v179 = vld [vmem:[%s137 + $0xf8] sm:$0xff]
      %v180 = vld [vmem:[%s137 + $0x100] sm:$0xff]
      %v181 = vld [vmem:[%s137 + $0x108] sm:$0xff]
      %v182 = vld [vmem:[%s137 + $0x110] sm:$0xff]
      %v183 = vld [vmem:[%s137 + $0x118] sm:$0xff]
      %v184 = vld [vmem:[%s137 + $0x120] sm:$0xff]
      %v185 = vld [vmem:[%s137 + $0x128] sm:$0xff]
      %v186 = vld [vmem:[%s137 + $0x130] sm:$0xff]
      %v187 = vld [vmem:[%s137 + $0x138] sm:$0xff]
      %v188 = vld [vmem:[%s137 + $0x140] sm:$0xff]
      %v189 = vld [vmem:[%s137 + $0x148] sm:$0xff]
      %v190 = vld [vmem:[%s137 + $0x150] sm:$0xff]
      %v191 = vld [vmem:[%s137 + $0x158] sm:$0xff]
      %v192 = vld [vmem:[%s137 + $0x160] sm:$0xff]
      %v193 = vld [vmem:[%s137 + $0x168] sm:$0xff]
      %v194 = vld [vmem:[%s137 + $0x170] sm:$0xff]
      %v195 = vld [vmem:[%s137 + $0x178] sm:$0xff]
      %v196 = vld [vmem:[%s137 + $0x180] sm:$0xff]
      %v197 = vld [vmem:[%s137 + $0x188] sm:$0xff]
      %v198 = vld [vmem:[%s137 + $0x190] sm:$0xff]
      %v199 = vld [vmem:[%s137 + $0x198] sm:$0xff]
      %v200 = vld [vmem:[%s137 + $0x1a0] sm:$0xff]
      %v201 = vld [vmem:[%s137 + $0x1a8] sm:$0xff]
      %v202 = vld [vmem:[%s137 + $0x1b0] sm:$0xff]
      %v203 = vld [vmem:[%s137 + $0x1b8] sm:$0xff]
      %v204 = vld [vmem:[%s137 + $0x1c0] sm:$0xff]
      %v205 = vld [vmem:[%s137 + $0x1c8] sm:$0xff]
      %v206 = vld [vmem:[%s137 + $0x1d0] sm:$0xff]
      %v207 = vld [vmem:[%s137 + $0x1d8] sm:$0xff]
      %v208 = vld [vmem:[%s137 + $0x1e0] sm:$0xff]
      %v209 = vld [vmem:[%s137 + $0x1e8] sm:$0xff]
      %v210 = vld [vmem:[%s137 + $0x1f0] sm:$0xff]
      %v211 = vld [vmem:[%s137 + $0x1f8] sm:$0xff]
      %v212 = vld [vmem:[%s137 + $0x200] sm:$0xff]
      %v213 = vld [vmem:[%s137 + $0x208] sm:$0xff]
      %v214 = vld [vmem:[%s137 + $0x210] sm:$0xff]
      %v215 = vld [vmem:[%s137 + $0x218] sm:$0xff]
      %v216 = vld [vmem:[%s137 + $0x220] sm:$0xff]
      %v217 = vld [vmem:[%s137 + $0x228] sm:$0xff]
      %v218 = vld [vmem:[%s137 + $0x230] sm:$0xff]
      %v219 = vld [vmem:[%s137 + $0x238] sm:$0xff]
      %v220 = vld [vmem:[%s137 + $0x240] sm:$0xff]
      %v221 = vld [vmem:[%s137 + $0x248] sm:$0xff]
      %v222 = vld [vmem:[%s137 + $0x250] sm:$0xff]
      %v223 = vld [vmem:[%s137 + $0x258] sm:$0xff]
      %v224 = vld [vmem:[%s137 + $0x260] sm:$0xff]
      %v225 = vld [vmem:[%s137 + $0x268] sm:$0xff]
      %v226 = vld [vmem:[%s137 + $0x270] sm:$0xff]
      %v227 = vld [vmem:[%s137 + $0x278] sm:$0xff]
      %v228 = vld [vmem:[%s137 + $0x280] sm:$0xff]
      %v229 = vld [vmem:[%s137 + $0x288] sm:$0xff]
      %v230 = vld [vmem:[%s137 + $0x290] sm:$0xff]
      %v231 = vld [vmem:[%s137 + $0x298] sm:$0xff]
      %v232 = vld [vmem:[%s137 + $0x2a0] sm:$0xff]
      %v233 = vld [vmem:[%s137 + $0x2a8] sm:$0xff]
      %v234 = vld [vmem:[%s137 + $0x2b0] sm:$0xff]
      %v235 = vld [vmem:[%s137 + $0x2b8] sm:$0xff]
      %v236 = vld [vmem:[%s137 + $0x2c0] sm:$0xff]
      %v237 = vld [vmem:[%s137 + $0x2c8] sm:$0xff]
      %v238 = vld [vmem:[%s137 + $0x2d0] sm:$0xff]
      %v239 = vld [vmem:[%s137 + $0x2d8] sm:$0xff]
      %v240 = vld [vmem:[%s137 + $0x2e0] sm:$0xff]
      %v241 = vld [vmem:[%s137 + $0x2e8] sm:$0xff]
      %v242 = vld [vmem:[%s137 + $0x2f0] sm:$0xff]
      %v243 = vld [vmem:[%s137 + $0x2f8] sm:$0xff]
      %v244 = vld [vmem:[%s137 + $0x300] sm:$0xff]
      %v245 = vld [vmem:[%s137 + $0x308] sm:$0xff]
      %v246 = vld [vmem:[%s137 + $0x310] sm:$0xff]
      %v247 = vld [vmem:[%s137 + $0x318] sm:$0xff]
      %v248 = vld [vmem:[%s137 + $0x320] sm:$0xff]
      %v249 = vld [vmem:[%s137 + $0x328] sm:$0xff]
      %v250 = vld [vmem:[%s137 + $0x330] sm:$0xff]
      %v251 = vld [vmem:[%s137 + $0x338] sm:$0xff]
      %v252 = vld [vmem:[%s137 + $0x340] sm:$0xff]
      %v253 = vld [vmem:[%s137 + $0x348] sm:$0xff]
      %v254 = vld [vmem:[%s137 + $0x350] sm:$0xff]
      %v255 = vld [vmem:[%s137 + $0x358] sm:$0xff]
      %v256 = vld [vmem:[%s137 + $0x360] sm:$0xff]
      %v257 = vld [vmem:[%s137 + $0x368] sm:$0xff]
      %v258 = vld [vmem:[%s137 + $0x370] sm:$0xff]
      %v259 = vld [vmem:[%s137 + $0x378] sm:$0xff]
      %v260 = vld [vmem:[%s137 + $0x380] sm:$0xff]
      %v261 = vld [vmem:[%s137 + $0x388] sm:$0xff]
      %v262 = vld [vmem:[%s137 + $0x390] sm:$0xff]
      %v263 = vld [vmem:[%s137 + $0x398] sm:$0xff]
      %v264 = vld [vmem:[%s137 + $0x3a0] sm:$0xff]
      %v265 = vld [vmem:[%s137 + $0x3a8] sm:$0xff]
      %v266 = vld [vmem:[%s137 + $0x3b0] sm:$0xff]
      %v267 = vld [vmem:[%s137 + $0x3b8] sm:$0xff]
      %v268 = vld [vmem:[%s137 + $0x3c0] sm:$0xff]
      %v269 = vld [vmem:[%s137 + $0x3c8] sm:$0xff]
      %v270 = vld [vmem:[%s137 + $0x3d0] sm:$0xff]
      %v271 = vld [vmem:[%s137 + $0x3d8] sm:$0xff]
      %v272 = vld [vmem:[%s137 + $0x3e0] sm:$0xff]
      %v273 = vld [vmem:[%s137 + $0x3e8] sm:$0xff]
      %v274 = vld [vmem:[%s137 + $0x3f0] sm:$0xff]
      %v275 = vld [vmem:[%s137 + $0x3f8] sm:$0xff]
      %v276 = vld [vmem:[%s137 + $0x400] sm:$0xff]
      %v277 = vld [vmem:[%s137 + $0x408] sm:$0xff]
      %v278 = vld [vmem:[%s137 + $0x410] sm:$0xff]
      %v279 = vld [vmem:[%s137 + $0x418] sm:$0xff]
      %v280 = vld [vmem:[%s137 + $0x420] sm:$0xff]
      %v281 = vld [vmem:[%s137 + $0x428] sm:$0xff]
      %v282 = vld [vmem:[%s137 + $0x430] sm:$0xff]
      %v283 = vld [vmem:[%s137 + $0x438] sm:$0xff]
      %v284 = vld [vmem:[%s137 + $0x440] sm:$0xff]
      %v285 = vld [vmem:[%s137 + $0x448] sm:$0xff]
      %v286 = vld [vmem:[%s137 + $0x450] sm:$0xff]
      %v287 = vld [vmem:[%s137 + $0x458] sm:$0xff]
      %v288 = vld [vmem:[%s137 + $0x460] sm:$0xff]
      %v289 = vld [vmem:[%s137 + $0x468] sm:$0xff]
      %v290 = vld [vmem:[%s137 + $0x470] sm:$0xff]
      %v291 = vld [vmem:[%s137 + $0x478] sm:$0xff]
      %v292 = vld [vmem:[%s137 + $0x480] sm:$0xff]
      %v293 = vld [vmem:[%s137 + $0x488] sm:$0xff]
      %v294 = vld [vmem:[%s137 + $0x490] sm:$0xff]
      %v295 = vld [vmem:[%s137 + $0x498] sm:$0xff]
      %v296 = vld [vmem:[%s137 + $0x4a0] sm:$0xff]
      %v297 = vld [vmem:[%s137 + $0x4a8] sm:$0xff]
      %v298 = vld [vmem:[%s137 + $0x4b0] sm:$0xff]
      %v299 = vld [vmem:[%s137 + $0x4b8] sm:$0xff]
      %v300 = vld [vmem:[%s137 + $0x4c0] sm:$0xff]
      %v301 = vld [vmem:[%s137 + $0x4c8] sm:$0xff]
      %v302 = vld [vmem:[%s137 + $0x4d0] sm:$0xff]
      %v303 = vld [vmem:[%s137 + $0x4d8] sm:$0xff]
      %v304 = vld [vmem:[%s137 + $0x4e0] sm:$0xff]
      %v305 = vld [vmem:[%s137 + $0x4e8] sm:$0xff]
      %v306 = vld [vmem:[%s137 + $0x4f0] sm:$0xff]
      %v307 = vld [vmem:[%s137 + $0x4f8] sm:$0xff]
      %v308 = vld [vmem:[%s137 + $0x500] sm:$0xff]
      %v309 = vld [vmem:[%s137 + $0x508] sm:$0xff]
      %v310 = vld [vmem:[%s137 + $0x510] sm:$0xff]
      %v311 = vld [vmem:[%s137 + $0x518] sm:$0xff]
      %v312 = vld [vmem:[%s137 + $0x520] sm:$0xff]
      %v313 = vld [vmem:[%s137 + $0x528] sm:$0xff]
      %v314 = vld [vmem:[%s137 + $0x530] sm:$0xff]
      %v315 = vld [vmem:[%s137 + $0x538] sm:$0xff]
      %v316 = vld [vmem:[%s137 + $0x540] sm:$0xff]
      %v317 = vld [vmem:[%s137 + $0x548] sm:$0xff]
      %v318 = vld [vmem:[%s137 + $0x550] sm:$0xff]
      %v319 = vld [vmem:[%s137 + $0x558] sm:$0xff]
      %v320 = vld [vmem:[%s137 + $0x560] sm:$0xff]
      %v321 = vld [vmem:[%s137 + $0x568] sm:$0xff]
      %v322 = vld [vmem:[%s137 + $0x570] sm:$0xff]
      %v323 = vld [vmem:[%s137 + $0x578] sm:$0xff]
      %v324 = vld [vmem:[%s137 + $0x580] sm:$0xff]
      %v325 = vld [vmem:[%s137 + $0x588] sm:$0xff]
      %v326 = vld [vmem:[%s137 + $0x590] sm:$0xff]
      %v327 = vld [vmem:[%s137 + $0x598] sm:$0xff]
      %v328 = vld [vmem:[%s137 + $0x5a0] sm:$0xff]
      %v329 = vld [vmem:[%s137 + $0x5a8] sm:$0xff]
      %v330 = vld [vmem:[%s137 + $0x5b0] sm:$0xff]
      %v331 = vld [vmem:[%s137 + $0x5b8] sm:$0xff]
      %v332 = vld [vmem:[%s137 + $0x5c0] sm:$0xff]
      %v333 = vld [vmem:[%s137 + $0x5c8] sm:$0xff]
      %v334 = vld [vmem:[%s137 + $0x5d0] sm:$0xff]
      %v335 = vld [vmem:[%s137 + $0x5d8] sm:$0xff]
      %v336 = vld [vmem:[%s137 + $0x5e0] sm:$0xff]
      %v337 = vld [vmem:[%s137 + $0x5e8] sm:$0xff]
      %v338 = vld [vmem:[%s137 + $0x5f0] sm:$0xff]
      %v339 = vld [vmem:[%s137 + $0x5f8] sm:$0xff]
      %v340 = vld [vmem:[%s137 + $0x600] sm:$0xff]
      %v341 = vld [vmem:[%s137 + $0x608] sm:$0xff]
      %v342 = vld [vmem:[%s137 + $0x610] sm:$0xff]
      %v343 = vld [vmem:[%s137 + $0x618] sm:$0xff]
      %v344 = vld [vmem:[%s137 + $0x620] sm:$0xff]
      %v345 = vld [vmem:[%s137 + $0x628] sm:$0xff]
      %v346 = vld [vmem:[%s137 + $0x630] sm:$0xff]
      %v347 = vld [vmem:[%s137 + $0x638] sm:$0xff]
      %v348 = vld [vmem:[%s137 + $0x640] sm:$0xff]
      %v349 = vld [vmem:[%s137 + $0x648] sm:$0xff]
      %v350 = vld [vmem:[%s137 + $0x650] sm:$0xff]
      %v351 = vld [vmem:[%s137 + $0x658] sm:$0xff]
      %v352 = vld [vmem:[%s137 + $0x660] sm:$0xff]
      %v353 = vld [vmem:[%s137 + $0x668] sm:$0xff]
      %v354 = vld [vmem:[%s137 + $0x670] sm:$0xff]
      %v355 = vld [vmem:[%s137 + $0x678] sm:$0xff]
      %v356 = vld [vmem:[%s137 + $0x680] sm:$0xff]
      %v357 = vld [vmem:[%s137 + $0x688] sm:$0xff]
      %v358 = vld [vmem:[%s137 + $0x690] sm:$0xff]
      %v359 = vld [vmem:[%s137 + $0x698] sm:$0xff]
      %v360 = vld [vmem:[%s137 + $0x6a0] sm:$0xff]
      %v361 = vld [vmem:[%s137 + $0x6a8] sm:$0xff]
      %v362 = vld [vmem:[%s137 + $0x6b0] sm:$0xff]
      %v363 = vld [vmem:[%s137 + $0x6b8] sm:$0xff]
      %v364 = vld [vmem:[%s137 + $0x6c0] sm:$0xff]
      %v365 = vld [vmem:[%s137 + $0x6c8] sm:$0xff]
      %v366 = vld [vmem:[%s137 + $0x6d0] sm:$0xff]
      %v367 = vld [vmem:[%s137 + $0x6d8] sm:$0xff]
      %v368 = vld [vmem:[%s137 + $0x6e0] sm:$0xff]
      %v369 = vld [vmem:[%s137 + $0x6e8] sm:$0xff]
      %v370 = vld [vmem:[%s137 + $0x6f0] sm:$0xff]
      %v371 = vld [vmem:[%s137 + $0x6f8] sm:$0xff]
      %v372 = vld [vmem:[%s137 + $0x700] sm:$0xff]
      %v373 = vld [vmem:[%s137 + $0x708] sm:$0xff]
      %v374 = vld [vmem:[%s137 + $0x710] sm:$0xff]
      %v375 = vld [vmem:[%s137 + $0x718] sm:$0xff]
      %v376 = vld [vmem:[%s137 + $0x720] sm:$0xff]
      %v377 = vld [vmem:[%s137 + $0x728] sm:$0xff]
      %v378 = vld [vmem:[%s137 + $0x730] sm:$0xff]
      %v379 = vld [vmem:[%s137 + $0x738] sm:$0xff]
      %v380 = vld [vmem:[%s137 + $0x740] sm:$0xff]
      %v381 = vld [vmem:[%s137 + $0x748] sm:$0xff]
      %v382 = vld [vmem:[%s137 + $0x750] sm:$0xff]
      %v383 = vld [vmem:[%s137 + $0x758] sm:$0xff]
      %v384 = vld [vmem:[%s137 + $0x760] sm:$0xff]
      %v385 = vld [vmem:[%s137 + $0x768] sm:$0xff]
      %v386 = vld [vmem:[%s137 + $0x770] sm:$0xff]
      %v387 = vld [vmem:[%s137 + $0x778] sm:$0xff]
      %v388 = vld [vmem:[%s137 + $0x780] sm:$0xff]
      %v389 = vld [vmem:[%s137 + $0x788] sm:$0xff]
      %v390 = vld [vmem:[%s137 + $0x790] sm:$0xff]
      %v391 = vld [vmem:[%s137 + $0x798] sm:$0xff]
      %v392 = vld [vmem:[%s137 + $0x7a0] sm:$0xff]
      %v393 = vld [vmem:[%s137 + $0x7a8] sm:$0xff]
      %v394 = vld [vmem:[%s137 + $0x7b0] sm:$0xff]
      %v395 = vld [vmem:[%s137 + $0x7b8] sm:$0xff]
      %v396 = vld [vmem:[%s137 + $0x7c0] sm:$0xff]
      %v397 = vld [vmem:[%s137 + $0x7c8] sm:$0xff]
      %v398 = vld [vmem:[%s137 + $0x7d0] sm:$0xff]
      %v399 = vld [vmem:[%s137 + $0x7d8] sm:$0xff]
      %v400 = vld [vmem:[%s137 + $0x7e0] sm:$0xff]
      %v401 = vld [vmem:[%s137 + $0x7e8] sm:$0xff]
      %v402 = vld [vmem:[%s137 + $0x7f0] sm:$0xff]
      %v403 = vld [vmem:[%s137 + $0x7f8] sm:$0xff]
      %v404 = vld [vmem:[%s137 + $0x800] sm:$0xff]
      %v405 = vld [vmem:[%s137 + $0x808] sm:$0xff]
      %v406 = vld [vmem:[%s137 + $0x810] sm:$0xff]
      %v407 = vld [vmem:[%s137 + $0x818] sm:$0xff]
      %v408 = vld [vmem:[%s137 + $0x820] sm:$0xff]
      %v409 = vld [vmem:[%s137 + $0x828] sm:$0xff]
      %v410 = vld [vmem:[%s137 + $0x830] sm:$0xff]
      %v411 = vld [vmem:[%s137 + $0x838] sm:$0xff]
      %v412 = vld [vmem:[%s137 + $0x840] sm:$0xff]
      %v413 = vld [vmem:[%s137 + $0x848] sm:$0xff]
      %v414 = vld [vmem:[%s137 + $0x850] sm:$0xff]
      %v415 = vld [vmem:[%s137 + $0x858] sm:$0xff]
      %v416 = vld [vmem:[%s137 + $0x860] sm:$0xff]
      %v417 = vld [vmem:[%s137 + $0x868] sm:$0xff]
      %v418 = vld [vmem:[%s137 + $0x870] sm:$0xff]
      %v419 = vld [vmem:[%s137 + $0x878] sm:$0xff]
      %v420 = vld [vmem:[%s137 + $0x880] sm:$0xff]
      %v421 = vld [vmem:[%s137 + $0x888] sm:$0xff]
      %v422 = vld [vmem:[%s137 + $0x890] sm:$0xff]
      %v423 = vld [vmem:[%s137 + $0x898] sm:$0xff]
      %v424 = vld [vmem:[%s137 + $0x8a0] sm:$0xff]
      %v425 = vld [vmem:[%s137 + $0x8a8] sm:$0xff]
      %v426 = vld [vmem:[%s137 + $0x8b0] sm:$0xff]
      %v427 = vld [vmem:[%s137 + $0x8b8] sm:$0xff]
      %v428 = vld [vmem:[%s137 + $0x8c0] sm:$0xff]
      %v429 = vld [vmem:[%s137 + $0x8c8] sm:$0xff]
      %v430 = vld [vmem:[%s137 + $0x8d0] sm:$0xff]
      %v431 = vld [vmem:[%s137 + $0x8d8] sm:$0xff]
      %v432 = vld [vmem:[%s137 + $0x8e0] sm:$0xff]
      %v433 = vld [vmem:[%s137 + $0x8e8] sm:$0xff]
      %v434 = vld [vmem:[%s137 + $0x8f0] sm:$0xff]
      %v435 = vld [vmem:[%s137 + $0x8f8] sm:$0xff]
      %v436 = vld [vmem:[%s137 + $0x900] sm:$0xff]
      %v437 = vld [vmem:[%s137 + $0x908] sm:$0xff]
      %v438 = vld [vmem:[%s137 + $0x910] sm:$0xff]
      %v439 = vld [vmem:[%s137 + $0x918] sm:$0xff]
      %v440 = vld [vmem:[%s137 + $0x920] sm:$0xff]
      %v441 = vld [vmem:[%s137 + $0x928] sm:$0xff]
      %v442 = vld [vmem:[%s137 + $0x930] sm:$0xff]
      %v443 = vld [vmem:[%s137 + $0x938] sm:$0xff]
      %v444 = vld [vmem:[%s137 + $0x940] sm:$0xff]
      %v445 = vld [vmem:[%s137 + $0x948] sm:$0xff]
      %v446 = vld [vmem:[%s137 + $0x950] sm:$0xff]
      %v447 = vld [vmem:[%s137 + $0x958] sm:$0xff]
      %v448 = vld [vmem:[%s137 + $0x960] sm:$0xff]
      %v449 = vld [vmem:[%s137 + $0x968] sm:$0xff]
      %v450 = vld [vmem:[%s137 + $0x970] sm:$0xff]
      %v451 = vld [vmem:[%s137 + $0x978] sm:$0xff]
      %v452 = vld [vmem:[%s137 + $0x980] sm:$0xff]
      %v453 = vld [vmem:[%s137 + $0x988] sm:$0xff]
      %v454 = vld [vmem:[%s137 + $0x990] sm:$0xff]
      %v455 = vld [vmem:[%s137 + $0x998] sm:$0xff]
      %v456 = vld [vmem:[%s137 + $0x9a0] sm:$0xff]
      %v457 = vld [vmem:[%s137 + $0x9a8] sm:$0xff]
      %v458 = vld [vmem:[%s137 + $0x9b0] sm:$0xff]
      %v459 = vld [vmem:[%s137 + $0x9b8] sm:$0xff]
      %v460 = vld [vmem:[%s137 + $0x9c0] sm:$0xff]
      %v461 = vld [vmem:[%s137 + $0x9c8] sm:$0xff]
      %v462 = vld [vmem:[%s137 + $0x9d0] sm:$0xff]
      %v463 = vld [vmem:[%s137 + $0x9d8] sm:$0xff]
      %v464 = vld [vmem:[%s137 + $0x9e0] sm:$0xff]
      %v465 = vld [vmem:[%s137 + $0x9e8] sm:$0xff]
      %v466 = vld [vmem:[%s137 + $0x9f0] sm:$0xff]
      %v467 = vld [vmem:[%s137 + $0x9f8] sm:$0xff]
      %v468 = vld [vmem:[%s137 + $0xa00] sm:$0xff]
      %v469 = vld [vmem:[%s137 + $0xa08] sm:$0xff]
      %v470 = vld [vmem:[%s137 + $0xa10] sm:$0xff]
      %v471 = vld [vmem:[%s137 + $0xa18] sm:$0xff]
      %v472 = vld [vmem:[%s137 + $0xa20] sm:$0xff]
      %v473 = vld [vmem:[%s137 + $0xa28] sm:$0xff]
      %v474 = vld [vmem:[%s137 + $0xa30] sm:$0xff]
      %v475 = vld [vmem:[%s137 + $0xa38] sm:$0xff]
      %v476 = vld [vmem:[%s137 + $0xa40] sm:$0xff]
      %v477 = vld [vmem:[%s137 + $0xa48] sm:$0xff]
      %v478 = vld [vmem:[%s137 + $0xa50] sm:$0xff]
      %v479 = vld [vmem:[%s137 + $0xa58] sm:$0xff]
      %v480 = vld [vmem:[%s137 + $0xa60] sm:$0xff]
      %v481 = vld [vmem:[%s137 + $0xa68] sm:$0xff]
      %v482 = vld [vmem:[%s137 + $0xa70] sm:$0xff]
      %v483 = vld [vmem:[%s137 + $0xa78] sm:$0xff]
      %v484 = vld [vmem:[%s137 + $0xa80] sm:$0xff]
      %v485 = vld [vmem:[%s137 + $0xa88] sm:$0xff]
      %v486 = vld [vmem:[%s137 + $0xa90] sm:$0xff]
      %v487 = vld [vmem:[%s137 + $0xa98] sm:$0xff]
      %v488 = vld [vmem:[%s137 + $0xaa0] sm:$0xff]
      %v489 = vld [vmem:[%s137 + $0xaa8] sm:$0xff]
      %v490 = vld [vmem:[%s137 + $0xab0] sm:$0xff]
      %v491 = vld [vmem:[%s137 + $0xab8] sm:$0xff]
      %v492 = vld [vmem:[%s137 + $0xac0] sm:$0xff]
      %v493 = vld [vmem:[%s137 + $0xac8] sm:$0xff]
      %v494 = vld [vmem:[%s137 + $0xad0] sm:$0xff]
      %v495 = vld [vmem:[%s137 + $0xad8] sm:$0xff]
      %v496 = vld [vmem:[%s137 + $0xae0] sm:$0xff]
      %v497 = vld [vmem:[%s137 + $0xae8] sm:$0xff]
      %v498 = vld [vmem:[%s137 + $0xaf0] sm:$0xff]
      %v499 = vld [vmem:[%s137 + $0xaf8] sm:$0xff]
      %v500 = vld [vmem:[%s137 + $0xb00] sm:$0xff]
      %v501 = vld [vmem:[%s137 + $0xb08] sm:$0xff]
      %v502 = vld [vmem:[%s137 + $0xb10] sm:$0xff]
      %v503 = vld [vmem:[%s137 + $0xb18] sm:$0xff]
      %v504 = vld [vmem:[%s137 + $0xb20] sm:$0xff]
      %v505 = vld [vmem:[%s137 + $0xb28] sm:$0xff]
      %v506 = vld [vmem:[%s137 + $0xb30] sm:$0xff]
      %v507 = vld [vmem:[%s137 + $0xb38] sm:$0xff]
      %v508 = vld [vmem:[%s137 + $0xb40] sm:$0xff]
      %v509 = vld [vmem:[%s137 + $0xb48] sm:$0xff]
      %v510 = vld [vmem:[%s137 + $0xb50] sm:$0xff]
      %v511 = vld [vmem:[%s137 + $0xb58] sm:$0xff]
      %v512 = vld [vmem:[%s137 + $0xb60] sm:$0xff]
      %v513 = vld [vmem:[%s137 + $0xb68] sm:$0xff]
      %v514 = vld [vmem:[%s137 + $0xb70] sm:$0xff]
      %v515 = vld [vmem:[%s137 + $0xb78] sm:$0xff]
      %v516 = vld [vmem:[%s137 + $0xb80] sm:$0xff]
      %v517 = vld [vmem:[%s137 + $0xb88] sm:$0xff]
      %v518 = vld [vmem:[%s137 + $0xb90] sm:$0xff]
      %v519 = vld [vmem:[%s137 + $0xb98] sm:$0xff]
      %v520 = vld [vmem:[%s137 + $0xba0] sm:$0xff]
      %v521 = vld [vmem:[%s137 + $0xba8] sm:$0xff]
      %v522 = vld [vmem:[%s137 + $0xbb0] sm:$0xff]
      %v523 = vld [vmem:[%s137 + $0xbb8] sm:$0xff]
      %v524 = vld [vmem:[%s137 + $0xbc0] sm:$0xff]
      %v525 = vld [vmem:[%s137 + $0xbc8] sm:$0xff]
      %v526 = vld [vmem:[%s137 + $0xbd0] sm:$0xff]
      %v527 = vld [vmem:[%s137 + $0xbd8] sm:$0xff]
      %v528 = vld [vmem:[%s137 + $0xbe0] sm:$0xff]
      %v529 = vld [vmem:[%s137 + $0xbe8] sm:$0xff]
      %v530 = vld [vmem:[%s137 + $0xbf0] sm:$0xff]
      %v531 = vld [vmem:[%s137 + $0xbf8] sm:$0xff]
      %v916 = vunpack.c.l.b16 %v148
      %v917 = vunpack.c.h.b16 %v148
      %v918 = vunpack.c.l.b16 %v149
      %v919 = vunpack.c.h.b16 %v149
      %v920 = vunpack.c.l.b16 %v150
      %v921 = vunpack.c.h.b16 %v150
      %v922 = vunpack.c.l.b16 %v151
      %v923 = vunpack.c.h.b16 %v151
      %v924 = vunpack.c.l.b16 %v152
      %v925 = vunpack.c.h.b16 %v152
      %v926 = vunpack.c.l.b16 %v153
      %v927 = vunpack.c.h.b16 %v153
      %v928 = vunpack.c.l.b16 %v154
      %v929 = vunpack.c.h.b16 %v154
      %v930 = vunpack.c.l.b16 %v155
      %v931 = vunpack.c.h.b16 %v155
      %v932 = vunpack.c.l.b16 %v156
      %v933 = vunpack.c.h.b16 %v156
      %v934 = vunpack.c.l.b16 %v157
      %v935 = vunpack.c.h.b16 %v157
      %v936 = vunpack.c.l.b16 %v158
      %v937 = vunpack.c.h.b16 %v158
      %v938 = vunpack.c.l.b16 %v159
      %v939 = vunpack.c.h.b16 %v159
      %v940 = vunpack.c.l.b16 %v160
      %v941 = vunpack.c.h.b16 %v160
      %v942 = vunpack.c.l.b16 %v161
      %v943 = vunpack.c.h.b16 %v161
      %v944 = vunpack.c.l.b16 %v162
      %v945 = vunpack.c.h.b16 %v162
      %v946 = vunpack.c.l.b16 %v163
      %v947 = vunpack.c.h.b16 %v163
      %v948 = vunpack.c.l.b16 %v164
      %v949 = vunpack.c.h.b16 %v164
      %v950 = vunpack.c.l.b16 %v165
      %v951 = vunpack.c.h.b16 %v165
      %v952 = vunpack.c.l.b16 %v166
      %v953 = vunpack.c.h.b16 %v166
      %v954 = vunpack.c.l.b16 %v167
      %v955 = vunpack.c.h.b16 %v167
      %v956 = vunpack.c.l.b16 %v168
      %v957 = vunpack.c.h.b16 %v168
      %v958 = vunpack.c.l.b16 %v169
      %v959 = vunpack.c.h.b16 %v169
      %v960 = vunpack.c.l.b16 %v170
      %v961 = vunpack.c.h.b16 %v170
      %v962 = vunpack.c.l.b16 %v171
      %v963 = vunpack.c.h.b16 %v171
      %v964 = vunpack.c.l.b16 %v172
      %v965 = vunpack.c.h.b16 %v172
      %v966 = vunpack.c.l.b16 %v173
      %v967 = vunpack.c.h.b16 %v173
      %v968 = vunpack.c.l.b16 %v174
      %v969 = vunpack.c.h.b16 %v174
      %v970 = vunpack.c.l.b16 %v175
      %v971 = vunpack.c.h.b16 %v175
      %v972 = vunpack.c.l.b16 %v176
      %v973 = vunpack.c.h.b16 %v176
      %v974 = vunpack.c.l.b16 %v177
      %v975 = vunpack.c.h.b16 %v177
      %v976 = vunpack.c.l.b16 %v178
      %v977 = vunpack.c.h.b16 %v178
      %v978 = vunpack.c.l.b16 %v179
      %v979 = vunpack.c.h.b16 %v179
      %v980 = vunpack.c.l.b16 %v180
      %v981 = vunpack.c.h.b16 %v180
      %v982 = vunpack.c.l.b16 %v181
      %v983 = vunpack.c.h.b16 %v181
      %v984 = vunpack.c.l.b16 %v182
      %v985 = vunpack.c.h.b16 %v182
      %v986 = vunpack.c.l.b16 %v183
      %v987 = vunpack.c.h.b16 %v183
      %v988 = vunpack.c.l.b16 %v184
      %v989 = vunpack.c.h.b16 %v184
      %v990 = vunpack.c.l.b16 %v185
      %v991 = vunpack.c.h.b16 %v185
      %v992 = vunpack.c.l.b16 %v186
      %v993 = vunpack.c.h.b16 %v186
      %v994 = vunpack.c.l.b16 %v187
      %v995 = vunpack.c.h.b16 %v187
      %v996 = vunpack.c.l.b16 %v188
      %v997 = vunpack.c.h.b16 %v188
      %v998 = vunpack.c.l.b16 %v189
      %v999 = vunpack.c.h.b16 %v189
      %v1000 = vunpack.c.l.b16 %v190
      %v1001 = vunpack.c.h.b16 %v190
      %v1002 = vunpack.c.l.b16 %v191
      %v1003 = vunpack.c.h.b16 %v191
      %v1004 = vunpack.c.l.b16 %v192
      %v1005 = vunpack.c.h.b16 %v192
      %v1006 = vunpack.c.l.b16 %v193
      %v1007 = vunpack.c.h.b16 %v193
      %v1008 = vunpack.c.l.b16 %v194
      %v1009 = vunpack.c.h.b16 %v194
      %v1010 = vunpack.c.l.b16 %v195
      %v1011 = vunpack.c.h.b16 %v195
      %v1012 = vunpack.c.l.b16 %v196
      %v1013 = vunpack.c.h.b16 %v196
      %v1014 = vunpack.c.l.b16 %v197
      %v1015 = vunpack.c.h.b16 %v197
      %v1016 = vunpack.c.l.b16 %v198
      %v1017 = vunpack.c.h.b16 %v198
      %v1018 = vunpack.c.l.b16 %v199
      %v1019 = vunpack.c.h.b16 %v199
      %v1020 = vunpack.c.l.b16 %v200
      %v1021 = vunpack.c.h.b16 %v200
      %v1022 = vunpack.c.l.b16 %v201
      %v1023 = vunpack.c.h.b16 %v201
      %v1024 = vunpack.c.l.b16 %v202
      %v1025 = vunpack.c.h.b16 %v202
      %v1026 = vunpack.c.l.b16 %v203
      %v1027 = vunpack.c.h.b16 %v203
      %v1028 = vunpack.c.l.b16 %v204
      %v1029 = vunpack.c.h.b16 %v204
      %v1030 = vunpack.c.l.b16 %v205
      %v1031 = vunpack.c.h.b16 %v205
      %v1032 = vunpack.c.l.b16 %v206
      %v1033 = vunpack.c.h.b16 %v206
      %v1034 = vunpack.c.l.b16 %v207
      %v1035 = vunpack.c.h.b16 %v207
      %v1036 = vunpack.c.l.b16 %v208
      %v1037 = vunpack.c.h.b16 %v208
      %v1038 = vunpack.c.l.b16 %v209
      %v1039 = vunpack.c.h.b16 %v209
      %v1040 = vunpack.c.l.b16 %v210
      %v1041 = vunpack.c.h.b16 %v210
      %v1042 = vunpack.c.l.b16 %v211
      %v1043 = vunpack.c.h.b16 %v211
      %v1044 = vunpack.c.l.b16 %v212
      %v1045 = vunpack.c.h.b16 %v212
      %v1046 = vunpack.c.l.b16 %v213
      %v1047 = vunpack.c.h.b16 %v213
      %v1048 = vunpack.c.l.b16 %v214
      %v1049 = vunpack.c.h.b16 %v214
      %v1050 = vunpack.c.l.b16 %v215
      %v1051 = vunpack.c.h.b16 %v215
      %v1052 = vunpack.c.l.b16 %v216
      %v1053 = vunpack.c.h.b16 %v216
      %v1054 = vunpack.c.l.b16 %v217
      %v1055 = vunpack.c.h.b16 %v217
      %v1056 = vunpack.c.l.b16 %v218
      %v1057 = vunpack.c.h.b16 %v218
      %v1058 = vunpack.c.l.b16 %v219
      %v1059 = vunpack.c.h.b16 %v219
      %v1060 = vunpack.c.l.b16 %v220
      %v1061 = vunpack.c.h.b16 %v220
      %v1062 = vunpack.c.l.b16 %v221
      %v1063 = vunpack.c.h.b16 %v221
      %v1064 = vunpack.c.l.b16 %v222
      %v1065 = vunpack.c.h.b16 %v222
      %v1066 = vunpack.c.l.b16 %v223
      %v1067 = vunpack.c.h.b16 %v223
      %v1068 = vunpack.c.l.b16 %v224
      %v1069 = vunpack.c.h.b16 %v224
      %v1070 = vunpack.c.l.b16 %v225
      %v1071 = vunpack.c.h.b16 %v225
      %v1072 = vunpack.c.l.b16 %v226
      %v1073 = vunpack.c.h.b16 %v226
      %v1074 = vunpack.c.l.b16 %v227
      %v1075 = vunpack.c.h.b16 %v227
      %v1076 = vunpack.c.l.b16 %v228
      %v1077 = vunpack.c.h.b16 %v228
      %v1078 = vunpack.c.l.b16 %v229
      %v1079 = vunpack.c.h.b16 %v229
      %v1080 = vunpack.c.l.b16 %v230
      %v1081 = vunpack.c.h.b16 %v230
      %v1082 = vunpack.c.l.b16 %v231
      %v1083 = vunpack.c.h.b16 %v231
      %v1084 = vunpack.c.l.b16 %v232
      %v1085 = vunpack.c.h.b16 %v232
      %v1086 = vunpack.c.l.b16 %v233
      %v1087 = vunpack.c.h.b16 %v233
      %v1088 = vunpack.c.l.b16 %v234
      %v1089 = vunpack.c.h.b16 %v234
      %v1090 = vunpack.c.l.b16 %v235
      %v1091 = vunpack.c.h.b16 %v235
      %v1092 = vunpack.c.l.b16 %v236
      %v1093 = vunpack.c.h.b16 %v236
      %v1094 = vunpack.c.l.b16 %v237
      %v1095 = vunpack.c.h.b16 %v237
      %v1096 = vunpack.c.l.b16 %v238
      %v1097 = vunpack.c.h.b16 %v238
      %v1098 = vunpack.c.l.b16 %v239
      %v1099 = vunpack.c.h.b16 %v239
      %v1100 = vunpack.c.l.b16 %v240
      %v1101 = vunpack.c.h.b16 %v240
      %v1102 = vunpack.c.l.b16 %v241
      %v1103 = vunpack.c.h.b16 %v241
      %v1104 = vunpack.c.l.b16 %v242
      %v1105 = vunpack.c.h.b16 %v242
      %v1106 = vunpack.c.l.b16 %v243
      %v1107 = vunpack.c.h.b16 %v243
      %v1108 = vunpack.c.l.b16 %v244
      %v1109 = vunpack.c.h.b16 %v244
      %v1110 = vunpack.c.l.b16 %v245
      %v1111 = vunpack.c.h.b16 %v245
      %v1112 = vunpack.c.l.b16 %v246
      %v1113 = vunpack.c.h.b16 %v246
      %v1114 = vunpack.c.l.b16 %v247
      %v1115 = vunpack.c.h.b16 %v247
      %v1116 = vunpack.c.l.b16 %v248
      %v1117 = vunpack.c.h.b16 %v248
      %v1118 = vunpack.c.l.b16 %v249
      %v1119 = vunpack.c.h.b16 %v249
      %v1120 = vunpack.c.l.b16 %v250
      %v1121 = vunpack.c.h.b16 %v250
      %v1122 = vunpack.c.l.b16 %v251
      %v1123 = vunpack.c.h.b16 %v251
      %v1124 = vunpack.c.l.b16 %v252
      %v1125 = vunpack.c.h.b16 %v252
      %v1126 = vunpack.c.l.b16 %v253
      %v1127 = vunpack.c.h.b16 %v253
      %v1128 = vunpack.c.l.b16 %v254
      %v1129 = vunpack.c.h.b16 %v254
      %v1130 = vunpack.c.l.b16 %v255
      %v1131 = vunpack.c.h.b16 %v255
      %v1132 = vunpack.c.l.b16 %v256
      %v1133 = vunpack.c.h.b16 %v256
      %v1134 = vunpack.c.l.b16 %v257
      %v1135 = vunpack.c.h.b16 %v257
      %v1136 = vunpack.c.l.b16 %v258
      %v1137 = vunpack.c.h.b16 %v258
      %v1138 = vunpack.c.l.b16 %v259
      %v1139 = vunpack.c.h.b16 %v259
      %v1140 = vunpack.c.l.b16 %v260
      %v1141 = vunpack.c.h.b16 %v260
      %v1142 = vunpack.c.l.b16 %v261
      %v1143 = vunpack.c.h.b16 %v261
      %v1144 = vunpack.c.l.b16 %v262
      %v1145 = vunpack.c.h.b16 %v262
      %v1146 = vunpack.c.l.b16 %v263
      %v1147 = vunpack.c.h.b16 %v263
      %v1148 = vunpack.c.l.b16 %v264
      %v1149 = vunpack.c.h.b16 %v264
      %v1150 = vunpack.c.l.b16 %v265
      %v1151 = vunpack.c.h.b16 %v265
      %v1152 = vunpack.c.l.b16 %v266
      %v1153 = vunpack.c.h.b16 %v266
      %v1154 = vunpack.c.l.b16 %v267
      %v1155 = vunpack.c.h.b16 %v267
      %v1156 = vunpack.c.l.b16 %v268
      %v1157 = vunpack.c.h.b16 %v268
      %v1158 = vunpack.c.l.b16 %v269
      %v1159 = vunpack.c.h.b16 %v269
      %v1160 = vunpack.c.l.b16 %v270
      %v1161 = vunpack.c.h.b16 %v270
      %v1162 = vunpack.c.l.b16 %v271
      %v1163 = vunpack.c.h.b16 %v271
      %v1164 = vunpack.c.l.b16 %v272
      %v1165 = vunpack.c.h.b16 %v272
      %v1166 = vunpack.c.l.b16 %v273
      %v1167 = vunpack.c.h.b16 %v273
      %v1168 = vunpack.c.l.b16 %v274
      %v1169 = vunpack.c.h.b16 %v274
      %v1170 = vunpack.c.l.b16 %v275
      %v1171 = vunpack.c.h.b16 %v275
      %v1172 = vunpack.c.l.b16 %v276
      %v1173 = vunpack.c.h.b16 %v276
      %v1174 = vunpack.c.l.b16 %v277
      %v1175 = vunpack.c.h.b16 %v277
      %v1176 = vunpack.c.l.b16 %v278
      %v1177 = vunpack.c.h.b16 %v278
      %v1178 = vunpack.c.l.b16 %v279
      %v1179 = vunpack.c.h.b16 %v279
      %v1180 = vunpack.c.l.b16 %v280
      %v1181 = vunpack.c.h.b16 %v280
      %v1182 = vunpack.c.l.b16 %v281
      %v1183 = vunpack.c.h.b16 %v281
      %v1184 = vunpack.c.l.b16 %v282
      %v1185 = vunpack.c.h.b16 %v282
      %v1186 = vunpack.c.l.b16 %v283
      %v1187 = vunpack.c.h.b16 %v283
      %v1188 = vunpack.c.l.b16 %v284
      %v1189 = vunpack.c.h.b16 %v284
      %v1190 = vunpack.c.l.b16 %v285
      %v1191 = vunpack.c.h.b16 %v285
      %v1192 = vunpack.c.l.b16 %v286
      %v1193 = vunpack.c.h.b16 %v286
      %v1194 = vunpack.c.l.b16 %v287
      %v1195 = vunpack.c.h.b16 %v287
      %v1196 = vunpack.c.l.b16 %v288
      %v1197 = vunpack.c.h.b16 %v288
      %v1198 = vunpack.c.l.b16 %v289
      %v1199 = vunpack.c.h.b16 %v289
      %v1200 = vunpack.c.l.b16 %v290
      %v1201 = vunpack.c.h.b16 %v290
      %v1202 = vunpack.c.l.b16 %v291
      %v1203 = vunpack.c.h.b16 %v291
      %v1204 = vunpack.c.l.b16 %v292
      %v1205 = vunpack.c.h.b16 %v292
      %v1206 = vunpack.c.l.b16 %v293
      %v1207 = vunpack.c.h.b16 %v293
      %v1208 = vunpack.c.l.b16 %v294
      %v1209 = vunpack.c.h.b16 %v294
      %v1210 = vunpack.c.l.b16 %v295
      %v1211 = vunpack.c.h.b16 %v295
      %v1212 = vunpack.c.l.b16 %v296
      %v1213 = vunpack.c.h.b16 %v296
      %v1214 = vunpack.c.l.b16 %v297
      %v1215 = vunpack.c.h.b16 %v297
      %v1216 = vunpack.c.l.b16 %v298
      %v1217 = vunpack.c.h.b16 %v298
      %v1218 = vunpack.c.l.b16 %v299
      %v1219 = vunpack.c.h.b16 %v299
      %v1220 = vunpack.c.l.b16 %v300
      %v1221 = vunpack.c.h.b16 %v300
      %v1222 = vunpack.c.l.b16 %v301
      %v1223 = vunpack.c.h.b16 %v301
      %v1224 = vunpack.c.l.b16 %v302
      %v1225 = vunpack.c.h.b16 %v302
      %v1226 = vunpack.c.l.b16 %v303
      %v1227 = vunpack.c.h.b16 %v303
      %v1228 = vunpack.c.l.b16 %v304
      %v1229 = vunpack.c.h.b16 %v304
      %v1230 = vunpack.c.l.b16 %v305
      %v1231 = vunpack.c.h.b16 %v305
      %v1232 = vunpack.c.l.b16 %v306
      %v1233 = vunpack.c.h.b16 %v306
      %v1234 = vunpack.c.l.b16 %v307
      %v1235 = vunpack.c.h.b16 %v307
      %v1236 = vunpack.c.l.b16 %v308
      %v1237 = vunpack.c.h.b16 %v308
      %v1238 = vunpack.c.l.b16 %v309
      %v1239 = vunpack.c.h.b16 %v309
      %v1240 = vunpack.c.l.b16 %v310
      %v1241 = vunpack.c.h.b16 %v310
      %v1242 = vunpack.c.l.b16 %v311
      %v1243 = vunpack.c.h.b16 %v311
      %v1244 = vunpack.c.l.b16 %v312
      %v1245 = vunpack.c.h.b16 %v312
      %v1246 = vunpack.c.l.b16 %v313
      %v1247 = vunpack.c.h.b16 %v313
      %v1248 = vunpack.c.l.b16 %v314
      %v1249 = vunpack.c.h.b16 %v314
      %v1250 = vunpack.c.l.b16 %v315
      %v1251 = vunpack.c.h.b16 %v315
      %v1252 = vunpack.c.l.b16 %v316
      %v1253 = vunpack.c.h.b16 %v316
      %v1254 = vunpack.c.l.b16 %v317
      %v1255 = vunpack.c.h.b16 %v317
      %v1256 = vunpack.c.l.b16 %v318
      %v1257 = vunpack.c.h.b16 %v318
      %v1258 = vunpack.c.l.b16 %v319
      %v1259 = vunpack.c.h.b16 %v319
      %v1260 = vunpack.c.l.b16 %v320
      %v1261 = vunpack.c.h.b16 %v320
      %v1262 = vunpack.c.l.b16 %v321
      %v1263 = vunpack.c.h.b16 %v321
      %v1264 = vunpack.c.l.b16 %v322
      %v1265 = vunpack.c.h.b16 %v322
      %v1266 = vunpack.c.l.b16 %v323
      %v1267 = vunpack.c.h.b16 %v323
      %v1268 = vunpack.c.l.b16 %v324
      %v1269 = vunpack.c.h.b16 %v324
      %v1270 = vunpack.c.l.b16 %v325
      %v1271 = vunpack.c.h.b16 %v325
      %v1272 = vunpack.c.l.b16 %v326
      %v1273 = vunpack.c.h.b16 %v326
      %v1274 = vunpack.c.l.b16 %v327
      %v1275 = vunpack.c.h.b16 %v327
      %v1276 = vunpack.c.l.b16 %v328
      %v1277 = vunpack.c.h.b16 %v328
      %v1278 = vunpack.c.l.b16 %v329
      %v1279 = vunpack.c.h.b16 %v329
      %v1280 = vunpack.c.l.b16 %v330
      %v1281 = vunpack.c.h.b16 %v330
      %v1282 = vunpack.c.l.b16 %v331
      %v1283 = vunpack.c.h.b16 %v331
      %v1284 = vunpack.c.l.b16 %v332
      %v1285 = vunpack.c.h.b16 %v332
      %v1286 = vunpack.c.l.b16 %v333
      %v1287 = vunpack.c.h.b16 %v333
      %v1288 = vunpack.c.l.b16 %v334
      %v1289 = vunpack.c.h.b16 %v334
      %v1290 = vunpack.c.l.b16 %v335
      %v1291 = vunpack.c.h.b16 %v335
      %v1292 = vunpack.c.l.b16 %v336
      %v1293 = vunpack.c.h.b16 %v336
      %v1294 = vunpack.c.l.b16 %v337
      %v1295 = vunpack.c.h.b16 %v337
      %v1296 = vunpack.c.l.b16 %v338
      %v1297 = vunpack.c.h.b16 %v338
      %v1298 = vunpack.c.l.b16 %v339
      %v1299 = vunpack.c.h.b16 %v339
      %v1300 = vunpack.c.l.b16 %v340
      %v1301 = vunpack.c.h.b16 %v340
      %v1302 = vunpack.c.l.b16 %v341
      %v1303 = vunpack.c.h.b16 %v341
      %v1304 = vunpack.c.l.b16 %v342
      %v1305 = vunpack.c.h.b16 %v342
      %v1306 = vunpack.c.l.b16 %v343
      %v1307 = vunpack.c.h.b16 %v343
      %v1308 = vunpack.c.l.b16 %v344
      %v1309 = vunpack.c.h.b16 %v344
      %v1310 = vunpack.c.l.b16 %v345
      %v1311 = vunpack.c.h.b16 %v345
      %v1312 = vunpack.c.l.b16 %v346
      %v1313 = vunpack.c.h.b16 %v346
      %v1314 = vunpack.c.l.b16 %v347
      %v1315 = vunpack.c.h.b16 %v347
      %v1316 = vunpack.c.l.b16 %v348
      %v1317 = vunpack.c.h.b16 %v348
      %v1318 = vunpack.c.l.b16 %v349
      %v1319 = vunpack.c.h.b16 %v349
      %v1320 = vunpack.c.l.b16 %v350
      %v1321 = vunpack.c.h.b16 %v350
      %v1322 = vunpack.c.l.b16 %v351
      %v1323 = vunpack.c.h.b16 %v351
      %v1324 = vunpack.c.l.b16 %v352
      %v1325 = vunpack.c.h.b16 %v352
      %v1326 = vunpack.c.l.b16 %v353
      %v1327 = vunpack.c.h.b16 %v353
      %v1328 = vunpack.c.l.b16 %v354
      %v1329 = vunpack.c.h.b16 %v354
      %v1330 = vunpack.c.l.b16 %v355
      %v1331 = vunpack.c.h.b16 %v355
      %v1332 = vunpack.c.l.b16 %v356
      %v1333 = vunpack.c.h.b16 %v356
      %v1334 = vunpack.c.l.b16 %v357
      %v1335 = vunpack.c.h.b16 %v357
      %v1336 = vunpack.c.l.b16 %v358
      %v1337 = vunpack.c.h.b16 %v358
      %v1338 = vunpack.c.l.b16 %v359
      %v1339 = vunpack.c.h.b16 %v359
      %v1340 = vunpack.c.l.b16 %v360
      %v1341 = vunpack.c.h.b16 %v360
      %v1342 = vunpack.c.l.b16 %v361
      %v1343 = vunpack.c.h.b16 %v361
      %v1344 = vunpack.c.l.b16 %v362
      %v1345 = vunpack.c.h.b16 %v362
      %v1346 = vunpack.c.l.b16 %v363
      %v1347 = vunpack.c.h.b16 %v363
      %v1348 = vunpack.c.l.b16 %v364
      %v1349 = vunpack.c.h.b16 %v364
      %v1350 = vunpack.c.l.b16 %v365
      %v1351 = vunpack.c.h.b16 %v365
      %v1352 = vunpack.c.l.b16 %v366
      %v1353 = vunpack.c.h.b16 %v366
      %v1354 = vunpack.c.l.b16 %v367
      %v1355 = vunpack.c.h.b16 %v367
      %v1356 = vunpack.c.l.b16 %v368
      %v1357 = vunpack.c.h.b16 %v368
      %v1358 = vunpack.c.l.b16 %v369
      %v1359 = vunpack.c.h.b16 %v369
      %v1360 = vunpack.c.l.b16 %v370
      %v1361 = vunpack.c.h.b16 %v370
      %v1362 = vunpack.c.l.b16 %v371
      %v1363 = vunpack.c.h.b16 %v371
      %v1364 = vunpack.c.l.b16 %v372
      %v1365 = vunpack.c.h.b16 %v372
      %v1366 = vunpack.c.l.b16 %v373
      %v1367 = vunpack.c.h.b16 %v373
      %v1368 = vunpack.c.l.b16 %v374
      %v1369 = vunpack.c.h.b16 %v374
      %v1370 = vunpack.c.l.b16 %v375
      %v1371 = vunpack.c.h.b16 %v375
      %v1372 = vunpack.c.l.b16 %v376
      %v1373 = vunpack.c.h.b16 %v376
      %v1374 = vunpack.c.l.b16 %v377
      %v1375 = vunpack.c.h.b16 %v377
      %v1376 = vunpack.c.l.b16 %v378
      %v1377 = vunpack.c.h.b16 %v378
      %v1378 = vunpack.c.l.b16 %v379
      %v1379 = vunpack.c.h.b16 %v379
      %v1380 = vunpack.c.l.b16 %v380
      %v1381 = vunpack.c.h.b16 %v380
      %v1382 = vunpack.c.l.b16 %v381
      %v1383 = vunpack.c.h.b16 %v381
      %v1384 = vunpack.c.l.b16 %v382
      %v1385 = vunpack.c.h.b16 %v382
      %v1386 = vunpack.c.l.b16 %v383
      %v1387 = vunpack.c.h.b16 %v383
      %v1388 = vunpack.c.l.b16 %v384
      %v1389 = vunpack.c.h.b16 %v384
      %v1390 = vunpack.c.l.b16 %v385
      %v1391 = vunpack.c.h.b16 %v385
      %v1392 = vunpack.c.l.b16 %v386
      %v1393 = vunpack.c.h.b16 %v386
      %v1394 = vunpack.c.l.b16 %v387
      %v1395 = vunpack.c.h.b16 %v387
      %v1396 = vunpack.c.l.b16 %v388
      %v1397 = vunpack.c.h.b16 %v388
      %v1398 = vunpack.c.l.b16 %v389
      %v1399 = vunpack.c.h.b16 %v389
      %v1400 = vunpack.c.l.b16 %v390
      %v1401 = vunpack.c.h.b16 %v390
      %v1402 = vunpack.c.l.b16 %v391
      %v1403 = vunpack.c.h.b16 %v391
      %v1404 = vunpack.c.l.b16 %v392
      %v1405 = vunpack.c.h.b16 %v392
      %v1406 = vunpack.c.l.b16 %v393
      %v1407 = vunpack.c.h.b16 %v393
      %v1408 = vunpack.c.l.b16 %v394
      %v1409 = vunpack.c.h.b16 %v394
      %v1410 = vunpack.c.l.b16 %v395
      %v1411 = vunpack.c.h.b16 %v395
      %v1412 = vunpack.c.l.b16 %v396
      %v1413 = vunpack.c.h.b16 %v396
      %v1414 = vunpack.c.l.b16 %v397
      %v1415 = vunpack.c.h.b16 %v397
      %v1416 = vunpack.c.l.b16 %v398
      %v1417 = vunpack.c.h.b16 %v398
      %v1418 = vunpack.c.l.b16 %v399
      %v1419 = vunpack.c.h.b16 %v399
      %v1420 = vunpack.c.l.b16 %v400
      %v1421 = vunpack.c.h.b16 %v400
      %v1422 = vunpack.c.l.b16 %v401
      %v1423 = vunpack.c.h.b16 %v401
      %v1424 = vunpack.c.l.b16 %v402
      %v1425 = vunpack.c.h.b16 %v402
      %v1426 = vunpack.c.l.b16 %v403
      %v1427 = vunpack.c.h.b16 %v403
      %v1428 = vunpack.c.l.b16 %v404
      %v1429 = vunpack.c.h.b16 %v404
      %v1430 = vunpack.c.l.b16 %v405
      %v1431 = vunpack.c.h.b16 %v405
      %v1432 = vunpack.c.l.b16 %v406
      %v1433 = vunpack.c.h.b16 %v406
      %v1434 = vunpack.c.l.b16 %v407
      %v1435 = vunpack.c.h.b16 %v407
      %v1436 = vunpack.c.l.b16 %v408
      %v1437 = vunpack.c.h.b16 %v408
      %v1438 = vunpack.c.l.b16 %v409
      %v1439 = vunpack.c.h.b16 %v409
      %v1440 = vunpack.c.l.b16 %v410
      %v1441 = vunpack.c.h.b16 %v410
      %v1442 = vunpack.c.l.b16 %v411
      %v1443 = vunpack.c.h.b16 %v411
      %v1444 = vunpack.c.l.b16 %v412
      %v1445 = vunpack.c.h.b16 %v412
      %v1446 = vunpack.c.l.b16 %v413
      %v1447 = vunpack.c.h.b16 %v413
      %v1448 = vunpack.c.l.b16 %v414
      %v1449 = vunpack.c.h.b16 %v414
      %v1450 = vunpack.c.l.b16 %v415
      %v1451 = vunpack.c.h.b16 %v415
      %v1452 = vunpack.c.l.b16 %v416
      %v1453 = vunpack.c.h.b16 %v416
      %v1454 = vunpack.c.l.b16 %v417
      %v1455 = vunpack.c.h.b16 %v417
      %v1456 = vunpack.c.l.b16 %v418
      %v1457 = vunpack.c.h.b16 %v418
      %v1458 = vunpack.c.l.b16 %v419
      %v1459 = vunpack.c.h.b16 %v419
      %v1460 = vunpack.c.l.b16 %v420
      %v1461 = vunpack.c.h.b16 %v420
      %v1462 = vunpack.c.l.b16 %v421
      %v1463 = vunpack.c.h.b16 %v421
      %v1464 = vunpack.c.l.b16 %v422
      %v1465 = vunpack.c.h.b16 %v422
      %v1466 = vunpack.c.l.b16 %v423
      %v1467 = vunpack.c.h.b16 %v423
      %v1468 = vunpack.c.l.b16 %v424
      %v1469 = vunpack.c.h.b16 %v424
      %v1470 = vunpack.c.l.b16 %v425
      %v1471 = vunpack.c.h.b16 %v425
      %v1472 = vunpack.c.l.b16 %v426
      %v1473 = vunpack.c.h.b16 %v426
      %v1474 = vunpack.c.l.b16 %v427
      %v1475 = vunpack.c.h.b16 %v427
      %v1476 = vunpack.c.l.b16 %v428
      %v1477 = vunpack.c.h.b16 %v428
      %v1478 = vunpack.c.l.b16 %v429
      %v1479 = vunpack.c.h.b16 %v429
      %v1480 = vunpack.c.l.b16 %v430
      %v1481 = vunpack.c.h.b16 %v430
      %v1482 = vunpack.c.l.b16 %v431
      %v1483 = vunpack.c.h.b16 %v431
      %v1484 = vunpack.c.l.b16 %v432
      %v1485 = vunpack.c.h.b16 %v432
      %v1486 = vunpack.c.l.b16 %v433
      %v1487 = vunpack.c.h.b16 %v433
      %v1488 = vunpack.c.l.b16 %v434
      %v1489 = vunpack.c.h.b16 %v434
      %v1490 = vunpack.c.l.b16 %v435
      %v1491 = vunpack.c.h.b16 %v435
      %v1492 = vunpack.c.l.b16 %v436
      %v1493 = vunpack.c.h.b16 %v436
      %v1494 = vunpack.c.l.b16 %v437
      %v1495 = vunpack.c.h.b16 %v437
      %v1496 = vunpack.c.l.b16 %v438
      %v1497 = vunpack.c.h.b16 %v438
      %v1498 = vunpack.c.l.b16 %v439
      %v1499 = vunpack.c.h.b16 %v439
      %v1500 = vunpack.c.l.b16 %v440
      %v1501 = vunpack.c.h.b16 %v440
      %v1502 = vunpack.c.l.b16 %v441
      %v1503 = vunpack.c.h.b16 %v441
      %v1504 = vunpack.c.l.b16 %v442
      %v1505 = vunpack.c.h.b16 %v442
      %v1506 = vunpack.c.l.b16 %v443
      %v1507 = vunpack.c.h.b16 %v443
      %v1508 = vunpack.c.l.b16 %v444
      %v1509 = vunpack.c.h.b16 %v444
      %v1510 = vunpack.c.l.b16 %v445
      %v1511 = vunpack.c.h.b16 %v445
      %v1512 = vunpack.c.l.b16 %v446
      %v1513 = vunpack.c.h.b16 %v446
      %v1514 = vunpack.c.l.b16 %v447
      %v1515 = vunpack.c.h.b16 %v447
      %v1516 = vunpack.c.l.b16 %v448
      %v1517 = vunpack.c.h.b16 %v448
      %v1518 = vunpack.c.l.b16 %v449
      %v1519 = vunpack.c.h.b16 %v449
      %v1520 = vunpack.c.l.b16 %v450
      %v1521 = vunpack.c.h.b16 %v450
      %v1522 = vunpack.c.l.b16 %v451
      %v1523 = vunpack.c.h.b16 %v451
      %v1524 = vunpack.c.l.b16 %v452
      %v1525 = vunpack.c.h.b16 %v452
      %v1526 = vunpack.c.l.b16 %v453
      %v1527 = vunpack.c.h.b16 %v453
      %v1528 = vunpack.c.l.b16 %v454
      %v1529 = vunpack.c.h.b16 %v454
      %v1530 = vunpack.c.l.b16 %v455
      %v1531 = vunpack.c.h.b16 %v455
      %v1532 = vunpack.c.l.b16 %v456
      %v1533 = vunpack.c.h.b16 %v456
      %v1534 = vunpack.c.l.b16 %v457
      %v1535 = vunpack.c.h.b16 %v457
      %v1536 = vunpack.c.l.b16 %v458
      %v1537 = vunpack.c.h.b16 %v458
      %v1538 = vunpack.c.l.b16 %v459
      %v1539 = vunpack.c.h.b16 %v459
      %v1540 = vunpack.c.l.b16 %v460
      %v1541 = vunpack.c.h.b16 %v460
      %v1542 = vunpack.c.l.b16 %v461
      %v1543 = vunpack.c.h.b16 %v461
      %v1544 = vunpack.c.l.b16 %v462
      %v1545 = vunpack.c.h.b16 %v462
      %v1546 = vunpack.c.l.b16 %v463
      %v1547 = vunpack.c.h.b16 %v463
      %v1548 = vunpack.c.l.b16 %v464
      %v1549 = vunpack.c.h.b16 %v464
      %v1550 = vunpack.c.l.b16 %v465
      %v1551 = vunpack.c.h.b16 %v465
      %v1552 = vunpack.c.l.b16 %v466
      %v1553 = vunpack.c.h.b16 %v466
      %v1554 = vunpack.c.l.b16 %v467
      %v1555 = vunpack.c.h.b16 %v467
      %v1556 = vunpack.c.l.b16 %v468
      %v1557 = vunpack.c.h.b16 %v468
      %v1558 = vunpack.c.l.b16 %v469
      %v1559 = vunpack.c.h.b16 %v469
      %v1560 = vunpack.c.l.b16 %v470
      %v1561 = vunpack.c.h.b16 %v470
      %v1562 = vunpack.c.l.b16 %v471
      %v1563 = vunpack.c.h.b16 %v471
      %v1564 = vunpack.c.l.b16 %v472
      %v1565 = vunpack.c.h.b16 %v472
      %v1566 = vunpack.c.l.b16 %v473
      %v1567 = vunpack.c.h.b16 %v473
      %v1568 = vunpack.c.l.b16 %v474
      %v1569 = vunpack.c.h.b16 %v474
      %v1570 = vunpack.c.l.b16 %v475
      %v1571 = vunpack.c.h.b16 %v475
      %v1572 = vunpack.c.l.b16 %v476
      %v1573 = vunpack.c.h.b16 %v476
      %v1574 = vunpack.c.l.b16 %v477
      %v1575 = vunpack.c.h.b16 %v477
      %v1576 = vunpack.c.l.b16 %v478
      %v1577 = vunpack.c.h.b16 %v478
      %v1578 = vunpack.c.l.b16 %v479
      %v1579 = vunpack.c.h.b16 %v479
      %v1580 = vunpack.c.l.b16 %v480
      %v1581 = vunpack.c.h.b16 %v480
      %v1582 = vunpack.c.l.b16 %v481
      %v1583 = vunpack.c.h.b16 %v481
      %v1584 = vunpack.c.l.b16 %v482
      %v1585 = vunpack.c.h.b16 %v482
      %v1586 = vunpack.c.l.b16 %v483
      %v1587 = vunpack.c.h.b16 %v483
      %v1588 = vunpack.c.l.b16 %v484
      %v1589 = vunpack.c.h.b16 %v484
      %v1590 = vunpack.c.l.b16 %v485
      %v1591 = vunpack.c.h.b16 %v485
      %v1592 = vunpack.c.l.b16 %v486
      %v1593 = vunpack.c.h.b16 %v486
      %v1594 = vunpack.c.l.b16 %v487
      %v1595 = vunpack.c.h.b16 %v487
      %v1596 = vunpack.c.l.b16 %v488
      %v1597 = vunpack.c.h.b16 %v488
      %v1598 = vunpack.c.l.b16 %v489
      %v1599 = vunpack.c.h.b16 %v489
      %v1600 = vunpack.c.l.b16 %v490
      %v1601 = vunpack.c.h.b16 %v490
      %v1602 = vunpack.c.l.b16 %v491
      %v1603 = vunpack.c.h.b16 %v491
      %v1604 = vunpack.c.l.b16 %v492
      %v1605 = vunpack.c.h.b16 %v492
      %v1606 = vunpack.c.l.b16 %v493
      %v1607 = vunpack.c.h.b16 %v493
      %v1608 = vunpack.c.l.b16 %v494
      %v1609 = vunpack.c.h.b16 %v494
      %v1610 = vunpack.c.l.b16 %v495
      %v1611 = vunpack.c.h.b16 %v495
      %v1612 = vunpack.c.l.b16 %v496
      %v1613 = vunpack.c.h.b16 %v496
      %v1614 = vunpack.c.l.b16 %v497
      %v1615 = vunpack.c.h.b16 %v497
      %v1616 = vunpack.c.l.b16 %v498
      %v1617 = vunpack.c.h.b16 %v498
      %v1618 = vunpack.c.l.b16 %v499
      %v1619 = vunpack.c.h.b16 %v499
      %v1620 = vunpack.c.l.b16 %v500
      %v1621 = vunpack.c.h.b16 %v500
      %v1622 = vunpack.c.l.b16 %v501
      %v1623 = vunpack.c.h.b16 %v501
      %v1624 = vunpack.c.l.b16 %v502
      %v1625 = vunpack.c.h.b16 %v502
      %v1626 = vunpack.c.l.b16 %v503
      %v1627 = vunpack.c.h.b16 %v503
      %v1628 = vunpack.c.l.b16 %v504
      %v1629 = vunpack.c.h.b16 %v504
      %v1630 = vunpack.c.l.b16 %v505
      %v1631 = vunpack.c.h.b16 %v505
      %v1632 = vunpack.c.l.b16 %v506
      %v1633 = vunpack.c.h.b16 %v506
      %v1634 = vunpack.c.l.b16 %v507
      %v1635 = vunpack.c.h.b16 %v507
      %v1636 = vunpack.c.l.b16 %v508
      %v1637 = vunpack.c.h.b16 %v508
      %v1638 = vunpack.c.l.b16 %v509
      %v1639 = vunpack.c.h.b16 %v509
      %v1640 = vunpack.c.l.b16 %v510
      %v1641 = vunpack.c.h.b16 %v510
      %v1642 = vunpack.c.l.b16 %v511
      %v1643 = vunpack.c.h.b16 %v511
      %v1644 = vunpack.c.l.b16 %v512
      %v1645 = vunpack.c.h.b16 %v512
      %v1646 = vunpack.c.l.b16 %v513
      %v1647 = vunpack.c.h.b16 %v513
      %v1648 = vunpack.c.l.b16 %v514
      %v1649 = vunpack.c.h.b16 %v514
      %v1650 = vunpack.c.l.b16 %v515
      %v1651 = vunpack.c.h.b16 %v515
      %v1652 = vunpack.c.l.b16 %v516
      %v1653 = vunpack.c.h.b16 %v516
      %v1654 = vunpack.c.l.b16 %v517
      %v1655 = vunpack.c.h.b16 %v517
      %v1656 = vunpack.c.l.b16 %v518
      %v1657 = vunpack.c.h.b16 %v518
      %v1658 = vunpack.c.l.b16 %v519
      %v1659 = vunpack.c.h.b16 %v519
      %v1660 = vunpack.c.l.b16 %v520
      %v1661 = vunpack.c.h.b16 %v520
      %v1662 = vunpack.c.l.b16 %v521
      %v1663 = vunpack.c.h.b16 %v521
      %v1664 = vunpack.c.l.b16 %v522
      %v1665 = vunpack.c.h.b16 %v522
      %v1666 = vunpack.c.l.b16 %v523
      %v1667 = vunpack.c.h.b16 %v523
      %v1668 = vunpack.c.l.b16 %v524
      %v1669 = vunpack.c.h.b16 %v524
      %v1670 = vunpack.c.l.b16 %v525
      %v1671 = vunpack.c.h.b16 %v525
      %v1672 = vunpack.c.l.b16 %v526
      %v1673 = vunpack.c.h.b16 %v526
      %v1674 = vunpack.c.l.b16 %v527
      %v1675 = vunpack.c.h.b16 %v527
      %v1676 = vunpack.c.l.b16 %v528
      %v1677 = vunpack.c.h.b16 %v528
      %v1678 = vunpack.c.l.b16 %v529
      %v1679 = vunpack.c.h.b16 %v529
      %v1680 = vunpack.c.l.b16 %v530
      %v1681 = vunpack.c.h.b16 %v530
      %v1682 = vunpack.c.l.b16 %v531
      %v1683 = vunpack.c.h.b16 %v531
      %v1684 = vpack.c.b16 %v1044, %v916
      %v1685 = vpack.c.b16 %v1045, %v917
      %v1686 = vpack.c.b16 %v1046, %v918
      %v1687 = vpack.c.b16 %v1047, %v919
      %v1688 = vpack.c.b16 %v1048, %v920
      %v1689 = vpack.c.b16 %v1049, %v921
      %v1690 = vpack.c.b16 %v1050, %v922
      %v1691 = vpack.c.b16 %v1051, %v923
      %v1692 = vpack.c.b16 %v1052, %v924
      %v1693 = vpack.c.b16 %v1053, %v925
      %v1694 = vpack.c.b16 %v1054, %v926
      %v1695 = vpack.c.b16 %v1055, %v927
      %v1696 = vpack.c.b16 %v1056, %v928
      %v1697 = vpack.c.b16 %v1057, %v929
      %v1698 = vpack.c.b16 %v1058, %v930
      %v1699 = vpack.c.b16 %v1059, %v931
      %v1700 = vpack.c.b16 %v1060, %v932
      %v1701 = vpack.c.b16 %v1061, %v933
      %v1702 = vpack.c.b16 %v1062, %v934
      %v1703 = vpack.c.b16 %v1063, %v935
      %v1704 = vpack.c.b16 %v1064, %v936
      %v1705 = vpack.c.b16 %v1065, %v937
      %v1706 = vpack.c.b16 %v1066, %v938
      %v1707 = vpack.c.b16 %v1067, %v939
      %v1708 = vpack.c.b16 %v1068, %v940
      %v1709 = vpack.c.b16 %v1069, %v941
      %v1710 = vpack.c.b16 %v1070, %v942
      %v1711 = vpack.c.b16 %v1071, %v943
      %v1712 = vpack.c.b16 %v1072, %v944
      %v1713 = vpack.c.b16 %v1073, %v945
      %v1714 = vpack.c.b16 %v1074, %v946
      %v1715 = vpack.c.b16 %v1075, %v947
      %v1716 = vpack.c.b16 %v1076, %v948
      %v1717 = vpack.c.b16 %v1077, %v949
      %v1718 = vpack.c.b16 %v1078, %v950
      %v1719 = vpack.c.b16 %v1079, %v951
      %v1720 = vpack.c.b16 %v1080, %v952
      %v1721 = vpack.c.b16 %v1081, %v953
      %v1722 = vpack.c.b16 %v1082, %v954
      %v1723 = vpack.c.b16 %v1083, %v955
      %v1724 = vpack.c.b16 %v1084, %v956
      %v1725 = vpack.c.b16 %v1085, %v957
      %v1726 = vpack.c.b16 %v1086, %v958
      %v1727 = vpack.c.b16 %v1087, %v959
      %v1728 = vpack.c.b16 %v1088, %v960
      %v1729 = vpack.c.b16 %v1089, %v961
      %v1730 = vpack.c.b16 %v1090, %v962
      %v1731 = vpack.c.b16 %v1091, %v963
      %v1732 = vpack.c.b16 %v1092, %v964
      %v1733 = vpack.c.b16 %v1093, %v965
      %v1734 = vpack.c.b16 %v1094, %v966
      %v1735 = vpack.c.b16 %v1095, %v967
      %v1736 = vpack.c.b16 %v1096, %v968
      %v1737 = vpack.c.b16 %v1097, %v969
      %v1738 = vpack.c.b16 %v1098, %v970
      %v1739 = vpack.c.b16 %v1099, %v971
      %v1740 = vpack.c.b16 %v1100, %v972
      %v1741 = vpack.c.b16 %v1101, %v973
      %v1742 = vpack.c.b16 %v1102, %v974
      %v1743 = vpack.c.b16 %v1103, %v975
      %v1744 = vpack.c.b16 %v1104, %v976
      %v1745 = vpack.c.b16 %v1105, %v977
      %v1746 = vpack.c.b16 %v1106, %v978
      %v1747 = vpack.c.b16 %v1107, %v979
      %v1748 = vpack.c.b16 %v1108, %v980
      %v1749 = vpack.c.b16 %v1109, %v981
      %v1750 = vpack.c.b16 %v1110, %v982
      %v1751 = vpack.c.b16 %v1111, %v983
      %v1752 = vpack.c.b16 %v1112, %v984
      %v1753 = vpack.c.b16 %v1113, %v985
      %v1754 = vpack.c.b16 %v1114, %v986
      %v1755 = vpack.c.b16 %v1115, %v987
      %v1756 = vpack.c.b16 %v1116, %v988
      %v1757 = vpack.c.b16 %v1117, %v989
      %v1758 = vpack.c.b16 %v1118, %v990
      %v1759 = vpack.c.b16 %v1119, %v991
      %v1760 = vpack.c.b16 %v1120, %v992
      %v1761 = vpack.c.b16 %v1121, %v993
      %v1762 = vpack.c.b16 %v1122, %v994
      %v1763 = vpack.c.b16 %v1123, %v995
      %v1764 = vpack.c.b16 %v1124, %v996
      %v1765 = vpack.c.b16 %v1125, %v997
      %v1766 = vpack.c.b16 %v1126, %v998
      %v1767 = vpack.c.b16 %v1127, %v999
      %v1768 = vpack.c.b16 %v1128, %v1000
      %v1769 = vpack.c.b16 %v1129, %v1001
      %v1770 = vpack.c.b16 %v1130, %v1002
      %v1771 = vpack.c.b16 %v1131, %v1003
      %v1772 = vpack.c.b16 %v1132, %v1004
      %v1773 = vpack.c.b16 %v1133, %v1005
      %v1774 = vpack.c.b16 %v1134, %v1006
      %v1775 = vpack.c.b16 %v1135, %v1007
      %v1776 = vpack.c.b16 %v1136, %v1008
      %v1777 = vpack.c.b16 %v1137, %v1009
      %v1778 = vpack.c.b16 %v1138, %v1010
      %v1779 = vpack.c.b16 %v1139, %v1011
      %v1780 = vpack.c.b16 %v1140, %v1012
      %v1781 = vpack.c.b16 %v1141, %v1013
      %v1782 = vpack.c.b16 %v1142, %v1014
      %v1783 = vpack.c.b16 %v1143, %v1015
      %v1784 = vpack.c.b16 %v1144, %v1016
      %v1785 = vpack.c.b16 %v1145, %v1017
      %v1786 = vpack.c.b16 %v1146, %v1018
      %v1787 = vpack.c.b16 %v1147, %v1019
      %v1788 = vpack.c.b16 %v1148, %v1020
      %v1789 = vpack.c.b16 %v1149, %v1021
      %v1790 = vpack.c.b16 %v1150, %v1022
      %v1791 = vpack.c.b16 %v1151, %v1023
      %v1792 = vpack.c.b16 %v1152, %v1024
      %v1793 = vpack.c.b16 %v1153, %v1025
      %v1794 = vpack.c.b16 %v1154, %v1026
      %v1795 = vpack.c.b16 %v1155, %v1027
      %v1796 = vpack.c.b16 %v1156, %v1028
      %v1797 = vpack.c.b16 %v1157, %v1029
      %v1798 = vpack.c.b16 %v1158, %v1030
      %v1799 = vpack.c.b16 %v1159, %v1031
      %v1800 = vpack.c.b16 %v1160, %v1032
      %v1801 = vpack.c.b16 %v1161, %v1033
      %v1802 = vpack.c.b16 %v1162, %v1034
      %v1803 = vpack.c.b16 %v1163, %v1035
      %v1804 = vpack.c.b16 %v1164, %v1036
      %v1805 = vpack.c.b16 %v1165, %v1037
      %v1806 = vpack.c.b16 %v1166, %v1038
      %v1807 = vpack.c.b16 %v1167, %v1039
      %v1808 = vpack.c.b16 %v1168, %v1040
      %v1809 = vpack.c.b16 %v1169, %v1041
      %v1810 = vpack.c.b16 %v1170, %v1042
      %v1811 = vpack.c.b16 %v1171, %v1043
      %v1812 = vpack.c.b16 %v1300, %v1172
      %v1813 = vpack.c.b16 %v1301, %v1173
      %v1814 = vpack.c.b16 %v1302, %v1174
      %v1815 = vpack.c.b16 %v1303, %v1175
      %v1816 = vpack.c.b16 %v1304, %v1176
      %v1817 = vpack.c.b16 %v1305, %v1177
      %v1818 = vpack.c.b16 %v1306, %v1178
      %v1819 = vpack.c.b16 %v1307, %v1179
      %v1820 = vpack.c.b16 %v1308, %v1180
      %v1821 = vpack.c.b16 %v1309, %v1181
      %v1822 = vpack.c.b16 %v1310, %v1182
      %v1823 = vpack.c.b16 %v1311, %v1183
      %v1824 = vpack.c.b16 %v1312, %v1184
      %v1825 = vpack.c.b16 %v1313, %v1185
      %v1826 = vpack.c.b16 %v1314, %v1186
      %v1827 = vpack.c.b16 %v1315, %v1187
      %v1828 = vpack.c.b16 %v1316, %v1188
      %v1829 = vpack.c.b16 %v1317, %v1189
      %v1830 = vpack.c.b16 %v1318, %v1190
      %v1831 = vpack.c.b16 %v1319, %v1191
      %v1832 = vpack.c.b16 %v1320, %v1192
      %v1833 = vpack.c.b16 %v1321, %v1193
      %v1834 = vpack.c.b16 %v1322, %v1194
      %v1835 = vpack.c.b16 %v1323, %v1195
      %v1836 = vpack.c.b16 %v1324, %v1196
      %v1837 = vpack.c.b16 %v1325, %v1197
      %v1838 = vpack.c.b16 %v1326, %v1198
      %v1839 = vpack.c.b16 %v1327, %v1199
      %v1840 = vpack.c.b16 %v1328, %v1200
      %v1841 = vpack.c.b16 %v1329, %v1201
      %v1842 = vpack.c.b16 %v1330, %v1202
      %v1843 = vpack.c.b16 %v1331, %v1203
      %v1844 = vpack.c.b16 %v1332, %v1204
      %v1845 = vpack.c.b16 %v1333, %v1205
      %v1846 = vpack.c.b16 %v1334, %v1206
      %v1847 = vpack.c.b16 %v1335, %v1207
      %v1848 = vpack.c.b16 %v1336, %v1208
      %v1849 = vpack.c.b16 %v1337, %v1209
      %v1850 = vpack.c.b16 %v1338, %v1210
      %v1851 = vpack.c.b16 %v1339, %v1211
      %v1852 = vpack.c.b16 %v1340, %v1212
      %v1853 = vpack.c.b16 %v1341, %v1213
      %v1854 = vpack.c.b16 %v1342, %v1214
      %v1855 = vpack.c.b16 %v1343, %v1215
      %v1856 = vpack.c.b16 %v1344, %v1216
      %v1857 = vpack.c.b16 %v1345, %v1217
      %v1858 = vpack.c.b16 %v1346, %v1218
      %v1859 = vpack.c.b16 %v1347, %v1219
      %v1860 = vpack.c.b16 %v1348, %v1220
      %v1861 = vpack.c.b16 %v1349, %v1221
      %v1862 = vpack.c.b16 %v1350, %v1222
      %v1863 = vpack.c.b16 %v1351, %v1223
      %v1864 = vpack.c.b16 %v1352, %v1224
      %v1865 = vpack.c.b16 %v1353, %v1225
      %v1866 = vpack.c.b16 %v1354, %v1226
      %v1867 = vpack.c.b16 %v1355, %v1227
      %v1868 = vpack.c.b16 %v1356, %v1228
      %v1869 = vpack.c.b16 %v1357, %v1229
      %v1870 = vpack.c.b16 %v1358, %v1230
      %v1871 = vpack.c.b16 %v1359, %v1231
      %v1872 = vpack.c.b16 %v1360, %v1232
      %v1873 = vpack.c.b16 %v1361, %v1233
      %v1874 = vpack.c.b16 %v1362, %v1234
      %v1875 = vpack.c.b16 %v1363, %v1235
      %v1876 = vpack.c.b16 %v1364, %v1236
      %v1877 = vpack.c.b16 %v1365, %v1237
      %v1878 = vpack.c.b16 %v1366, %v1238
      %v1879 = vpack.c.b16 %v1367, %v1239
      %v1880 = vpack.c.b16 %v1368, %v1240
      %v1881 = vpack.c.b16 %v1369, %v1241
      %v1882 = vpack.c.b16 %v1370, %v1242
      %v1883 = vpack.c.b16 %v1371, %v1243
      %v1884 = vpack.c.b16 %v1372, %v1244
      %v1885 = vpack.c.b16 %v1373, %v1245
      %v1886 = vpack.c.b16 %v1374, %v1246
      %v1887 = vpack.c.b16 %v1375, %v1247
      %v1888 = vpack.c.b16 %v1376, %v1248
      %v1889 = vpack.c.b16 %v1377, %v1249
      %v1890 = vpack.c.b16 %v1378, %v1250
      %v1891 = vpack.c.b16 %v1379, %v1251
      %v1892 = vpack.c.b16 %v1380, %v1252
      %v1893 = vpack.c.b16 %v1381, %v1253
      %v1894 = vpack.c.b16 %v1382, %v1254
      %v1895 = vpack.c.b16 %v1383, %v1255
      %v1896 = vpack.c.b16 %v1384, %v1256
      %v1897 = vpack.c.b16 %v1385, %v1257
      %v1898 = vpack.c.b16 %v1386, %v1258
      %v1899 = vpack.c.b16 %v1387, %v1259
      %v1900 = vpack.c.b16 %v1388, %v1260
      %v1901 = vpack.c.b16 %v1389, %v1261
      %v1902 = vpack.c.b16 %v1390, %v1262
      %v1903 = vpack.c.b16 %v1391, %v1263
      %v1904 = vpack.c.b16 %v1392, %v1264
      %v1905 = vpack.c.b16 %v1393, %v1265
      %v1906 = vpack.c.b16 %v1394, %v1266
      %v1907 = vpack.c.b16 %v1395, %v1267
      %v1908 = vpack.c.b16 %v1396, %v1268
      %v1909 = vpack.c.b16 %v1397, %v1269
      %v1910 = vpack.c.b16 %v1398, %v1270
      %v1911 = vpack.c.b16 %v1399, %v1271
      %v1912 = vpack.c.b16 %v1400, %v1272
      %v1913 = vpack.c.b16 %v1401, %v1273
      %v1914 = vpack.c.b16 %v1402, %v1274
      %v1915 = vpack.c.b16 %v1403, %v1275
      %v1916 = vpack.c.b16 %v1404, %v1276
      %v1917 = vpack.c.b16 %v1405, %v1277
      %v1918 = vpack.c.b16 %v1406, %v1278
      %v1919 = vpack.c.b16 %v1407, %v1279
      %v1920 = vpack.c.b16 %v1408, %v1280
      %v1921 = vpack.c.b16 %v1409, %v1281
      %v1922 = vpack.c.b16 %v1410, %v1282
      %v1923 = vpack.c.b16 %v1411, %v1283
      %v1924 = vpack.c.b16 %v1412, %v1284
      %v1925 = vpack.c.b16 %v1413, %v1285
      %v1926 = vpack.c.b16 %v1414, %v1286
      %v1927 = vpack.c.b16 %v1415, %v1287
      %v1928 = vpack.c.b16 %v1416, %v1288
      %v1929 = vpack.c.b16 %v1417, %v1289
      %v1930 = vpack.c.b16 %v1418, %v1290
      %v1931 = vpack.c.b16 %v1419, %v1291
      %v1932 = vpack.c.b16 %v1420, %v1292
      %v1933 = vpack.c.b16 %v1421, %v1293
      %v1934 = vpack.c.b16 %v1422, %v1294
      %v1935 = vpack.c.b16 %v1423, %v1295
      %v1936 = vpack.c.b16 %v1424, %v1296
      %v1937 = vpack.c.b16 %v1425, %v1297
      %v1938 = vpack.c.b16 %v1426, %v1298
      %v1939 = vpack.c.b16 %v1427, %v1299
      %v1940 = vpack.c.b16 %v1556, %v1428
      %v1941 = vpack.c.b16 %v1557, %v1429
      %v1942 = vpack.c.b16 %v1558, %v1430
      %v1943 = vpack.c.b16 %v1559, %v1431
      %v1944 = vpack.c.b16 %v1560, %v1432
      %v1945 = vpack.c.b16 %v1561, %v1433
      %v1946 = vpack.c.b16 %v1562, %v1434
      %v1947 = vpack.c.b16 %v1563, %v1435
      %v1948 = vpack.c.b16 %v1564, %v1436
      %v1949 = vpack.c.b16 %v1565, %v1437
      %v1950 = vpack.c.b16 %v1566, %v1438
      %v1951 = vpack.c.b16 %v1567, %v1439
      %v1952 = vpack.c.b16 %v1568, %v1440
      %v1953 = vpack.c.b16 %v1569, %v1441
      %v1954 = vpack.c.b16 %v1570, %v1442
      %v1955 = vpack.c.b16 %v1571, %v1443
      %v1956 = vpack.c.b16 %v1572, %v1444
      %v1957 = vpack.c.b16 %v1573, %v1445
      %v1958 = vpack.c.b16 %v1574, %v1446
      %v1959 = vpack.c.b16 %v1575, %v1447
      %v1960 = vpack.c.b16 %v1576, %v1448
      %v1961 = vpack.c.b16 %v1577, %v1449
      %v1962 = vpack.c.b16 %v1578, %v1450
      %v1963 = vpack.c.b16 %v1579, %v1451
      %v1964 = vpack.c.b16 %v1580, %v1452
      %v1965 = vpack.c.b16 %v1581, %v1453
      %v1966 = vpack.c.b16 %v1582, %v1454
      %v1967 = vpack.c.b16 %v1583, %v1455
      %v1968 = vpack.c.b16 %v1584, %v1456
      %v1969 = vpack.c.b16 %v1585, %v1457
      %v1970 = vpack.c.b16 %v1586, %v1458
      %v1971 = vpack.c.b16 %v1587, %v1459
      %v1972 = vpack.c.b16 %v1588, %v1460
      %v1973 = vpack.c.b16 %v1589, %v1461
      %v1974 = vpack.c.b16 %v1590, %v1462
      %v1975 = vpack.c.b16 %v1591, %v1463
      %v1976 = vpack.c.b16 %v1592, %v1464
      %v1977 = vpack.c.b16 %v1593, %v1465
      %v1978 = vpack.c.b16 %v1594, %v1466
      %v1979 = vpack.c.b16 %v1595, %v1467
      %v1980 = vpack.c.b16 %v1596, %v1468
      %v1981 = vpack.c.b16 %v1597, %v1469
      %v1982 = vpack.c.b16 %v1598, %v1470
      %v1983 = vpack.c.b16 %v1599, %v1471
      %v1984 = vpack.c.b16 %v1600, %v1472
      %v1985 = vpack.c.b16 %v1601, %v1473
      %v1986 = vpack.c.b16 %v1602, %v1474
      %v1987 = vpack.c.b16 %v1603, %v1475
      %v1988 = vpack.c.b16 %v1604, %v1476
      %v1989 = vpack.c.b16 %v1605, %v1477
      %v1990 = vpack.c.b16 %v1606, %v1478
      %v1991 = vpack.c.b16 %v1607, %v1479
      %v1992 = vpack.c.b16 %v1608, %v1480
      %v1993 = vpack.c.b16 %v1609, %v1481
      %v1994 = vpack.c.b16 %v1610, %v1482
      %v1995 = vpack.c.b16 %v1611, %v1483
      %v1996 = vpack.c.b16 %v1612, %v1484
      %v1997 = vpack.c.b16 %v1613, %v1485
      %v1998 = vpack.c.b16 %v1614, %v1486
      %v1999 = vpack.c.b16 %v1615, %v1487
      %v2000 = vpack.c.b16 %v1616, %v1488
      %v2001 = vpack.c.b16 %v1617, %v1489
      %v2002 = vpack.c.b16 %v1618, %v1490
      %v2003 = vpack.c.b16 %v1619, %v1491
      %v2004 = vpack.c.b16 %v1620, %v1492
      %v2005 = vpack.c.b16 %v1621, %v1493
      %v2006 = vpack.c.b16 %v1622, %v1494
      %v2007 = vpack.c.b16 %v1623, %v1495
      %v2008 = vpack.c.b16 %v1624, %v1496
      %v2009 = vpack.c.b16 %v1625, %v1497
      %v2010 = vpack.c.b16 %v1626, %v1498
      %v2011 = vpack.c.b16 %v1627, %v1499
      %v2012 = vpack.c.b16 %v1628, %v1500
      %v2013 = vpack.c.b16 %v1629, %v1501
      %v2014 = vpack.c.b16 %v1630, %v1502
      %v2015 = vpack.c.b16 %v1631, %v1503
      %v2016 = vpack.c.b16 %v1632, %v1504
      %v2017 = vpack.c.b16 %v1633, %v1505
      %v2018 = vpack.c.b16 %v1634, %v1506
      %v2019 = vpack.c.b16 %v1635, %v1507
      %v2020 = vpack.c.b16 %v1636, %v1508
      %v2021 = vpack.c.b16 %v1637, %v1509
      %v2022 = vpack.c.b16 %v1638, %v1510
      %v2023 = vpack.c.b16 %v1639, %v1511
      %v2024 = vpack.c.b16 %v1640, %v1512
      %v2025 = vpack.c.b16 %v1641, %v1513
      %v2026 = vpack.c.b16 %v1642, %v1514
      %v2027 = vpack.c.b16 %v1643, %v1515
      %v2028 = vpack.c.b16 %v1644, %v1516
      %v2029 = vpack.c.b16 %v1645, %v1517
      %v2030 = vpack.c.b16 %v1646, %v1518
      %v2031 = vpack.c.b16 %v1647, %v1519
      %v2032 = vpack.c.b16 %v1648, %v1520
      %v2033 = vpack.c.b16 %v1649, %v1521
      %v2034 = vpack.c.b16 %v1650, %v1522
      %v2035 = vpack.c.b16 %v1651, %v1523
      %v2036 = vpack.c.b16 %v1652, %v1524
      %v2037 = vpack.c.b16 %v1653, %v1525
      %v2038 = vpack.c.b16 %v1654, %v1526
      %v2039 = vpack.c.b16 %v1655, %v1527
      %v2040 = vpack.c.b16 %v1656, %v1528
      %v2041 = vpack.c.b16 %v1657, %v1529
      %v2042 = vpack.c.b16 %v1658, %v1530
      %v2043 = vpack.c.b16 %v1659, %v1531
      %v2044 = vpack.c.b16 %v1660, %v1532
      %v2045 = vpack.c.b16 %v1661, %v1533
      %v2046 = vpack.c.b16 %v1662, %v1534
      %v2047 = vpack.c.b16 %v1663, %v1535
      %v2048 = vpack.c.b16 %v1664, %v1536
      %v2049 = vpack.c.b16 %v1665, %v1537
      %v2050 = vpack.c.b16 %v1666, %v1538
      %v2051 = vpack.c.b16 %v1667, %v1539
      %v2052 = vpack.c.b16 %v1668, %v1540
      %v2053 = vpack.c.b16 %v1669, %v1541
      %v2054 = vpack.c.b16 %v1670, %v1542
      %v2055 = vpack.c.b16 %v1671, %v1543
      %v2056 = vpack.c.b16 %v1672, %v1544
      %v2057 = vpack.c.b16 %v1673, %v1545
      %v2058 = vpack.c.b16 %v1674, %v1546
      %v2059 = vpack.c.b16 %v1675, %v1547
      %v2060 = vpack.c.b16 %v1676, %v1548
      %v2061 = vpack.c.b16 %v1677, %v1549
      %v2062 = vpack.c.b16 %v1678, %v1550
      %v2063 = vpack.c.b16 %v1679, %v1551
      %v2064 = vpack.c.b16 %v1680, %v1552
      %v2065 = vpack.c.b16 %v1681, %v1553
      %v2066 = vpack.c.b16 %v1682, %v1554
      %v2067 = vpack.c.b16 %v1683, %v1555
      %vm2452 = vcmask 392192
      %v2454 = vsel %vm2452, %v147, 0
      %2456 = vmatprep.subr.bf16.mxu0 %v1685
      %2457 = vmatpush1.bf16.msra.mxu0 %v1684
      %2458 = vmatprep.subr.bf16.mxu0 %v1813
      %2459 = vmatpush1.bf16.msra.mxu0 %v1812
      %2460 = vmatprep.subr.bf16.mxu0 %v1941
      %2461 = vmatpush1.bf16.msra.mxu0 %v1940
      %2462 = vmatprep.subr.bf16.mxu0 0
      %2463 = vmatpush1.bf16.msra.mxu0 0
      %2464 = vmatprep.subr.bf16.mxu0 0
      %2465 = vmatpush1.bf16.msra.mxu0 0
      %2466 = vmatprep.subr.bf16.mxu0 0
      %2467 = vmatpush1.bf16.msra.mxu0 0
      %2468 = vmatprep.subr.bf16.mxu0 0
      %2469 = vmatpush1.bf16.msra.mxu0 0
      %2470 = vmatprep.subr.bf16.mxu0 0
      %2471 = vmatpush1.bf16.msra.mxu0 0
      %2472 = vmatprep.subr.bf16.mxu0 0
      %2473 = vmatpush1.bf16.msra.mxu0 0
      %2474 = vmatprep.subr.bf16.mxu0 0
      %2475 = vmatpush1.bf16.msra.mxu0 0
      %2476 = vmatprep.subr.bf16.mxu0 0
      %2477 = vmatpush1.bf16.msra.mxu0 0
      %2478 = vmatprep.subr.bf16.mxu0 0
      %2479 = vmatpush1.bf16.msra.mxu0 0
      %2480 = vmatprep.subr.bf16.mxu0 0
      %2481 = vmatpush1.bf16.msra.mxu0 0
      %2482 = vmatprep.subr.bf16.mxu0 0
      %2483 = vmatpush1.bf16.msra.mxu0 0
      %2484 = vmatprep.subr.bf16.mxu0 0
      %2485 = vmatpush1.bf16.msra.mxu0 0
      %2486 = vmatprep.subr.bf16.mxu0 0
      %2487 = vmatpush1.bf16.msra.mxu0 0
      %2488 = vmatprep.mubr.bf16.mxu0 0
      %2489 = vmatmul.mubr.bf16.gmra.mrb[0].mxu0 %v2454
      %v2490 = vpop.f32.mrb[0].mxu0
      %v2491 = vadd.f32 0.0, %v2490
      %v2492 = vpop.f32.mrb[0].mxu0
      %v2493 = vadd.f32 0.0, %v2492
      %v2494 = vpop.f32.mrb[0].mxu0
      %v2495 = vpop.f32.mrb[0].mxu0
      %2496 = vdwg.mxu0
      %2497 = vmatprep.subr.bf16.mxu0 %v1687
      %2498 = vmatpush1.bf16.msra.mxu0 %v1686
      %2499 = vmatprep.subr.bf16.mxu0 %v1815
      %2500 = vmatpush1.bf16.msra.mxu0 %v1814
      %2501 = vmatprep.subr.bf16.mxu0 %v1943
      %2502 = vmatpush1.bf16.msra.mxu0 %v1942
      %2503 = vmatprep.subr.bf16.mxu0 0
      %2504 = vmatpush1.bf16.msra.mxu0 0
      %2505 = vmatprep.subr.bf16.mxu0 0
      %2506 = vmatpush1.bf16.msra.mxu0 0
      %2507 = vmatprep.subr.bf16.mxu0 0
      %2508 = vmatpush1.bf16.msra.mxu0 0
      %2509 = vmatprep.subr.bf16.mxu0 0
      %2510 = vmatpush1.bf16.msra.mxu0 0
      %2511 = vmatprep.subr.bf16.mxu0 0
      %2512 = vmatpush1.bf16.msra.mxu0 0
      %2513 = vmatprep.subr.bf16.mxu0 0
      %2514 = vmatpush1.bf16.msra.mxu0 0
      %2515 = vmatprep.subr.bf16.mxu0 0
      %2516 = vmatpush1.bf16.msra.mxu0 0
      %2517 = vmatprep.subr.bf16.mxu0 0
      %2518 = vmatpush1.bf16.msra.mxu0 0
      %2519 = vmatprep.subr.bf16.mxu0 0
      %2520 = vmatpush1.bf16.msra.mxu0 0
      %2521 = vmatprep.subr.bf16.mxu0 0
      %2522 = vmatpush1.bf16.msra.mxu0 0
      %2523 = vmatprep.subr.bf16.mxu0 0
      %2524 = vmatpush1.bf16.msra.mxu0 0
      %2525 = vmatprep.subr.bf16.mxu0 0
      %2526 = vmatpush1.bf16.msra.mxu0 0
      %2527 = vmatprep.subr.bf16.mxu0 0
      %2528 = vmatpush1.bf16.msra.mxu0 0
      %2529 = vmatprep.mubr.bf16.mxu0 0
      %2530 = vmatmul.mubr.bf16.gmra.mrb[0].mxu0 %v2454
      %v2531 = vpop.f32.mrb[0].mxu0
      %v2532 = vadd.f32 0.0, %v2531
      %v2533 = vpop.f32.mrb[0].mxu0
      %v2534 = vadd.f32 0.0, %v2533
      %v2535 = vpop.f32.mrb[0].mxu0
      %v2536 = vpop.f32.mrb[0].mxu0
      %2537 = vdwg.mxu0
      %2538 = vmatprep.subr.bf16.mxu0 %v1689
      %2539 = vmatpush1.bf16.msra.mxu0 %v1688
      %2540 = vmatprep.subr.bf16.mxu0 %v1817
      %2541 = vmatpush1.bf16.msra.mxu0 %v1816
      %2542 = vmatprep.subr.bf16.mxu0 %v1945
      %2543 = vmatpush1.bf16.msra.mxu0 %v1944
      %2544 = vmatprep.subr.bf16.mxu0 0
      %2545 = vmatpush1.bf16.msra.mxu0 0
      %2546 = vmatprep.subr.bf16.mxu0 0
      %2547 = vmatpush1.bf16.msra.mxu0 0
      %2548 = vmatprep.subr.bf16.mxu0 0
      %2549 = vmatpush1.bf16.msra.mxu0 0
      %2550 = vmatprep.subr.bf16.mxu0 0
      %2551 = vmatpush1.bf16.msra.mxu0 0
      %2552 = vmatprep.subr.bf16.mxu0 0
      %2553 = vmatpush1.bf16.msra.mxu0 0
      %2554 = vmatprep.subr.bf16.mxu0 0
      %2555 = vmatpush1.bf16.msra.mxu0 0
      %2556 = vmatprep.subr.bf16.mxu0 0
      %2557 = vmatpush1.bf16.msra.mxu0 0
      %2558 = vmatprep.subr.bf16.mxu0 0
      %2559 = vmatpush1.bf16.msra.mxu0 0
      %2560 = vmatprep.subr.bf16.mxu0 0
      %2561 = vmatpush1.bf16.msra.mxu0 0
      %2562 = vmatprep.subr.bf16.mxu0 0
      %2563 = vmatpush1.bf16.msra.mxu0 0
      %2564 = vmatprep.subr.bf16.mxu0 0
      %2565 = vmatpush1.bf16.msra.mxu0 0
      %2566 = vmatprep.subr.bf16.mxu0 0
      %2567 = vmatpush1.bf16.msra.mxu0 0
      %2568 = vmatprep.subr.bf16.mxu0 0
      %2569 = vmatpush1.bf16.msra.mxu0 0
      %2570 = vmatprep.mubr.bf16.mxu0 0
      %2571 = vmatmul.mubr.bf16.gmra.mrb[0].mxu0 %v2454
      %v2572 = vpop.f32.mrb[0].mxu0
      %v2573 = vadd.f32 0.0, %v2572
      %v2574 = vpop.f32.mrb[0].mxu0
      %v2575 = vadd.f32 0.0, %v2574
      %v2576 = vpop.f32.mrb[0].mxu0
      %v2577 = vpop.f32.mrb[0].mxu0
      %2578 = vdwg.mxu0
      %2579 = vmatprep.subr.bf16.mxu0 %v1691
      %2580 = vmatpush1.bf16.msra.mxu0 %v1690
      %2581 = vmatprep.subr.bf16.mxu0 %v1819
      %2582 = vmatpush1.bf16.msra.mxu0 %v1818
      %2583 = vmatprep.subr.bf16.mxu0 %v1947
      %2584 = vmatpush1.bf16.msra.mxu0 %v1946
      %2585 = vmatprep.subr.bf16.mxu0 0
      %2586 = vmatpush1.bf16.msra.mxu0 0
      %2587 = vmatprep.subr.bf16.mxu0 0
      %2588 = vmatpush1.bf16.msra.mxu0 0
      %2589 = vmatprep.subr.bf16.mxu0 0
      %2590 = vmatpush1.bf16.msra.mxu0 0
      %2591 = vmatprep.subr.bf16.mxu0 0
      %2592 = vmatpush1.bf16.msra.mxu0 0
      %2593 = vmatprep.subr.bf16.mxu0 0
      %2594 = vmatpush1.bf16.msra.mxu0 0
      %2595 = vmatprep.subr.bf16.mxu0 0
      %2596 = vmatpush1.bf16.msra.mxu0 0
      %2597 = vmatprep.subr.bf16.mxu0 0
      %2598 = vmatpush1.bf16.msra.mxu0 0
      %2599 = vmatprep.subr.bf16.mxu0 0
      %2600 = vmatpush1.bf16.msra.mxu0 0
      %2601 = vmatprep.subr.bf16.mxu0 0
      %2602 = vmatpush1.bf16.msra.mxu0 0
      %2603 = vmatprep.subr.bf16.mxu0 0
      %2604 = vmatpush1.bf16.msra.mxu0 0
      %2605 = vmatprep.subr.bf16.mxu0 0
      %2606 = vmatpush1.bf16.msra.mxu0 0
      %2607 = vmatprep.subr.bf16.mxu0 0
      %2608 = vmatpush1.bf16.msra.mxu0 0
      %2609 = vmatprep.subr.bf16.mxu0 0
      %2610 = vmatpush1.bf16.msra.mxu0 0
      %2611 = vmatprep.mubr.bf16.mxu0 0
      %2612 = vmatmul.mubr.bf16.gmra.mrb[0].mxu0 %v2454
      %v2613 = vpop.f32.mrb[0].mxu0
      %v2614 = vadd.f32 0.0, %v2613
      %v2615 = vpop.f32.mrb[0].mxu0
      %v2616 = vadd.f32 0.0, %v2615
      %v2617 = vpop.f32.mrb[0].mxu0
      %v2618 = vpop.f32.mrb[0].mxu0
      %2619 = vdwg.mxu0
      %2620 = vmatprep.subr.bf16.mxu0 %v1693
      %2621 = vmatpush1.bf16.msra.mxu0 %v1692
      %2622 = vmatprep.subr.bf16.mxu0 %v1821
      %2623 = vmatpush1.bf16.msra.mxu0 %v1820
      %2624 = vmatprep.subr.bf16.mxu0 %v1949
      %2625 = vmatpush1.bf16.msra.mxu0 %v1948
      %2626 = vmatprep.subr.bf16.mxu0 0
      %2627 = vmatpush1.bf16.msra.mxu0 0
      %2628 = vmatprep.subr.bf16.mxu0 0
      %2629 = vmatpush1.bf16.msra.mxu0 0
      %2630 = vmatprep.subr.bf16.mxu0 0
      %2631 = vmatpush1.bf16.msra.mxu0 0
      %2632 = vmatprep.subr.bf16.mxu0 0
      %2633 = vmatpush1.bf16.msra.mxu0 0
      %2634 = vmatprep.subr.bf16.mxu0 0
      %2635 = vmatpush1.bf16.msra.mxu0 0
      %2636 = vmatprep.subr.bf16.mxu0 0
      %2637 = vmatpush1.bf16.msra.mxu0 0
      %2638 = vmatprep.subr.bf16.mxu0 0
      %2639 = vmatpush1.bf16.msra.mxu0 0
      %2640 = vmatprep.subr.bf16.mxu0 0
      %2641 = vmatpush1.bf16.msra.mxu0 0
      %2642 = vmatprep.subr.bf16.mxu0 0
      %2643 = vmatpush1.bf16.msra.mxu0 0
      %2644 = vmatprep.subr.bf16.mxu0 0
      %2645 = vmatpush1.bf16.msra.mxu0 0
      %2646 = vmatprep.subr.bf16.mxu0 0
      %2647 = vmatpush1.bf16.msra.mxu0 0
      %2648 = vmatprep.subr.bf16.mxu0 0
      %2649 = vmatpush1.bf16.msra.mxu0 0
      %2650 = vmatprep.subr.bf16.mxu0 0
      %2651 = vmatpush1.bf16.msra.mxu0 0
      %2652 = vmatprep.mubr.bf16.mxu0 0
      %2653 = vmatmul.mubr.bf16.gmra.mrb[0].mxu0 %v2454
      %v2654 = vpop.f32.mrb[0].mxu0
      %v2655 = vadd.f32 0.0, %v2654
      %v2656 = vpop.f32.mrb[0].mxu0
      %v2657 = vadd.f32 0.0, %v2656
      %v2658 = vpop.f32.mrb[0].mxu0
      %v2659 = vpop.f32.mrb[0].mxu0
      %2660 = vdwg.mxu0
      %2661 = vmatprep.subr.bf16.mxu0 %v1695
      %2662 = vmatpush1.bf16.msra.mxu0 %v1694
      %2663 = vmatprep.subr.bf16.mxu0 %v1823
      %2664 = vmatpush1.bf16.msra.mxu0 %v1822
      %2665 = vmatprep.subr.bf16.mxu0 %v1951
      %2666 = vmatpush1.bf16.msra.mxu0 %v1950
      %2667 = vmatprep.subr.bf16.mxu0 0
      %2668 = vmatpush1.bf16.msra.mxu0 0
      %2669 = vmatprep.subr.bf16.mxu0 0
      %2670 = vmatpush1.bf16.msra.mxu0 0
      %2671 = vmatprep.subr.bf16.mxu0 0
      %2672 = vmatpush1.bf16.msra.mxu0 0
      %2673 = vmatprep.subr.bf16.mxu0 0
      %2674 = vmatpush1.bf16.msra.mxu0 0
      %2675 = vmatprep.subr.bf16.mxu0 0
      %2676 = vmatpush1.bf16.msra.mxu0 0
      %2677 = vmatprep.subr.bf16.mxu0 0
      %2678 = vmatpush1.bf16.msra.mxu0 0
      %2679 = vmatprep.subr.bf16.mxu0 0
      %2680 = vmatpush1.bf16.msra.mxu0 0
      %2681 = vmatprep.subr.bf16.mxu0 0
      %2682 = vmatpush1.bf16.msra.mxu0 0
      %2683 = vmatprep.subr.bf16.mxu0 0
      %2684 = vmatpush1.bf16.msra.mxu0 0
      %2685 = vmatprep.subr.bf16.mxu0 0
      %2686 = vmatpush1.bf16.msra.mxu0 0
      %2687 = vmatprep.subr.bf16.mxu0 0
      %2688 = vmatpush1.bf16.msra.mxu0 0
      %2689 = vmatprep.subr.bf16.mxu0 0
      %2690 = vmatpush1.bf16.msra.mxu0 0
      %2691 = vmatprep.subr.bf16.mxu0 0
      %2692 = vmatpush1.bf16.msra.mxu0 0
      %2693 = vmatprep.mubr.bf16.mxu0 0
      %2694 = vmatmul.mubr.bf16.gmra.mrb[0].mxu0 %v2454
      %v2695 = vpop.f32.mrb[0].mxu0
      %v2696 = vadd.f32 0.0, %v2695
      %v2697 = vpop.f32.mrb[0].mxu0
      %v2698 = vadd.f32 0.0, %v2697
      %v2699 = vpop.f32.mrb[0].mxu0
      %v2700 = vpop.f32.mrb[0].mxu0
      %2701 = vdwg.mxu0
      %2702 = vmatprep.subr.bf16.mxu0 %v1697
      %2703 = vmatpush1.bf16.msra.mxu0 %v1696
      %2704 = vmatprep.subr.bf16.mxu0 %v1825
      %2705 = vmatpush1.bf16.msra.mxu0 %v1824
      %2706 = vmatprep.subr.bf16.mxu0 %v1953
      %2707 = vmatpush1.bf16.msra.mxu0 %v1952
      %2708 = vmatprep.subr.bf16.mxu0 0
      %2709 = vmatpush1.bf16.msra.mxu0 0
      %2710 = vmatprep.subr.bf16.mxu0 0
      %2711 = vmatpush1.bf16.msra.mxu0 0
      %2712 = vmatprep.subr.bf16.mxu0 0
      %2713 = vmatpush1.bf16.msra.mxu0 0
      %2714 = vmatprep.subr.bf16.mxu0 0
      %2715 = vmatpush1.bf16.msra.mxu0 0
      %2716 = vmatprep.subr.bf16.mxu0 0
      %2717 = vmatpush1.bf16.msra.mxu0 0
      %2718 = vmatprep.subr.bf16.mxu0 0
      %2719 = vmatpush1.bf16.msra.mxu0 0
      %2720 = vmatprep.subr.bf16.mxu0 0
      %2721 = vmatpush1.bf16.msra.mxu0 0
      %2722 = vmatprep.subr.bf16.mxu0 0
      %2723 = vmatpush1.bf16.msra.mxu0 0
      %2724 = vmatprep.subr.bf16.mxu0 0
      %2725 = vmatpush1.bf16.msra.mxu0 0
      %2726 = vmatprep.subr.bf16.mxu0 0
      %2727 = vmatpush1.bf16.msra.mxu0 0
      %2728 = vmatprep.subr.bf16.mxu0 0
      %2729 = vmatpush1.bf16.msra.mxu0 0
      %2730 = vmatprep.subr.bf16.mxu0 0
      %2731 = vmatpush1.bf16.msra.mxu0 0
      %2732 = vmatprep.subr.bf16.mxu0 0
      %2733 = vmatpush1.bf16.msra.mxu0 0
      %2734 = vmatprep.mubr.bf16.mxu0 0
      %2735 = vmatmul.mubr.bf16.gmra.mrb[0].mxu0 %v2454
      %v2736 = vpop.f32.mrb[0].mxu0
      %v2737 = vadd.f32 0.0, %v2736
      %v2738 = vpop.f32.mrb[0].mxu0
      %v2739 = vadd.f32 0.0, %v2738
      %v2740 = vpop.f32.mrb[0].mxu0
      %v2741 = vpop.f32.mrb[0].mxu0
      %2742 = vdwg.mxu0
      %2743 = vmatprep.subr.bf16.mxu0 %v1699
      %2744 = vmatpush1.bf16.msra.mxu0 %v1698
      %2745 = vmatprep.subr.bf16.mxu0 %v1827
      %2746 = vmatpush1.bf16.msra.mxu0 %v1826
      %2747 = vmatprep.subr.bf16.mxu0 %v1955
      %2748 = vmatpush1.bf16.msra.mxu0 %v1954
      %2749 = vmatprep.subr.bf16.mxu0 0
      %2750 = vmatpush1.bf16.msra.mxu0 0
      %2751 = vmatprep.subr.bf16.mxu0 0
      %2752 = vmatpush1.bf16.msra.mxu0 0
      %2753 = vmatprep.subr.bf16.mxu0 0
      %2754 = vmatpush1.bf16.msra.mxu0 0
      %2755 = vmatprep.subr.bf16.mxu0 0
      %2756 = vmatpush1.bf16.msra.mxu0 0
      %2757 = vmatprep.subr.bf16.mxu0 0
      %2758 = vmatpush1.bf16.msra.mxu0 0
      %2759 = vmatprep.subr.bf16.mxu0 0
      %2760 = vmatpush1.bf16.msra.mxu0 0
      %2761 = vmatprep.subr.bf16.mxu0 0
      %2762 = vmatpush1.bf16.msra.mxu0 0
      %2763 = vmatprep.subr.bf16.mxu0 0
      %2764 = vmatpush1.bf16.msra.mxu0 0
      %2765 = vmatprep.subr.bf16.mxu0 0
      %2766 = vmatpush1.bf16.msra.mxu0 0
      %2767 = vmatprep.subr.bf16.mxu0 0
      %2768 = vmatpush1.bf16.msra.mxu0 0
      %2769 = vmatprep.subr.bf16.mxu0 0
      %2770 = vmatpush1.bf16.msra.mxu0 0
      %2771 = vmatprep.subr.bf16.mxu0 0
      %2772 = vmatpush1.bf16.msra.mxu0 0
      %2773 = vmatprep.subr.bf16.mxu0 0
      %2774 = vmatpush1.bf16.msra.mxu0 0
      %2775 = vmatprep.mubr.bf16.mxu0 0
      %2776 = vmatmul.mubr.bf16.gmra.mrb[0].mxu0 %v2454
      %v2777 = vpop.f32.mrb[0].mxu0
      %v2778 = vadd.f32 0.0, %v2777
      %v2779 = vpop.f32.mrb[0].mxu0
      %v2780 = vadd.f32 0.0, %v2779
      %v2781 = vpop.f32.mrb[0].mxu0
      %v2782 = vpop.f32.mrb[0].mxu0
      %2783 = vdwg.mxu0
      %2784 = vmatprep.subr.bf16.mxu0 %v1701
      %2785 = vmatpush1.bf16.msra.mxu0 %v1700
      %2786 = vmatprep.subr.bf16.mxu0 %v1829
      %2787 = vmatpush1.bf16.msra.mxu0 %v1828
      %2788 = vmatprep.subr.bf16.mxu0 %v1957
      %2789 = vmatpush1.bf16.msra.mxu0 %v1956
      %2790 = vmatprep.subr.bf16.mxu0 0
      %2791 = vmatpush1.bf16.msra.mxu0 0
      %2792 = vmatprep.subr.bf16.mxu0 0
      %2793 = vmatpush1.bf16.msra.mxu0 0
      %2794 = vmatprep.subr.bf16.mxu0 0
      %2795 = vmatpush1.bf16.msra.mxu0 0
      %2796 = vmatprep.subr.bf16.mxu0 0
      %2797 = vmatpush1.bf16.msra.mxu0 0
      %2798 = vmatprep.subr.bf16.mxu0 0
      %2799 = vmatpush1.bf16.msra.mxu0 0
      %2800 = vmatprep.subr.bf16.mxu0 0
      %2801 = vmatpush1.bf16.msra.mxu0 0
      %2802 = vmatprep.subr.bf16.mxu0 0
      %2803 = vmatpush1.bf16.msra.mxu0 0
      %2804 = vmatprep.subr.bf16.mxu0 0
      %2805 = vmatpush1.bf16.msra.mxu0 0
      %2806 = vmatprep.subr.bf16.mxu0 0
      %2807 = vmatpush1.bf16.msra.mxu0 0
      %2808 = vmatprep.subr.bf16.mxu0 0
      %2809 = vmatpush1.bf16.msra.mxu0 0
      %2810 = vmatprep.subr.bf16.mxu0 0
      %2811 = vmatpush1.bf16.msra.mxu0 0
      %2812 = vmatprep.subr.bf16.mxu0 0
      %2813 = vmatpush1.bf16.msra.mxu0 0
      %2814 = vmatprep.subr.bf16.mxu0 0
      %2815 = vmatpush1.bf16.msra.mxu0 0
      %2816 = vmatprep.mubr.bf16.mxu0 0
      %2817 = vmatmul.mubr.bf16.gmra.mrb[0].mxu0 %v2454
      %v2818 = vpop.f32.mrb[0].mxu0
      %v2819 = vadd.f32 0.0, %v2818
      %v2820 = vpop.f32.mrb[0].mxu0
      %v2821 = vadd.f32 0.0, %v2820
      %v2822 = vpop.f32.mrb[0].mxu0
      %v2823 = vpop.f32.mrb[0].mxu0
      %2824 = vdwg.mxu0
      %2825 = vmatprep.subr.bf16.mxu0 %v1703
      %2826 = vmatpush1.bf16.msra.mxu0 %v1702
      %2827 = vmatprep.subr.bf16.mxu0 %v1831
      %2828 = vmatpush1.bf16.msra.mxu0 %v1830
      %2829 = vmatprep.subr.bf16.mxu0 %v1959
      %2830 = vmatpush1.bf16.msra.mxu0 %v1958
      %2831 = vmatprep.subr.bf16.mxu0 0
      %2832 = vmatpush1.bf16.msra.mxu0 0
      %2833 = vmatprep.subr.bf16.mxu0 0
      %2834 = vmatpush1.bf16.msra.mxu0 0
      %2835 = vmatprep.subr.bf16.mxu0 0
      %2836 = vmatpush1.bf16.msra.mxu0 0
      %2837 = vmatprep.subr.bf16.mxu0 0
      %2838 = vmatpush1.bf16.msra.mxu0 0
      %2839 = vmatprep.subr.bf16.mxu0 0
      %2840 = vmatpush1.bf16.msra.mxu0 0
      %2841 = vmatprep.subr.bf16.mxu0 0
      %2842 = vmatpush1.bf16.msra.mxu0 0
      %2843 = vmatprep.subr.bf16.mxu0 0
      %2844 = vmatpush1.bf16.msra.mxu0 0
      %2845 = vmatprep.subr.bf16.mxu0 0
      %2846 = vmatpush1.bf16.msra.mxu0 0
      %2847 = vmatprep.subr.bf16.mxu0 0
      %2848 = vmatpush1.bf16.msra.mxu0 0
      %2849 = vmatprep.subr.bf16.mxu0 0
      %2850 = vmatpush1.bf16.msra.mxu0 0
      %2851 = vmatprep.subr.bf16.mxu0 0
      %2852 = vmatpush1.bf16.msra.mxu0 0
      %2853 = vmatprep.subr.bf16.mxu0 0
      %2854 = vmatpush1.bf16.msra.mxu0 0
      %2855 = vmatprep.subr.bf16.mxu0 0
      %2856 = vmatpush1.bf16.msra.mxu0 0
      %2857 = vmatprep.mubr.bf16.mxu0 0
      %2858 = vmatmul.mubr.bf16.gmra.mrb[0].mxu0 %v2454
      %v2859 = vpop.f32.mrb[0].mxu0
      %v2860 = vadd.f32 0.0, %v2859
      %v2861 = vpop.f32.mrb[0].mxu0
      %v2862 = vadd.f32 0.0, %v2861
      %v2863 = vpop.f32.mrb[0].mxu0
      %v2864 = vpop.f32.mrb[0].mxu0
      %2865 = vdwg.mxu0
      %2866 = vmatprep.subr.bf16.mxu0 %v1705
      %2867 = vmatpush1.bf16.msra.mxu0 %v1704
      %2868 = vmatprep.subr.bf16.mxu0 %v1833
      %2869 = vmatpush1.bf16.msra.mxu0 %v1832
      %2870 = vmatprep.subr.bf16.mxu0 %v1961
      %2871 = vmatpush1.bf16.msra.mxu0 %v1960
      %2872 = vmatprep.subr.bf16.mxu0 0
      %2873 = vmatpush1.bf16.msra.mxu0 0
      %2874 = vmatprep.subr.bf16.mxu0 0
      %2875 = vmatpush1.bf16.msra.mxu0 0
      %2876 = vmatprep.subr.bf16.mxu0 0
      %2877 = vmatpush1.bf16.msra.mxu0 0
      %2878 = vmatprep.subr.bf16.mxu0 0
      %2879 = vmatpush1.bf16.msra.mxu0 0
      %2880 = vmatprep.subr.bf16.mxu0 0
      %2881 = vmatpush1.bf16.msra.mxu0 0
      %2882 = vmatprep.subr.bf16.mxu0 0
      %2883 = vmatpush1.bf16.msra.mxu0 0
      %2884 = vmatprep.subr.bf16.mxu0 0
      %2885 = vmatpush1.bf16.msra.mxu0 0
      %2886 = vmatprep.subr.bf16.mxu0 0
      %2887 = vmatpush1.bf16.msra.mxu0 0
      %2888 = vmatprep.subr.bf16.mxu0 0
      %2889 = vmatpush1.bf16.msra.mxu0 0
      %2890 = vmatprep.subr.bf16.mxu0 0
      %2891 = vmatpush1.bf16.msra.mxu0 0
      %2892 = vmatprep.subr.bf16.mxu0 0
      %2893 = vmatpush1.bf16.msra.mxu0 0
      %2894 = vmatprep.subr.bf16.mxu0 0
      %2895 = vmatpush1.bf16.msra.mxu0 0
      %2896 = vmatprep.subr.bf16.mxu0 0
      %2897 = vmatpush1.bf16.msra.mxu0 0
      %2898 = vmatprep.mubr.bf16.mxu0 0
      %2899 = vmatmul.mubr.bf16.gmra.mrb[0].mxu0 %v2454
      %v2900 = vpop.f32.mrb[0].mxu0
      %v2901 = vadd.f32 0.0, %v2900
      %v2902 = vpop.f32.mrb[0].mxu0
      %v2903 = vadd.f32 0.0, %v2902
      %v2904 = vpop.f32.mrb[0].mxu0
      %v2905 = vpop.f32.mrb[0].mxu0
      %2906 = vdwg.mxu0
      %2907 = vmatprep.subr.bf16.mxu0 %v1707
      %2908 = vmatpush1.bf16.msra.mxu0 %v1706
      %2909 = vmatprep.subr.bf16.mxu0 %v1835
      %2910 = vmatpush1.bf16.msra.mxu0 %v1834
      %2911 = vmatprep.subr.bf16.mxu0 %v1963
      %2912 = vmatpush1.bf16.msra.mxu0 %v1962
      %2913 = vmatprep.subr.bf16.mxu0 0
      %2914 = vmatpush1.bf16.msra.mxu0 0
      %2915 = vmatprep.subr.bf16.mxu0 0
      %2916 = vmatpush1.bf16.msra.mxu0 0
      %2917 = vmatprep.subr.bf16.mxu0 0
      %2918 = vmatpush1.bf16.msra.mxu0 0
      %2919 = vmatprep.subr.bf16.mxu0 0
      %2920 = vmatpush1.bf16.msra.mxu0 0
      %2921 = vmatprep.subr.bf16.mxu0 0
      %2922 = vmatpush1.bf16.msra.mxu0 0
      %2923 = vmatprep.subr.bf16.mxu0 0
      %2924 = vmatpush1.bf16.msra.mxu0 0
      %2925 = vmatprep.subr.bf16.mxu0 0
      %2926 = vmatpush1.bf16.msra.mxu0 0
      %2927 = vmatprep.subr.bf16.mxu0 0
      %2928 = vmatpush1.bf16.msra.mxu0 0
      %2929 = vmatprep.subr.bf16.mxu0 0
      %2930 = vmatpush1.bf16.msra.mxu0 0
      %2931 = vmatprep.subr.bf16.mxu0 0
      %2932 = vmatpush1.bf16.msra.mxu0 0
      %2933 = vmatprep.subr.bf16.mxu0 0
      %2934 = vmatpush1.bf16.msra.mxu0 0
      %2935 = vmatprep.subr.bf16.mxu0 0
      %2936 = vmatpush1.bf16.msra.mxu0 0
      %2937 = vmatprep.subr.bf16.mxu0 0
      %2938 = vmatpush1.bf16.msra.mxu0 0
      %2939 = vmatprep.mubr.bf16.mxu0 0
      %2940 = vmatmul.mubr.bf16.gmra.mrb[0].mxu0 %v2454
      %v2941 = vpop.f32.mrb[0].mxu0
      %v2942 = vadd.f32 0.0, %v2941
      %v2943 = vpop.f32.mrb[0].mxu0
      %v2944 = vadd.f32 0.0, %v2943
      %v2945 = vpop.f32.mrb[0].mxu0
      %v2946 = vpop.f32.mrb[0].mxu0
      %2947 = vdwg.mxu0
      %2948 = vmatprep.subr.bf16.mxu0 %v1709
      %2949 = vmatpush1.bf16.msra.mxu0 %v1708
      %2950 = vmatprep.subr.bf16.mxu0 %v1837
      %2951 = vmatpush1.bf16.msra.mxu0 %v1836
      %2952 = vmatprep.subr.bf16.mxu0 %v1965
      %2953 = vmatpush1.bf16.msra.mxu0 %v1964
      %2954 = vmatprep.subr.bf16.mxu0 0
      %2955 = vmatpush1.bf16.msra.mxu0 0
      %2956 = vmatprep.subr.bf16.mxu0 0
      %2957 = vmatpush1.bf16.msra.mxu0 0
      %2958 = vmatprep.subr.bf16.mxu0 0
      %2959 = vmatpush1.bf16.msra.mxu0 0
      %2960 = vmatprep.subr.bf16.mxu0 0
      %2961 = vmatpush1.bf16.msra.mxu0 0
      %2962 = vmatprep.subr.bf16.mxu0 0
      %2963 = vmatpush1.bf16.msra.mxu0 0
      %2964 = vmatprep.subr.bf16.mxu0 0
      %2965 = vmatpush1.bf16.msra.mxu0 0
      %2966 = vmatprep.subr.bf16.mxu0 0
      %2967 = vmatpush1.bf16.msra.mxu0 0
      %2968 = vmatprep.subr.bf16.mxu0 0
      %2969 = vmatpush1.bf16.msra.mxu0 0
      %2970 = vmatprep.subr.bf16.mxu0 0
      %2971 = vmatpush1.bf16.msra.mxu0 0
      %2972 = vmatprep.subr.bf16.mxu0 0
      %2973 = vmatpush1.bf16.msra.mxu0 0
      %2974 = vmatprep.subr.bf16.mxu0 0
      %2975 = vmatpush1.bf16.msra.mxu0 0
      %2976 = vmatprep.subr.bf16.mxu0 0
      %2977 = vmatpush1.bf16.msra.mxu0 0
      %2978 = vmatprep.subr.bf16.mxu0 0
      %2979 = vmatpush1.bf16.msra.mxu0 0
      %2980 = vmatprep.mubr.bf16.mxu0 0
      %2981 = vmatmul.mubr.bf16.gmra.mrb[0].mxu0 %v2454
      %v2982 = vpop.f32.mrb[0].mxu0
      %v2983 = vadd.f32 0.0, %v2982
      %v2984 = vpop.f32.mrb[0].mxu0
      %v2985 = vadd.f32 0.0, %v2984
      %v2986 = vpop.f32.mrb[0].mxu0
      %v2987 = vpop.f32.mrb[0].mxu0
      %2988 = vdwg.mxu0
      %2989 = vmatprep.subr.bf16.mxu0 %v1711
      %2990 = vmatpush1.bf16.msra.mxu0 %v1710
      %2991 = vmatprep.subr.bf16.mxu0 %v1839
      %2992 = vmatpush1.bf16.msra.mxu0 %v1838
      %2993 = vmatprep.subr.bf16.mxu0 %v1967
      %2994 = vmatpush1.bf16.msra.mxu0 %v1966
      %2995 = vmatprep.subr.bf16.mxu0 0
      %2996 = vmatpush1.bf16.msra.mxu0 0
      %2997 = vmatprep.subr.bf16.mxu0 0
      %2998 = vmatpush1.bf16.msra.mxu0 0
      %2999 = vmatprep.subr.bf16.mxu0 0
      %3000 = vmatpush1.bf16.msra.mxu0 0
      %3001 = vmatprep.subr.bf16.mxu0 0
      %3002 = vmatpush1.bf16.msra.mxu0 0
      %3003 = vmatprep.subr.bf16.mxu0 0
      %3004 = vmatpush1.bf16.msra.mxu0 0
      %3005 = vmatprep.subr.bf16.mxu0 0
      %3006 = vmatpush1.bf16.msra.mxu0 0
      %3007 = vmatprep.subr.bf16.mxu0 0
      %3008 = vmatpush1.bf16.msra.mxu0 0
      %3009 = vmatprep.subr.bf16.mxu0 0
      %3010 = vmatpush1.bf16.msra.mxu0 0
      %3011 = vmatprep.subr.bf16.mxu0 0
      %3012 = vmatpush1.bf16.msra.mxu0 0
      %3013 = vmatprep.subr.bf16.mxu0 0
      %3014 = vmatpush1.bf16.msra.mxu0 0
      %3015 = vmatprep.subr.bf16.mxu0 0
      %3016 = vmatpush1.bf16.msra.mxu0 0
      %3017 = vmatprep.subr.bf16.mxu0 0
      %3018 = vmatpush1.bf16.msra.mxu0 0
      %3019 = vmatprep.subr.bf16.mxu0 0
      %3020 = vmatpush1.bf16.msra.mxu0 0
      %3021 = vmatprep.mubr.bf16.mxu0 0
      %3022 = vmatmul.mubr.bf16.gmra.mrb[0].mxu0 %v2454
      %v3023 = vpop.f32.mrb[0].mxu0
      %v3024 = vadd.f32 0.0, %v3023
      %v3025 = vpop.f32.mrb[0].mxu0
      %v3026 = vadd.f32 0.0, %v3025
      %v3027 = vpop.f32.mrb[0].mxu0
      %v3028 = vpop.f32.mrb[0].mxu0
      %3029 = vdwg.mxu0
      %3030 = vmatprep.subr.bf16.mxu0 %v1713
      %3031 = vmatpush1.bf16.msra.mxu0 %v1712
      %3032 = vmatprep.subr.bf16.mxu0 %v1841
      %3033 = vmatpush1.bf16.msra.mxu0 %v1840
      %3034 = vmatprep.subr.bf16.mxu0 %v1969
      %3035 = vmatpush1.bf16.msra.mxu0 %v1968
      %3036 = vmatprep.subr.bf16.mxu0 0
      %3037 = vmatpush1.bf16.msra.mxu0 0
      %3038 = vmatprep.subr.bf16.mxu0 0
      %3039 = vmatpush1.bf16.msra.mxu0 0
      %3040 = vmatprep.subr.bf16.mxu0 0
      %3041 = vmatpush1.bf16.msra.mxu0 0
      %3042 = vmatprep.subr.bf16.mxu0 0
      %3043 = vmatpush1.bf16.msra.mxu0 0
      %3044 = vmatprep.subr.bf16.mxu0 0
      %3045 = vmatpush1.bf16.msra.mxu0 0
      %3046 = vmatprep.subr.bf16.mxu0 0
      %3047 = vmatpush1.bf16.msra.mxu0 0
      %3048 = vmatprep.subr.bf16.mxu0 0
      %3049 = vmatpush1.bf16.msra.mxu0 0
      %3050 = vmatprep.subr.bf16.mxu0 0
      %3051 = vmatpush1.bf16.msra.mxu0 0
      %3052 = vmatprep.subr.bf16.mxu0 0
      %3053 = vmatpush1.bf16.msra.mxu0 0
      %3054 = vmatprep.subr.bf16.mxu0 0
      %3055 = vmatpush1.bf16.msra.mxu0 0
      %3056 = vmatprep.subr.bf16.mxu0 0
      %3057 = vmatpush1.bf16.msra.mxu0 0
      %3058 = vmatprep.subr.bf16.mxu0 0
      %3059 = vmatpush1.bf16.msra.mxu0 0
      %3060 = vmatprep.subr.bf16.mxu0 0
      %3061 = vmatpush1.bf16.msra.mxu0 0
      %3062 = vmatprep.mubr.bf16.mxu0 0
      %3063 = vmatmul.mubr.bf16.gmra.mrb[0].mxu0 %v2454
      %v3064 = vpop.f32.mrb[0].mxu0
      %v3065 = vadd.f32 0.0, %v3064
      %v3066 = vpop.f32.mrb[0].mxu0
      %v3067 = vadd.f32 0.0, %v3066
      %v3068 = vpop.f32.mrb[0].mxu0
      %v3069 = vpop.f32.mrb[0].mxu0
      %3070 = vdwg.mxu0
      %3071 = vmatprep.subr.bf16.mxu0 %v1715
      %3072 = vmatpush1.bf16.msra.mxu0 %v1714
      %3073 = vmatprep.subr.bf16.mxu0 %v1843
      %3074 = vmatpush1.bf16.msra.mxu0 %v1842
      %3075 = vmatprep.subr.bf16.mxu0 %v1971
      %3076 = vmatpush1.bf16.msra.mxu0 %v1970
      %3077 = vmatprep.subr.bf16.mxu0 0
      %3078 = vmatpush1.bf16.msra.mxu0 0
      %3079 = vmatprep.subr.bf16.mxu0 0
      %3080 = vmatpush1.bf16.msra.mxu0 0
      %3081 = vmatprep.subr.bf16.mxu0 0
      %3082 = vmatpush1.bf16.msra.mxu0 0
      %3083 = vmatprep.subr.bf16.mxu0 0
      %3084 = vmatpush1.bf16.msra.mxu0 0
      %3085 = vmatprep.subr.bf16.mxu0 0
      %3086 = vmatpush1.bf16.msra.mxu0 0
      %3087 = vmatprep.subr.bf16.mxu0 0
      %3088 = vmatpush1.bf16.msra.mxu0 0
      %3089 = vmatprep.subr.bf16.mxu0 0
      %3090 = vmatpush1.bf16.msra.mxu0 0
      %3091 = vmatprep.subr.bf16.mxu0 0
      %3092 = vmatpush1.bf16.msra.mxu0 0
      %3093 = vmatprep.subr.bf16.mxu0 0
      %3094 = vmatpush1.bf16.msra.mxu0 0
      %3095 = vmatprep.subr.bf16.mxu0 0
      %3096 = vmatpush1.bf16.msra.mxu0 0
      %3097 = vmatprep.subr.bf16.mxu0 0
      %3098 = vmatpush1.bf16.msra.mxu0 0
      %3099 = vmatprep.subr.bf16.mxu0 0
      %3100 = vmatpush1.bf16.msra.mxu0 0
      %3101 = vmatprep.subr.bf16.mxu0 0
      %3102 = vmatpush1.bf16.msra.mxu0 0
      %3103 = vmatprep.mubr.bf16.mxu0 0
      %3104 = vmatmul.mubr.bf16.gmra.mrb[0].mxu0 %v2454
      %v3105 = vpop.f32.mrb[0].mxu0
      %v3106 = vadd.f32 0.0, %v3105
      %v3107 = vpop.f32.mrb[0].mxu0
      %v3108 = vadd.f32 0.0, %v3107
      %v3109 = vpop.f32.mrb[0].mxu0
      %v3110 = vpop.f32.mrb[0].mxu0
      %3111 = vdwg.mxu0
      %3112 = vmatprep.subr.bf16.mxu0 %v1717
      %3113 = vmatpush1.bf16.msra.mxu0 %v1716
      %3114 = vmatprep.subr.bf16.mxu0 %v1845
      %3115 = vmatpush1.bf16.msra.mxu0 %v1844
      %3116 = vmatprep.subr.bf16.mxu0 %v1973
      %3117 = vmatpush1.bf16.msra.mxu0 %v1972
      %3118 = vmatprep.subr.bf16.mxu0 0
      %3119 = vmatpush1.bf16.msra.mxu0 0
      %3120 = vmatprep.subr.bf16.mxu0 0
      %3121 = vmatpush1.bf16.msra.mxu0 0
      %3122 = vmatprep.subr.bf16.mxu0 0
      %3123 = vmatpush1.bf16.msra.mxu0 0
      %3124 = vmatprep.subr.bf16.mxu0 0
      %3125 = vmatpush1.bf16.msra.mxu0 0
      %3126 = vmatprep.subr.bf16.mxu0 0
      %3127 = vmatpush1.bf16.msra.mxu0 0
      %3128 = vmatprep.subr.bf16.mxu0 0
      %3129 = vmatpush1.bf16.msra.mxu0 0
      %3130 = vmatprep.subr.bf16.mxu0 0
      %3131 = vmatpush1.bf16.msra.mxu0 0
      %3132 = vmatprep.subr.bf16.mxu0 0
      %3133 = vmatpush1.bf16.msra.mxu0 0
      %3134 = vmatprep.subr.bf16.mxu0 0
      %3135 = vmatpush1.bf16.msra.mxu0 0
      %3136 = vmatprep.subr.bf16.mxu0 0
      %3137 = vmatpush1.bf16.msra.mxu0 0
      %3138 = vmatprep.subr.bf16.mxu0 0
      %3139 = vmatpush1.bf16.msra.mxu0 0
      %3140 = vmatprep.subr.bf16.mxu0 0
      %3141 = vmatpush1.bf16.msra.mxu0 0
      %3142 = vmatprep.subr.bf16.mxu0 0
      %3143 = vmatpush1.bf16.msra.mxu0 0
      %3144 = vmatprep.mubr.bf16.mxu0 0
      %3145 = vmatmul.mubr.bf16.gmra.mrb[0].mxu0 %v2454
      %v3146 = vpop.f32.mrb[0].mxu0
      %v3147 = vadd.f32 0.0, %v3146
      %v3148 = vpop.f32.mrb[0].mxu0
      %v3149 = vadd.f32 0.0, %v3148
      %v3150 = vpop.f32.mrb[0].mxu0
      %v3151 = vpop.f32.mrb[0].mxu0
      %3152 = vdwg.mxu0
      %3153 = vmatprep.subr.bf16.mxu0 %v1719
      %3154 = vmatpush1.bf16.msra.mxu0 %v1718
      %3155 = vmatprep.subr.bf16.mxu0 %v1847
      %3156 = vmatpush1.bf16.msra.mxu0 %v1846
      %3157 = vmatprep.subr.bf16.mxu0 %v1975
      %3158 = vmatpush1.bf16.msra.mxu0 %v1974
      %3159 = vmatprep.subr.bf16.mxu0 0
      %3160 = vmatpush1.bf16.msra.mxu0 0
      %3161 = vmatprep.subr.bf16.mxu0 0
      %3162 = vmatpush1.bf16.msra.mxu0 0
      %3163 = vmatprep.subr.bf16.mxu0 0
      %3164 = vmatpush1.bf16.msra.mxu0 0
      %3165 = vmatprep.subr.bf16.mxu0 0
      %3166 = vmatpush1.bf16.msra.mxu0 0
      %3167 = vmatprep.subr.bf16.mxu0 0
      %3168 = vmatpush1.bf16.msra.mxu0 0
      %3169 = vmatprep.subr.bf16.mxu0 0
      %3170 = vmatpush1.bf16.msra.mxu0 0
      %3171 = vmatprep.subr.bf16.mxu0 0
      %3172 = vmatpush1.bf16.msra.mxu0 0
      %3173 = vmatprep.subr.bf16.mxu0 0
      %3174 = vmatpush1.bf16.msra.mxu0 0
      %3175 = vmatprep.subr.bf16.mxu0 0
      %3176 = vmatpush1.bf16.msra.mxu0 0
      %3177 = vmatprep.subr.bf16.mxu0 0
      %3178 = vmatpush1.bf16.msra.mxu0 0
      %3179 = vmatprep.subr.bf16.mxu0 0
      %3180 = vmatpush1.bf16.msra.mxu0 0
      %3181 = vmatprep.subr.bf16.mxu0 0
      %3182 = vmatpush1.bf16.msra.mxu0 0
      %3183 = vmatprep.subr.bf16.mxu0 0
      %3184 = vmatpush1.bf16.msra.mxu0 0
      %3185 = vmatprep.mubr.bf16.mxu0 0
      %3186 = vmatmul.mubr.bf16.gmra.mrb[0].mxu0 %v2454
      %v3187 = vpop.f32.mrb[0].mxu0
      %v3188 = vadd.f32 0.0, %v3187
      %v3189 = vpop.f32.mrb[0].mxu0
      %v3190 = vadd.f32 0.0, %v3189
      %v3191 = vpop.f32.mrb[0].mxu0
      %v3192 = vpop.f32.mrb[0].mxu0
      %3193 = vdwg.mxu0
      %3194 = vmatprep.subr.bf16.mxu0 %v1721
      %3195 = vmatpush1.bf16.msra.mxu0 %v1720
      %3196 = vmatprep.subr.bf16.mxu0 %v1849
      %3197 = vmatpush1.bf16.msra.mxu0 %v1848
      %3198 = vmatprep.subr.bf16.mxu0 %v1977
      %3199 = vmatpush1.bf16.msra.mxu0 %v1976
      %3200 = vmatprep.subr.bf16.mxu0 0
      %3201 = vmatpush1.bf16.msra.mxu0 0
      %3202 = vmatprep.subr.bf16.mxu0 0
      %3203 = vmatpush1.bf16.msra.mxu0 0
      %3204 = vmatprep.subr.bf16.mxu0 0
      %3205 = vmatpush1.bf16.msra.mxu0 0
      %3206 = vmatprep.subr.bf16.mxu0 0
      %3207 = vmatpush1.bf16.msra.mxu0 0
      %3208 = vmatprep.subr.bf16.mxu0 0
      %3209 = vmatpush1.bf16.msra.mxu0 0
      %3210 = vmatprep.subr.bf16.mxu0 0
      %3211 = vmatpush1.bf16.msra.mxu0 0
      %3212 = vmatprep.subr.bf16.mxu0 0
      %3213 = vmatpush1.bf16.msra.mxu0 0
      %3214 = vmatprep.subr.bf16.mxu0 0
      %3215 = vmatpush1.bf16.msra.mxu0 0
      %3216 = vmatprep.subr.bf16.mxu0 0
      %3217 = vmatpush1.bf16.msra.mxu0 0
      %3218 = vmatprep.subr.bf16.mxu0 0
      %3219 = vmatpush1.bf16.msra.mxu0 0
      %3220 = vmatprep.subr.bf16.mxu0 0
      %3221 = vmatpush1.bf16.msra.mxu0 0
      %3222 = vmatprep.subr.bf16.mxu0 0
      %3223 = vmatpush1.bf16.msra.mxu0 0
      %3224 = vmatprep.subr.bf16.mxu0 0
      %3225 = vmatpush1.bf16.msra.mxu0 0
      %3226 = vmatprep.mubr.bf16.mxu0 0
      %3227 = vmatmul.mubr.bf16.gmra.mrb[0].mxu0 %v2454
      %v3228 = vpop.f32.mrb[0].mxu0
      %v3229 = vadd.f32 0.0, %v3228
      %v3230 = vpop.f32.mrb[0].mxu0
      %v3231 = vadd.f32 0.0, %v3230
      %v3232 = vpop.f32.mrb[0].mxu0
      %v3233 = vpop.f32.mrb[0].mxu0
      %3234 = vdwg.mxu0
      %3235 = vmatprep.subr.bf16.mxu0 %v1723
      %3236 = vmatpush1.bf16.msra.mxu0 %v1722
      %3237 = vmatprep.subr.bf16.mxu0 %v1851
      %3238 = vmatpush1.bf16.msra.mxu0 %v1850
      %3239 = vmatprep.subr.bf16.mxu0 %v1979
      %3240 = vmatpush1.bf16.msra.mxu0 %v1978
      %3241 = vmatprep.subr.bf16.mxu0 0
      %3242 = vmatpush1.bf16.msra.mxu0 0
      %3243 = vmatprep.subr.bf16.mxu0 0
      %3244 = vmatpush1.bf16.msra.mxu0 0
      %3245 = vmatprep.subr.bf16.mxu0 0
      %3246 = vmatpush1.bf16.msra.mxu0 0
      %3247 = vmatprep.subr.bf16.mxu0 0
      %3248 = vmatpush1.bf16.msra.mxu0 0
      %3249 = vmatprep.subr.bf16.mxu0 0
      %3250 = vmatpush1.bf16.msra.mxu0 0
      %3251 = vmatprep.subr.bf16.mxu0 0
      %3252 = vmatpush1.bf16.msra.mxu0 0
      %3253 = vmatprep.subr.bf16.mxu0 0
      %3254 = vmatpush1.bf16.msra.mxu0 0
      %3255 = vmatprep.subr.bf16.mxu0 0
      %3256 = vmatpush1.bf16.msra.mxu0 0
      %3257 = vmatprep.subr.bf16.mxu0 0
      %3258 = vmatpush1.bf16.msra.mxu0 0
      %3259 = vmatprep.subr.bf16.mxu0 0
      %3260 = vmatpush1.bf16.msra.mxu0 0
      %3261 = vmatprep.subr.bf16.mxu0 0
      %3262 = vmatpush1.bf16.msra.mxu0 0
      %3263 = vmatprep.subr.bf16.mxu0 0
      %3264 = vmatpush1.bf16.msra.mxu0 0
      %3265 = vmatprep.subr.bf16.mxu0 0
      %3266 = vmatpush1.bf16.msra.mxu0 0
      %3267 = vmatprep.mubr.bf16.mxu0 0
      %3268 = vmatmul.mubr.bf16.gmra.mrb[0].mxu0 %v2454
      %v3269 = vpop.f32.mrb[0].mxu0
      %v3270 = vadd.f32 0.0, %v3269
      %v3271 = vpop.f32.mrb[0].mxu0
      %v3272 = vadd.f32 0.0, %v3271
      %v3273 = vpop.f32.mrb[0].mxu0
      %v3274 = vpop.f32.mrb[0].mxu0
      %3275 = vdwg.mxu0
      %3276 = vmatprep.subr.bf16.mxu0 %v1725
      %3277 = vmatpush1.bf16.msra.mxu0 %v1724
      %3278 = vmatprep.subr.bf16.mxu0 %v1853
      %3279 = vmatpush1.bf16.msra.mxu0 %v1852
      %3280 = vmatprep.subr.bf16.mxu0 %v1981
      %3281 = vmatpush1.bf16.msra.mxu0 %v1980
      %3282 = vmatprep.subr.bf16.mxu0 0
      %3283 = vmatpush1.bf16.msra.mxu0 0
      %3284 = vmatprep.subr.bf16.mxu0 0
      %3285 = vmatpush1.bf16.msra.mxu0 0
      %3286 = vmatprep.subr.bf16.mxu0 0
      %3287 = vmatpush1.bf16.msra.mxu0 0
      %3288 = vmatprep.subr.bf16.mxu0 0
      %3289 = vmatpush1.bf16.msra.mxu0 0
      %3290 = vmatprep.subr.bf16.mxu0 0
      %3291 = vmatpush1.bf16.msra.mxu0 0
      %3292 = vmatprep.subr.bf16.mxu0 0
      %3293 = vmatpush1.bf16.msra.mxu0 0
      %3294 = vmatprep.subr.bf16.mxu0 0
      %3295 = vmatpush1.bf16.msra.mxu0 0
      %3296 = vmatprep.subr.bf16.mxu0 0
      %3297 = vmatpush1.bf16.msra.mxu0 0
      %3298 = vmatprep.subr.bf16.mxu0 0
      %3299 = vmatpush1.bf16.msra.mxu0 0
      %3300 = vmatprep.subr.bf16.mxu0 0
      %3301 = vmatpush1.bf16.msra.mxu0 0
      %3302 = vmatprep.subr.bf16.mxu0 0
      %3303 = vmatpush1.bf16.msra.mxu0 0
      %3304 = vmatprep.subr.bf16.mxu0 0
      %3305 = vmatpush1.bf16.msra.mxu0 0
      %3306 = vmatprep.subr.bf16.mxu0 0
      %3307 = vmatpush1.bf16.msra.mxu0 0
      %3308 = vmatprep.mubr.bf16.mxu0 0
      %3309 = vmatmul.mubr.bf16.gmra.mrb[0].mxu0 %v2454
      %v3310 = vpop.f32.mrb[0].mxu0
      %v3311 = vadd.f32 0.0, %v3310
      %v3312 = vpop.f32.mrb[0].mxu0
      %v3313 = vadd.f32 0.0, %v3312
      %v3314 = vpop.f32.mrb[0].mxu0
      %v3315 = vpop.f32.mrb[0].mxu0
      %3316 = vdwg.mxu0
      %3317 = vmatprep.subr.bf16.mxu0 %v1727
      %3318 = vmatpush1.bf16.msra.mxu0 %v1726
      %3319 = vmatprep.subr.bf16.mxu0 %v1855
      %3320 = vmatpush1.bf16.msra.mxu0 %v1854
      %3321 = vmatprep.subr.bf16.mxu0 %v1983
      %3322 = vmatpush1.bf16.msra.mxu0 %v1982
      %3323 = vmatprep.subr.bf16.mxu0 0
      %3324 = vmatpush1.bf16.msra.mxu0 0
      %3325 = vmatprep.subr.bf16.mxu0 0
      %3326 = vmatpush1.bf16.msra.mxu0 0
      %3327 = vmatprep.subr.bf16.mxu0 0
      %3328 = vmatpush1.bf16.msra.mxu0 0
      %3329 = vmatprep.subr.bf16.mxu0 0
      %3330 = vmatpush1.bf16.msra.mxu0 0
      %3331 = vmatprep.subr.bf16.mxu0 0
      %3332 = vmatpush1.bf16.msra.mxu0 0
      %3333 = vmatprep.subr.bf16.mxu0 0
      %3334 = vmatpush1.bf16.msra.mxu0 0
      %3335 = vmatprep.subr.bf16.mxu0 0
      %3336 = vmatpush1.bf16.msra.mxu0 0
      %3337 = vmatprep.subr.bf16.mxu0 0
      %3338 = vmatpush1.bf16.msra.mxu0 0
      %3339 = vmatprep.subr.bf16.mxu0 0
      %3340 = vmatpush1.bf16.msra.mxu0 0
      %3341 = vmatprep.subr.bf16.mxu0 0
      %3342 = vmatpush1.bf16.msra.mxu0 0
      %3343 = vmatprep.subr.bf16.mxu0 0
      %3344 = vmatpush1.bf16.msra.mxu0 0
      %3345 = vmatprep.subr.bf16.mxu0 0
      %3346 = vmatpush1.bf16.msra.mxu0 0
      %3347 = vmatprep.subr.bf16.mxu0 0
      %3348 = vmatpush1.bf16.msra.mxu0 0
      %3349 = vmatprep.mubr.bf16.mxu0 0
      %3350 = vmatmul.mubr.bf16.gmra.mrb[0].mxu0 %v2454
      %v3351 = vpop.f32.mrb[0].mxu0
      %v3352 = vadd.f32 0.0, %v3351
      %v3353 = vpop.f32.mrb[0].mxu0
      %v3354 = vadd.f32 0.0, %v3353
      %v3355 = vpop.f32.mrb[0].mxu0
      %v3356 = vpop.f32.mrb[0].mxu0
      %3357 = vdwg.mxu0
      %3358 = vmatprep.subr.bf16.mxu0 %v1729
      %3359 = vmatpush1.bf16.msra.mxu0 %v1728
      %3360 = vmatprep.subr.bf16.mxu0 %v1857
      %3361 = vmatpush1.bf16.msra.mxu0 %v1856
      %3362 = vmatprep.subr.bf16.mxu0 %v1985
      %3363 = vmatpush1.bf16.msra.mxu0 %v1984
      %3364 = vmatprep.subr.bf16.mxu0 0
      %3365 = vmatpush1.bf16.msra.mxu0 0
      %3366 = vmatprep.subr.bf16.mxu0 0
      %3367 = vmatpush1.bf16.msra.mxu0 0
      %3368 = vmatprep.subr.bf16.mxu0 0
      %3369 = vmatpush1.bf16.msra.mxu0 0
      %3370 = vmatprep.subr.bf16.mxu0 0
      %3371 = vmatpush1.bf16.msra.mxu0 0
      %3372 = vmatprep.subr.bf16.mxu0 0
      %3373 = vmatpush1.bf16.msra.mxu0 0
      %3374 = vmatprep.subr.bf16.mxu0 0
      %3375 = vmatpush1.bf16.msra.mxu0 0
      %3376 = vmatprep.subr.bf16.mxu0 0
      %3377 = vmatpush1.bf16.msra.mxu0 0
      %3378 = vmatprep.subr.bf16.mxu0 0
      %3379 = vmatpush1.bf16.msra.mxu0 0
      %3380 = vmatprep.subr.bf16.mxu0 0
      %3381 = vmatpush1.bf16.msra.mxu0 0
      %3382 = vmatprep.subr.bf16.mxu0 0
      %3383 = vmatpush1.bf16.msra.mxu0 0
      %3384 = vmatprep.subr.bf16.mxu0 0
      %3385 = vmatpush1.bf16.msra.mxu0 0
      %3386 = vmatprep.subr.bf16.mxu0 0
      %3387 = vmatpush1.bf16.msra.mxu0 0
      %3388 = vmatprep.subr.bf16.mxu0 0
      %3389 = vmatpush1.bf16.msra.mxu0 0
      %3390 = vmatprep.mubr.bf16.mxu0 0
      %3391 = vmatmul.mubr.bf16.gmra.mrb[0].mxu0 %v2454
      %v3392 = vpop.f32.mrb[0].mxu0
      %v3393 = vadd.f32 0.0, %v3392
      %v3394 = vpop.f32.mrb[0].mxu0
      %v3395 = vadd.f32 0.0, %v3394
      %v3396 = vpop.f32.mrb[0].mxu0
      %v3397 = vpop.f32.mrb[0].mxu0
      %3398 = vdwg.mxu0
      %3399 = vmatprep.subr.bf16.mxu0 %v1731
      %3400 = vmatpush1.bf16.msra.mxu0 %v1730
      %3401 = vmatprep.subr.bf16.mxu0 %v1859
      %3402 = vmatpush1.bf16.msra.mxu0 %v1858
      %3403 = vmatprep.subr.bf16.mxu0 %v1987
      %3404 = vmatpush1.bf16.msra.mxu0 %v1986
      %3405 = vmatprep.subr.bf16.mxu0 0
      %3406 = vmatpush1.bf16.msra.mxu0 0
      %3407 = vmatprep.subr.bf16.mxu0 0
      %3408 = vmatpush1.bf16.msra.mxu0 0
      %3409 = vmatprep.subr.bf16.mxu0 0
      %3410 = vmatpush1.bf16.msra.mxu0 0
      %3411 = vmatprep.subr.bf16.mxu0 0
      %3412 = vmatpush1.bf16.msra.mxu0 0
      %3413 = vmatprep.subr.bf16.mxu0 0
      %3414 = vmatpush1.bf16.msra.mxu0 0
      %3415 = vmatprep.subr.bf16.mxu0 0
      %3416 = vmatpush1.bf16.msra.mxu0 0
      %3417 = vmatprep.subr.bf16.mxu0 0
      %3418 = vmatpush1.bf16.msra.mxu0 0
      %3419 = vmatprep.subr.bf16.mxu0 0
      %3420 = vmatpush1.bf16.msra.mxu0 0
      %3421 = vmatprep.subr.bf16.mxu0 0
      %3422 = vmatpush1.bf16.msra.mxu0 0
      %3423 = vmatprep.subr.bf16.mxu0 0
      %3424 = vmatpush1.bf16.msra.mxu0 0
      %3425 = vmatprep.subr.bf16.mxu0 0
      %3426 = vmatpush1.bf16.msra.mxu0 0
      %3427 = vmatprep.subr.bf16.mxu0 0
      %3428 = vmatpush1.bf16.msra.mxu0 0
      %3429 = vmatprep.subr.bf16.mxu0 0
      %3430 = vmatpush1.bf16.msra.mxu0 0
      %3431 = vmatprep.mubr.bf16.mxu0 0
      %3432 = vmatmul.mubr.bf16.gmra.mrb[0].mxu0 %v2454
      %v3433 = vpop.f32.mrb[0].mxu0
      %v3434 = vadd.f32 0.0, %v3433
      %v3435 = vpop.f32.mrb[0].mxu0
      %v3436 = vadd.f32 0.0, %v3435
      %v3437 = vpop.f32.mrb[0].mxu0
      %v3438 = vpop.f32.mrb[0].mxu0
      %3439 = vdwg.mxu0
      %3440 = vmatprep.subr.bf16.mxu0 %v1733
      %3441 = vmatpush1.bf16.msra.mxu0 %v1732
      %3442 = vmatprep.subr.bf16.mxu0 %v1861
      %3443 = vmatpush1.bf16.msra.mxu0 %v1860
      %3444 = vmatprep.subr.bf16.mxu0 %v1989
      %3445 = vmatpush1.bf16.msra.mxu0 %v1988
      %3446 = vmatprep.subr.bf16.mxu0 0
      %3447 = vmatpush1.bf16.msra.mxu0 0
      %3448 = vmatprep.subr.bf16.mxu0 0
      %3449 = vmatpush1.bf16.msra.mxu0 0
      %3450 = vmatprep.subr.bf16.mxu0 0
      %3451 = vmatpush1.bf16.msra.mxu0 0
      %3452 = vmatprep.subr.bf16.mxu0 0
      %3453 = vmatpush1.bf16.msra.mxu0 0
      %3454 = vmatprep.subr.bf16.mxu0 0
      %3455 = vmatpush1.bf16.msra.mxu0 0
      %3456 = vmatprep.subr.bf16.mxu0 0
      %3457 = vmatpush1.bf16.msra.mxu0 0
      %3458 = vmatprep.subr.bf16.mxu0 0
      %3459 = vmatpush1.bf16.msra.mxu0 0
      %3460 = vmatprep.subr.bf16.mxu0 0
      %3461 = vmatpush1.bf16.msra.mxu0 0
      %3462 = vmatprep.subr.bf16.mxu0 0
      %3463 = vmatpush1.bf16.msra.mxu0 0
      %3464 = vmatprep.subr.bf16.mxu0 0
      %3465 = vmatpush1.bf16.msra.mxu0 0
      %3466 = vmatprep.subr.bf16.mxu0 0
      %3467 = vmatpush1.bf16.msra.mxu0 0
      %3468 = vmatprep.subr.bf16.mxu0 0
      %3469 = vmatpush1.bf16.msra.mxu0 0
      %3470 = vmatprep.subr.bf16.mxu0 0
      %3471 = vmatpush1.bf16.msra.mxu0 0
      %3472 = vmatprep.mubr.bf16.mxu0 0
      %3473 = vmatmul.mubr.bf16.gmra.mrb[0].mxu0 %v2454
      %v3474 = vpop.f32.mrb[0].mxu0
      %v3475 = vadd.f32 0.0, %v3474
      %v3476 = vpop.f32.mrb[0].mxu0
      %v3477 = vadd.f32 0.0, %v3476
      %v3478 = vpop.f32.mrb[0].mxu0
      %v3479 = vpop.f32.mrb[0].mxu0
      %3480 = vdwg.mxu0
      %3481 = vmatprep.subr.bf16.mxu0 %v1735
      %3482 = vmatpush1.bf16.msra.mxu0 %v1734
      %3483 = vmatprep.subr.bf16.mxu0 %v1863
      %3484 = vmatpush1.bf16.msra.mxu0 %v1862
      %3485 = vmatprep.subr.bf16.mxu0 %v1991
      %3486 = vmatpush1.bf16.msra.mxu0 %v1990
      %3487 = vmatprep.subr.bf16.mxu0 0
      %3488 = vmatpush1.bf16.msra.mxu0 0
      %3489 = vmatprep.subr.bf16.mxu0 0
      %3490 = vmatpush1.bf16.msra.mxu0 0
      %3491 = vmatprep.subr.bf16.mxu0 0
      %3492 = vmatpush1.bf16.msra.mxu0 0
      %3493 = vmatprep.subr.bf16.mxu0 0
      %3494 = vmatpush1.bf16.msra.mxu0 0
      %3495 = vmatprep.subr.bf16.mxu0 0
      %3496 = vmatpush1.bf16.msra.mxu0 0
      %3497 = vmatprep.subr.bf16.mxu0 0
      %3498 = vmatpush1.bf16.msra.mxu0 0
      %3499 = vmatprep.subr.bf16.mxu0 0
      %3500 = vmatpush1.bf16.msra.mxu0 0
      %3501 = vmatprep.subr.bf16.mxu0 0
      %3502 = vmatpush1.bf16.msra.mxu0 0
      %3503 = vmatprep.subr.bf16.mxu0 0
      %3504 = vmatpush1.bf16.msra.mxu0 0
      %3505 = vmatprep.subr.bf16.mxu0 0
      %3506 = vmatpush1.bf16.msra.mxu0 0
      %3507 = vmatprep.subr.bf16.mxu0 0
      %3508 = vmatpush1.bf16.msra.mxu0 0
      %3509 = vmatprep.subr.bf16.mxu0 0
      %3510 = vmatpush1.bf16.msra.mxu0 0
      %3511 = vmatprep.subr.bf16.mxu0 0
      %3512 = vmatpush1.bf16.msra.mxu0 0
      %3513 = vmatprep.mubr.bf16.mxu0 0
      %3514 = vmatmul.mubr.bf16.gmra.mrb[0].mxu0 %v2454
      %v3515 = vpop.f32.mrb[0].mxu0
      %v3516 = vadd.f32 0.0, %v3515
      %v3517 = vpop.f32.mrb[0].mxu0
      %v3518 = vadd.f32 0.0, %v3517
      %v3519 = vpop.f32.mrb[0].mxu0
      %v3520 = vpop.f32.mrb[0].mxu0
      %3521 = vdwg.mxu0
      %3522 = vmatprep.subr.bf16.mxu0 %v1737
      %3523 = vmatpush1.bf16.msra.mxu0 %v1736
      %3524 = vmatprep.subr.bf16.mxu0 %v1865
      %3525 = vmatpush1.bf16.msra.mxu0 %v1864
      %3526 = vmatprep.subr.bf16.mxu0 %v1993
      %3527 = vmatpush1.bf16.msra.mxu0 %v1992
      %3528 = vmatprep.subr.bf16.mxu0 0
      %3529 = vmatpush1.bf16.msra.mxu0 0
      %3530 = vmatprep.subr.bf16.mxu0 0
      %3531 = vmatpush1.bf16.msra.mxu0 0
      %3532 = vmatprep.subr.bf16.mxu0 0
      %3533 = vmatpush1.bf16.msra.mxu0 0
      %3534 = vmatprep.subr.bf16.mxu0 0
      %3535 = vmatpush1.bf16.msra.mxu0 0
      %3536 = vmatprep.subr.bf16.mxu0 0
      %3537 = vmatpush1.bf16.msra.mxu0 0
      %3538 = vmatprep.subr.bf16.mxu0 0
      %3539 = vmatpush1.bf16.msra.mxu0 0
      %3540 = vmatprep.subr.bf16.mxu0 0
      %3541 = vmatpush1.bf16.msra.mxu0 0
      %3542 = vmatprep.subr.bf16.mxu0 0
      %3543 = vmatpush1.bf16.msra.mxu0 0
      %3544 = vmatprep.subr.bf16.mxu0 0
      %3545 = vmatpush1.bf16.msra.mxu0 0
      %3546 = vmatprep.subr.bf16.mxu0 0
      %3547 = vmatpush1.bf16.msra.mxu0 0
      %3548 = vmatprep.subr.bf16.mxu0 0
      %3549 = vmatpush1.bf16.msra.mxu0 0
      %3550 = vmatprep.subr.bf16.mxu0 0
      %3551 = vmatpush1.bf16.msra.mxu0 0
      %3552 = vmatprep.subr.bf16.mxu0 0
      %3553 = vmatpush1.bf16.msra.mxu0 0
      %3554 = vmatprep.mubr.bf16.mxu0 0
      %3555 = vmatmul.mubr.bf16.gmra.mrb[0].mxu0 %v2454
      %v3556 = vpop.f32.mrb[0].mxu0
      %v3557 = vadd.f32 0.0, %v3556
      %v3558 = vpop.f32.mrb[0].mxu0
      %v3559 = vadd.f32 0.0, %v3558
      %v3560 = vpop.f32.mrb[0].mxu0
      %v3561 = vpop.f32.mrb[0].mxu0
      %3562 = vdwg.mxu0
      %3563 = vmatprep.subr.bf16.mxu0 %v1739
      %3564 = vmatpush1.bf16.msra.mxu0 %v1738
      %3565 = vmatprep.subr.bf16.mxu0 %v1867
      %3566 = vmatpush1.bf16.msra.mxu0 %v1866
      %3567 = vmatprep.subr.bf16.mxu0 %v1995
      %3568 = vmatpush1.bf16.msra.mxu0 %v1994
      %3569 = vmatprep.subr.bf16.mxu0 0
      %3570 = vmatpush1.bf16.msra.mxu0 0
      %3571 = vmatprep.subr.bf16.mxu0 0
      %3572 = vmatpush1.bf16.msra.mxu0 0
      %3573 = vmatprep.subr.bf16.mxu0 0
      %3574 = vmatpush1.bf16.msra.mxu0 0
      %3575 = vmatprep.subr.bf16.mxu0 0
      %3576 = vmatpush1.bf16.msra.mxu0 0
      %3577 = vmatprep.subr.bf16.mxu0 0
      %3578 = vmatpush1.bf16.msra.mxu0 0
      %3579 = vmatprep.subr.bf16.mxu0 0
      %3580 = vmatpush1.bf16.msra.mxu0 0
      %3581 = vmatprep.subr.bf16.mxu0 0
      %3582 = vmatpush1.bf16.msra.mxu0 0
      %3583 = vmatprep.subr.bf16.mxu0 0
      %3584 = vmatpush1.bf16.msra.mxu0 0
      %3585 = vmatprep.subr.bf16.mxu0 0
      %3586 = vmatpush1.bf16.msra.mxu0 0
      %3587 = vmatprep.subr.bf16.mxu0 0
      %3588 = vmatpush1.bf16.msra.mxu0 0
      %3589 = vmatprep.subr.bf16.mxu0 0
      %3590 = vmatpush1.bf16.msra.mxu0 0
      %3591 = vmatprep.subr.bf16.mxu0 0
      %3592 = vmatpush1.bf16.msra.mxu0 0
      %3593 = vmatprep.subr.bf16.mxu0 0
      %3594 = vmatpush1.bf16.msra.mxu0 0
      %3595 = vmatprep.mubr.bf16.mxu0 0
      %3596 = vmatmul.mubr.bf16.gmra.mrb[0].mxu0 %v2454
      %v3597 = vpop.f32.mrb[0].mxu0
      %v3598 = vadd.f32 0.0, %v3597
      %v3599 = vpop.f32.mrb[0].mxu0
      %v3600 = vadd.f32 0.0, %v3599
      %v3601 = vpop.f32.mrb[0].mxu0
      %v3602 = vpop.f32.mrb[0].mxu0
      %3603 = vdwg.mxu0
      %3604 = vmatprep.subr.bf16.mxu0 %v1741
      %3605 = vmatpush1.bf16.msra.mxu0 %v1740
      %3606 = vmatprep.subr.bf16.mxu0 %v1869
      %3607 = vmatpush1.bf16.msra.mxu0 %v1868
      %3608 = vmatprep.subr.bf16.mxu0 %v1997
      %3609 = vmatpush1.bf16.msra.mxu0 %v1996
      %3610 = vmatprep.subr.bf16.mxu0 0
      %3611 = vmatpush1.bf16.msra.mxu0 0
      %3612 = vmatprep.subr.bf16.mxu0 0
      %3613 = vmatpush1.bf16.msra.mxu0 0
      %3614 = vmatprep.subr.bf16.mxu0 0
      %3615 = vmatpush1.bf16.msra.mxu0 0
      %3616 = vmatprep.subr.bf16.mxu0 0
      %3617 = vmatpush1.bf16.msra.mxu0 0
      %3618 = vmatprep.subr.bf16.mxu0 0
      %3619 = vmatpush1.bf16.msra.mxu0 0
      %3620 = vmatprep.subr.bf16.mxu0 0
      %3621 = vmatpush1.bf16.msra.mxu0 0
      %3622 = vmatprep.subr.bf16.mxu0 0
      %3623 = vmatpush1.bf16.msra.mxu0 0
      %3624 = vmatprep.subr.bf16.mxu0 0
      %3625 = vmatpush1.bf16.msra.mxu0 0
      %3626 = vmatprep.subr.bf16.mxu0 0
      %3627 = vmatpush1.bf16.msra.mxu0 0
      %3628 = vmatprep.subr.bf16.mxu0 0
      %3629 = vmatpush1.bf16.msra.mxu0 0
      %3630 = vmatprep.subr.bf16.mxu0 0
      %3631 = vmatpush1.bf16.msra.mxu0 0
      %3632 = vmatprep.subr.bf16.mxu0 0
      %3633 = vmatpush1.bf16.msra.mxu0 0
      %3634 = vmatprep.subr.bf16.mxu0 0
      %3635 = vmatpush1.bf16.msra.mxu0 0
      %3636 = vmatprep.mubr.bf16.mxu0 0
      %3637 = vmatmul.mubr.bf16.gmra.mrb[0].mxu0 %v2454
      %v3638 = vpop.f32.mrb[0].mxu0
      %v3639 = vadd.f32 0.0, %v3638
      %v3640 = vpop.f32.mrb[0].mxu0
      %v3641 = vadd.f32 0.0, %v3640
      %v3642 = vpop.f32.mrb[0].mxu0
      %v3643 = vpop.f32.mrb[0].mxu0
      %3644 = vdwg.mxu0
      %3645 = vmatprep.subr.bf16.mxu0 %v1743
      %3646 = vmatpush1.bf16.msra.mxu0 %v1742
      %3647 = vmatprep.subr.bf16.mxu0 %v1871
      %3648 = vmatpush1.bf16.msra.mxu0 %v1870
      %3649 = vmatprep.subr.bf16.mxu0 %v1999
      %3650 = vmatpush1.bf16.msra.mxu0 %v1998
      %3651 = vmatprep.subr.bf16.mxu0 0
      %3652 = vmatpush1.bf16.msra.mxu0 0
      %3653 = vmatprep.subr.bf16.mxu0 0
      %3654 = vmatpush1.bf16.msra.mxu0 0
      %3655 = vmatprep.subr.bf16.mxu0 0
      %3656 = vmatpush1.bf16.msra.mxu0 0
      %3657 = vmatprep.subr.bf16.mxu0 0
      %3658 = vmatpush1.bf16.msra.mxu0 0
      %3659 = vmatprep.subr.bf16.mxu0 0
      %3660 = vmatpush1.bf16.msra.mxu0 0
      %3661 = vmatprep.subr.bf16.mxu0 0
      %3662 = vmatpush1.bf16.msra.mxu0 0
      %3663 = vmatprep.subr.bf16.mxu0 0
      %3664 = vmatpush1.bf16.msra.mxu0 0
      %3665 = vmatprep.subr.bf16.mxu0 0
      %3666 = vmatpush1.bf16.msra.mxu0 0
      %3667 = vmatprep.subr.bf16.mxu0 0
      %3668 = vmatpush1.bf16.msra.mxu0 0
      %3669 = vmatprep.subr.bf16.mxu0 0
      %3670 = vmatpush1.bf16.msra.mxu0 0
      %3671 = vmatprep.subr.bf16.mxu0 0
      %3672 = vmatpush1.bf16.msra.mxu0 0
      %3673 = vmatprep.subr.bf16.mxu0 0
      %3674 = vmatpush1.bf16.msra.mxu0 0
      %3675 = vmatprep.subr.bf16.mxu0 0
      %3676 = vmatpush1.bf16.msra.mxu0 0
      %3677 = vmatprep.mubr.bf16.mxu0 0
      %3678 = vmatmul.mubr.bf16.gmra.mrb[0].mxu0 %v2454
      %v3679 = vpop.f32.mrb[0].mxu0
      %v3680 = vadd.f32 0.0, %v3679
      %v3681 = vpop.f32.mrb[0].mxu0
      %v3682 = vadd.f32 0.0, %v3681
      %v3683 = vpop.f32.mrb[0].mxu0
      %v3684 = vpop.f32.mrb[0].mxu0
      %3685 = vdwg.mxu0
      %3686 = vmatprep.subr.bf16.mxu0 %v1745
      %3687 = vmatpush1.bf16.msra.mxu0 %v1744
      %3688 = vmatprep.subr.bf16.mxu0 %v1873
      %3689 = vmatpush1.bf16.msra.mxu0 %v1872
      %3690 = vmatprep.subr.bf16.mxu0 %v2001
      %3691 = vmatpush1.bf16.msra.mxu0 %v2000
      %3692 = vmatprep.subr.bf16.mxu0 0
      %3693 = vmatpush1.bf16.msra.mxu0 0
      %3694 = vmatprep.subr.bf16.mxu0 0
      %3695 = vmatpush1.bf16.msra.mxu0 0
      %3696 = vmatprep.subr.bf16.mxu0 0
      %3697 = vmatpush1.bf16.msra.mxu0 0
      %3698 = vmatprep.subr.bf16.mxu0 0
      %3699 = vmatpush1.bf16.msra.mxu0 0
      %3700 = vmatprep.subr.bf16.mxu0 0
      %3701 = vmatpush1.bf16.msra.mxu0 0
      %3702 = vmatprep.subr.bf16.mxu0 0
      %3703 = vmatpush1.bf16.msra.mxu0 0
      %3704 = vmatprep.subr.bf16.mxu0 0
      %3705 = vmatpush1.bf16.msra.mxu0 0
      %3706 = vmatprep.subr.bf16.mxu0 0
      %3707 = vmatpush1.bf16.msra.mxu0 0
      %3708 = vmatprep.subr.bf16.mxu0 0
      %3709 = vmatpush1.bf16.msra.mxu0 0
      %3710 = vmatprep.subr.bf16.mxu0 0
      %3711 = vmatpush1.bf16.msra.mxu0 0
      %3712 = vmatprep.subr.bf16.mxu0 0
      %3713 = vmatpush1.bf16.msra.mxu0 0
      %3714 = vmatprep.subr.bf16.mxu0 0
      %3715 = vmatpush1.bf16.msra.mxu0 0
      %3716 = vmatprep.subr.bf16.mxu0 0
      %3717 = vmatpush1.bf16.msra.mxu0 0
      %3718 = vmatprep.mubr.bf16.mxu0 0
      %3719 = vmatmul.mubr.bf16.gmra.mrb[0].mxu0 %v2454
      %v3720 = vpop.f32.mrb[0].mxu0
      %v3721 = vadd.f32 0.0, %v3720
      %v3722 = vpop.f32.mrb[0].mxu0
      %v3723 = vadd.f32 0.0, %v3722
      %v3724 = vpop.f32.mrb[0].mxu0
      %v3725 = vpop.f32.mrb[0].mxu0
      %3726 = vdwg.mxu0
      %3727 = vmatprep.subr.bf16.mxu0 %v1747
      %3728 = vmatpush1.bf16.msra.mxu0 %v1746
      %3729 = vmatprep.subr.bf16.mxu0 %v1875
      %3730 = vmatpush1.bf16.msra.mxu0 %v1874
      %3731 = vmatprep.subr.bf16.mxu0 %v2003
      %3732 = vmatpush1.bf16.msra.mxu0 %v2002
      %3733 = vmatprep.subr.bf16.mxu0 0
      %3734 = vmatpush1.bf16.msra.mxu0 0
      %3735 = vmatprep.subr.bf16.mxu0 0
      %3736 = vmatpush1.bf16.msra.mxu0 0
      %3737 = vmatprep.subr.bf16.mxu0 0
      %3738 = vmatpush1.bf16.msra.mxu0 0
      %3739 = vmatprep.subr.bf16.mxu0 0
      %3740 = vmatpush1.bf16.msra.mxu0 0
      %3741 = vmatprep.subr.bf16.mxu0 0
      %3742 = vmatpush1.bf16.msra.mxu0 0
      %3743 = vmatprep.subr.bf16.mxu0 0
      %3744 = vmatpush1.bf16.msra.mxu0 0
      %3745 = vmatprep.subr.bf16.mxu0 0
      %3746 = vmatpush1.bf16.msra.mxu0 0
      %3747 = vmatprep.subr.bf16.mxu0 0
      %3748 = vmatpush1.bf16.msra.mxu0 0
      %3749 = vmatprep.subr.bf16.mxu0 0
      %3750 = vmatpush1.bf16.msra.mxu0 0
      %3751 = vmatprep.subr.bf16.mxu0 0
      %3752 = vmatpush1.bf16.msra.mxu0 0
      %3753 = vmatprep.subr.bf16.mxu0 0
      %3754 = vmatpush1.bf16.msra.mxu0 0
      %3755 = vmatprep.subr.bf16.mxu0 0
      %3756 = vmatpush1.bf16.msra.mxu0 0
      %3757 = vmatprep.subr.bf16.mxu0 0
      %3758 = vmatpush1.bf16.msra.mxu0 0
      %3759 = vmatprep.mubr.bf16.mxu0 0
      %3760 = vmatmul.mubr.bf16.gmra.mrb[0].mxu0 %v2454
      %v3761 = vpop.f32.mrb[0].mxu0
      %v3762 = vadd.f32 0.0, %v3761
      %v3763 = vpop.f32.mrb[0].mxu0
      %v3764 = vadd.f32 0.0, %v3763
      %v3765 = vpop.f32.mrb[0].mxu0
      %v3766 = vpop.f32.mrb[0].mxu0
      %3767 = vdwg.mxu0
      %3768 = vmatprep.subr.bf16.mxu0 %v1749
      %3769 = vmatpush1.bf16.msra.mxu0 %v1748
      %3770 = vmatprep.subr.bf16.mxu0 %v1877
      %3771 = vmatpush1.bf16.msra.mxu0 %v1876
      %3772 = vmatprep.subr.bf16.mxu0 %v2005
      %3773 = vmatpush1.bf16.msra.mxu0 %v2004
      %3774 = vmatprep.subr.bf16.mxu0 0
      %3775 = vmatpush1.bf16.msra.mxu0 0
      %3776 = vmatprep.subr.bf16.mxu0 0
      %3777 = vmatpush1.bf16.msra.mxu0 0
      %3778 = vmatprep.subr.bf16.mxu0 0
      %3779 = vmatpush1.bf16.msra.mxu0 0
      %3780 = vmatprep.subr.bf16.mxu0 0
      %3781 = vmatpush1.bf16.msra.mxu0 0
      %3782 = vmatprep.subr.bf16.mxu0 0
      %3783 = vmatpush1.bf16.msra.mxu0 0
      %3784 = vmatprep.subr.bf16.mxu0 0
      %3785 = vmatpush1.bf16.msra.mxu0 0
      %3786 = vmatprep.subr.bf16.mxu0 0
      %3787 = vmatpush1.bf16.msra.mxu0 0
      %3788 = vmatprep.subr.bf16.mxu0 0
      %3789 = vmatpush1.bf16.msra.mxu0 0
      %3790 = vmatprep.subr.bf16.mxu0 0
      %3791 = vmatpush1.bf16.msra.mxu0 0
      %3792 = vmatprep.subr.bf16.mxu0 0
      %3793 = vmatpush1.bf16.msra.mxu0 0
      %3794 = vmatprep.subr.bf16.mxu0 0
      %3795 = vmatpush1.bf16.msra.mxu0 0
      %3796 = vmatprep.subr.bf16.mxu0 0
      %3797 = vmatpush1.bf16.msra.mxu0 0
      %3798 = vmatprep.subr.bf16.mxu0 0
      %3799 = vmatpush1.bf16.msra.mxu0 0
      %3800 = vmatprep.mubr.bf16.mxu0 0
      %3801 = vmatmul.mubr.bf16.gmra.mrb[0].mxu0 %v2454
      %v3802 = vpop.f32.mrb[0].mxu0
      %v3803 = vadd.f32 0.0, %v3802
      %v3804 = vpop.f32.mrb[0].mxu0
      %v3805 = vadd.f32 0.0, %v3804
      %v3806 = vpop.f32.mrb[0].mxu0
      %v3807 = vpop.f32.mrb[0].mxu0
      %3808 = vdwg.mxu0
      %3809 = vmatprep.subr.bf16.mxu0 %v1751
      %3810 = vmatpush1.bf16.msra.mxu0 %v1750
      %3811 = vmatprep.subr.bf16.mxu0 %v1879
      %3812 = vmatpush1.bf16.msra.mxu0 %v1878
      %3813 = vmatprep.subr.bf16.mxu0 %v2007
      %3814 = vmatpush1.bf16.msra.mxu0 %v2006
      %3815 = vmatprep.subr.bf16.mxu0 0
      %3816 = vmatpush1.bf16.msra.mxu0 0
      %3817 = vmatprep.subr.bf16.mxu0 0
      %3818 = vmatpush1.bf16.msra.mxu0 0
      %3819 = vmatprep.subr.bf16.mxu0 0
      %3820 = vmatpush1.bf16.msra.mxu0 0
      %3821 = vmatprep.subr.bf16.mxu0 0
      %3822 = vmatpush1.bf16.msra.mxu0 0
      %3823 = vmatprep.subr.bf16.mxu0 0
      %3824 = vmatpush1.bf16.msra.mxu0 0
      %3825 = vmatprep.subr.bf16.mxu0 0
      %3826 = vmatpush1.bf16.msra.mxu0 0
      %3827 = vmatprep.subr.bf16.mxu0 0
      %3828 = vmatpush1.bf16.msra.mxu0 0
      %3829 = vmatprep.subr.bf16.mxu0 0
      %3830 = vmatpush1.bf16.msra.mxu0 0
      %3831 = vmatprep.subr.bf16.mxu0 0
      %3832 = vmatpush1.bf16.msra.mxu0 0
      %3833 = vmatprep.subr.bf16.mxu0 0
      %3834 = vmatpush1.bf16.msra.mxu0 0
      %3835 = vmatprep.subr.bf16.mxu0 0
      %3836 = vmatpush1.bf16.msra.mxu0 0
      %3837 = vmatprep.subr.bf16.mxu0 0
      %3838 = vmatpush1.bf16.msra.mxu0 0
      %3839 = vmatprep.subr.bf16.mxu0 0
      %3840 = vmatpush1.bf16.msra.mxu0 0
      %3841 = vmatprep.mubr.bf16.mxu0 0
      %3842 = vmatmul.mubr.bf16.gmra.mrb[0].mxu0 %v2454
      %v3843 = vpop.f32.mrb[0].mxu0
      %v3844 = vadd.f32 0.0, %v3843
      %v3845 = vpop.f32.mrb[0].mxu0
      %v3846 = vadd.f32 0.0, %v3845
      %v3847 = vpop.f32.mrb[0].mxu0
      %v3848 = vpop.f32.mrb[0].mxu0
      %3849 = vdwg.mxu0
      %3850 = vmatprep.subr.bf16.mxu0 %v1753
      %3851 = vmatpush1.bf16.msra.mxu0 %v1752
      %3852 = vmatprep.subr.bf16.mxu0 %v1881
      %3853 = vmatpush1.bf16.msra.mxu0 %v1880
      %3854 = vmatprep.subr.bf16.mxu0 %v2009
      %3855 = vmatpush1.bf16.msra.mxu0 %v2008
      %3856 = vmatprep.subr.bf16.mxu0 0
      %3857 = vmatpush1.bf16.msra.mxu0 0
      %3858 = vmatprep.subr.bf16.mxu0 0
      %3859 = vmatpush1.bf16.msra.mxu0 0
      %3860 = vmatprep.subr.bf16.mxu0 0
      %3861 = vmatpush1.bf16.msra.mxu0 0
      %3862 = vmatprep.subr.bf16.mxu0 0
      %3863 = vmatpush1.bf16.msra.mxu0 0
      %3864 = vmatprep.subr.bf16.mxu0 0
      %3865 = vmatpush1.bf16.msra.mxu0 0
      %3866 = vmatprep.subr.bf16.mxu0 0
      %3867 = vmatpush1.bf16.msra.mxu0 0
      %3868 = vmatprep.subr.bf16.mxu0 0
      %3869 = vmatpush1.bf16.msra.mxu0 0
      %3870 = vmatprep.subr.bf16.mxu0 0
      %3871 = vmatpush1.bf16.msra.mxu0 0
      %3872 = vmatprep.subr.bf16.mxu0 0
      %3873 = vmatpush1.bf16.msra.mxu0 0
      %3874 = vmatprep.subr.bf16.mxu0 0
      %3875 = vmatpush1.bf16.msra.mxu0 0
      %3876 = vmatprep.subr.bf16.mxu0 0
      %3877 = vmatpush1.bf16.msra.mxu0 0
      %3878 = vmatprep.subr.bf16.mxu0 0
      %3879 = vmatpush1.bf16.msra.mxu0 0
      %3880 = vmatprep.subr.bf16.mxu0 0
      %3881 = vmatpush1.bf16.msra.mxu0 0
      %3882 = vmatprep.mubr.bf16.mxu0 0
      %3883 = vmatmul.mubr.bf16.gmra.mrb[0].mxu0 %v2454
      %v3884 = vpop.f32.mrb[0].mxu0
      %v3885 = vadd.f32 0.0, %v3884
      %v3886 = vpop.f32.mrb[0].mxu0
      %v3887 = vadd.f32 0.0, %v3886
      %v3888 = vpop.f32.mrb[0].mxu0
      %v3889 = vpop.f32.mrb[0].mxu0
      %3890 = vdwg.mxu0
      %3891 = vmatprep.subr.bf16.mxu0 %v1755
      %3892 = vmatpush1.bf16.msra.mxu0 %v1754
      %3893 = vmatprep.subr.bf16.mxu0 %v1883
      %3894 = vmatpush1.bf16.msra.mxu0 %v1882
      %3895 = vmatprep.subr.bf16.mxu0 %v2011
      %3896 = vmatpush1.bf16.msra.mxu0 %v2010
      %3897 = vmatprep.subr.bf16.mxu0 0
      %3898 = vmatpush1.bf16.msra.mxu0 0
      %3899 = vmatprep.subr.bf16.mxu0 0
      %3900 = vmatpush1.bf16.msra.mxu0 0
      %3901 = vmatprep.subr.bf16.mxu0 0
      %3902 = vmatpush1.bf16.msra.mxu0 0
      %3903 = vmatprep.subr.bf16.mxu0 0
      %3904 = vmatpush1.bf16.msra.mxu0 0
      %3905 = vmatprep.subr.bf16.mxu0 0
      %3906 = vmatpush1.bf16.msra.mxu0 0
      %3907 = vmatprep.subr.bf16.mxu0 0
      %3908 = vmatpush1.bf16.msra.mxu0 0
      %3909 = vmatprep.subr.bf16.mxu0 0
      %3910 = vmatpush1.bf16.msra.mxu0 0
      %3911 = vmatprep.subr.bf16.mxu0 0
      %3912 = vmatpush1.bf16.msra.mxu0 0
      %3913 = vmatprep.subr.bf16.mxu0 0
      %3914 = vmatpush1.bf16.msra.mxu0 0
      %3915 = vmatprep.subr.bf16.mxu0 0
      %3916 = vmatpush1.bf16.msra.mxu0 0
      %3917 = vmatprep.subr.bf16.mxu0 0
      %3918 = vmatpush1.bf16.msra.mxu0 0
      %3919 = vmatprep.subr.bf16.mxu0 0
      %3920 = vmatpush1.bf16.msra.mxu0 0
      %3921 = vmatprep.subr.bf16.mxu0 0
      %3922 = vmatpush1.bf16.msra.mxu0 0
      %3923 = vmatprep.mubr.bf16.mxu0 0
      %3924 = vmatmul.mubr.bf16.gmra.mrb[0].mxu0 %v2454
      %v3925 = vpop.f32.mrb[0].mxu0
      %v3926 = vadd.f32 0.0, %v3925
      %v3927 = vpop.f32.mrb[0].mxu0
      %v3928 = vadd.f32 0.0, %v3927
      %v3929 = vpop.f32.mrb[0].mxu0
      %v3930 = vpop.f32.mrb[0].mxu0
      %3931 = vdwg.mxu0
      %3932 = vmatprep.subr.bf16.mxu0 %v1757
      %3933 = vmatpush1.bf16.msra.mxu0 %v1756
      %3934 = vmatprep.subr.bf16.mxu0 %v1885
      %3935 = vmatpush1.bf16.msra.mxu0 %v1884
      %3936 = vmatprep.subr.bf16.mxu0 %v2013
      %3937 = vmatpush1.bf16.msra.mxu0 %v2012
      %3938 = vmatprep.subr.bf16.mxu0 0
      %3939 = vmatpush1.bf16.msra.mxu0 0
      %3940 = vmatprep.subr.bf16.mxu0 0
      %3941 = vmatpush1.bf16.msra.mxu0 0
      %3942 = vmatprep.subr.bf16.mxu0 0
      %3943 = vmatpush1.bf16.msra.mxu0 0
      %3944 = vmatprep.subr.bf16.mxu0 0
      %3945 = vmatpush1.bf16.msra.mxu0 0
      %3946 = vmatprep.subr.bf16.mxu0 0
      %3947 = vmatpush1.bf16.msra.mxu0 0
      %3948 = vmatprep.subr.bf16.mxu0 0
      %3949 = vmatpush1.bf16.msra.mxu0 0
      %3950 = vmatprep.subr.bf16.mxu0 0
      %3951 = vmatpush1.bf16.msra.mxu0 0
      %3952 = vmatprep.subr.bf16.mxu0 0
      %3953 = vmatpush1.bf16.msra.mxu0 0
      %3954 = vmatprep.subr.bf16.mxu0 0
      %3955 = vmatpush1.bf16.msra.mxu0 0
      %3956 = vmatprep.subr.bf16.mxu0 0
      %3957 = vmatpush1.bf16.msra.mxu0 0
      %3958 = vmatprep.subr.bf16.mxu0 0
      %3959 = vmatpush1.bf16.msra.mxu0 0
      %3960 = vmatprep.subr.bf16.mxu0 0
      %3961 = vmatpush1.bf16.msra.mxu0 0
      %3962 = vmatprep.subr.bf16.mxu0 0
      %3963 = vmatpush1.bf16.msra.mxu0 0
      %3964 = vmatprep.mubr.bf16.mxu0 0
      %3965 = vmatmul.mubr.bf16.gmra.mrb[0].mxu0 %v2454
      %v3966 = vpop.f32.mrb[0].mxu0
      %v3967 = vadd.f32 0.0, %v3966
      %v3968 = vpop.f32.mrb[0].mxu0
      %v3969 = vadd.f32 0.0, %v3968
      %v3970 = vpop.f32.mrb[0].mxu0
      %v3971 = vpop.f32.mrb[0].mxu0
      %3972 = vdwg.mxu0
      %3973 = vmatprep.subr.bf16.mxu0 %v1759
      %3974 = vmatpush1.bf16.msra.mxu0 %v1758
      %3975 = vmatprep.subr.bf16.mxu0 %v1887
      %3976 = vmatpush1.bf16.msra.mxu0 %v1886
      %3977 = vmatprep.subr.bf16.mxu0 %v2015
      %3978 = vmatpush1.bf16.msra.mxu0 %v2014
      %3979 = vmatprep.subr.bf16.mxu0 0
      %3980 = vmatpush1.bf16.msra.mxu0 0
      %3981 = vmatprep.subr.bf16.mxu0 0
      %3982 = vmatpush1.bf16.msra.mxu0 0
      %3983 = vmatprep.subr.bf16.mxu0 0
      %3984 = vmatpush1.bf16.msra.mxu0 0
      %3985 = vmatprep.subr.bf16.mxu0 0
      %3986 = vmatpush1.bf16.msra.mxu0 0
      %3987 = vmatprep.subr.bf16.mxu0 0
      %3988 = vmatpush1.bf16.msra.mxu0 0
      %3989 = vmatprep.subr.bf16.mxu0 0
      %3990 = vmatpush1.bf16.msra.mxu0 0
      %3991 = vmatprep.subr.bf16.mxu0 0
      %3992 = vmatpush1.bf16.msra.mxu0 0
      %3993 = vmatprep.subr.bf16.mxu0 0
      %3994 = vmatpush1.bf16.msra.mxu0 0
      %3995 = vmatprep.subr.bf16.mxu0 0
      %3996 = vmatpush1.bf16.msra.mxu0 0
      %3997 = vmatprep.subr.bf16.mxu0 0
      %3998 = vmatpush1.bf16.msra.mxu0 0
      %3999 = vmatprep.subr.bf16.mxu0 0
      %4000 = vmatpush1.bf16.msra.mxu0 0
      %4001 = vmatprep.subr.bf16.mxu0 0
      %4002 = vmatpush1.bf16.msra.mxu0 0
      %4003 = vmatprep.subr.bf16.mxu0 0
      %4004 = vmatpush1.bf16.msra.mxu0 0
      %4005 = vmatprep.mubr.bf16.mxu0 0
      %4006 = vmatmul.mubr.bf16.gmra.mrb[0].mxu0 %v2454
      %v4007 = vpop.f32.mrb[0].mxu0
      %v4008 = vadd.f32 0.0, %v4007
      %v4009 = vpop.f32.mrb[0].mxu0
      %v4010 = vadd.f32 0.0, %v4009
      %v4011 = vpop.f32.mrb[0].mxu0
      %v4012 = vpop.f32.mrb[0].mxu0
      %4013 = vdwg.mxu0
      %4014 = vmatprep.subr.bf16.mxu0 %v1761
      %4015 = vmatpush1.bf16.msra.mxu0 %v1760
      %4016 = vmatprep.subr.bf16.mxu0 %v1889
      %4017 = vmatpush1.bf16.msra.mxu0 %v1888
      %4018 = vmatprep.subr.bf16.mxu0 %v2017
      %4019 = vmatpush1.bf16.msra.mxu0 %v2016
      %4020 = vmatprep.subr.bf16.mxu0 0
      %4021 = vmatpush1.bf16.msra.mxu0 0
      %4022 = vmatprep.subr.bf16.mxu0 0
      %4023 = vmatpush1.bf16.msra.mxu0 0
      %4024 = vmatprep.subr.bf16.mxu0 0
      %4025 = vmatpush1.bf16.msra.mxu0 0
      %4026 = vmatprep.subr.bf16.mxu0 0
      %4027 = vmatpush1.bf16.msra.mxu0 0
      %4028 = vmatprep.subr.bf16.mxu0 0
      %4029 = vmatpush1.bf16.msra.mxu0 0
      %4030 = vmatprep.subr.bf16.mxu0 0
      %4031 = vmatpush1.bf16.msra.mxu0 0
      %4032 = vmatprep.subr.bf16.mxu0 0
      %4033 = vmatpush1.bf16.msra.mxu0 0
      %4034 = vmatprep.subr.bf16.mxu0 0
      %4035 = vmatpush1.bf16.msra.mxu0 0
      %4036 = vmatprep.subr.bf16.mxu0 0
      %4037 = vmatpush1.bf16.msra.mxu0 0
      %4038 = vmatprep.subr.bf16.mxu0 0
      %4039 = vmatpush1.bf16.msra.mxu0 0
      %4040 = vmatprep.subr.bf16.mxu0 0
      %4041 = vmatpush1.bf16.msra.mxu0 0
      %4042 = vmatprep.subr.bf16.mxu0 0
      %4043 = vmatpush1.bf16.msra.mxu0 0
      %4044 = vmatprep.subr.bf16.mxu0 0
      %4045 = vmatpush1.bf16.msra.mxu0 0
      %4046 = vmatprep.mubr.bf16.mxu0 0
      %4047 = vmatmul.mubr.bf16.gmra.mrb[0].mxu0 %v2454
      %v4048 = vpop.f32.mrb[0].mxu0
      %v4049 = vadd.f32 0.0, %v4048
      %v4050 = vpop.f32.mrb[0].mxu0
      %v4051 = vadd.f32 0.0, %v4050
      %v4052 = vpop.f32.mrb[0].mxu0
      %v4053 = vpop.f32.mrb[0].mxu0
      %4054 = vdwg.mxu0
      %4055 = vmatprep.subr.bf16.mxu0 %v1763
      %4056 = vmatpush1.bf16.msra.mxu0 %v1762
      %4057 = vmatprep.subr.bf16.mxu0 %v1891
      %4058 = vmatpush1.bf16.msra.mxu0 %v1890
      %4059 = vmatprep.subr.bf16.mxu0 %v2019
      %4060 = vmatpush1.bf16.msra.mxu0 %v2018
      %4061 = vmatprep.subr.bf16.mxu0 0
      %4062 = vmatpush1.bf16.msra.mxu0 0
      %4063 = vmatprep.subr.bf16.mxu0 0
      %4064 = vmatpush1.bf16.msra.mxu0 0
      %4065 = vmatprep.subr.bf16.mxu0 0
      %4066 = vmatpush1.bf16.msra.mxu0 0
      %4067 = vmatprep.subr.bf16.mxu0 0
      %4068 = vmatpush1.bf16.msra.mxu0 0
      %4069 = vmatprep.subr.bf16.mxu0 0
      %4070 = vmatpush1.bf16.msra.mxu0 0
      %4071 = vmatprep.subr.bf16.mxu0 0
      %4072 = vmatpush1.bf16.msra.mxu0 0
      %4073 = vmatprep.subr.bf16.mxu0 0
      %4074 = vmatpush1.bf16.msra.mxu0 0
      %4075 = vmatprep.subr.bf16.mxu0 0
      %4076 = vmatpush1.bf16.msra.mxu0 0
      %4077 = vmatprep.subr.bf16.mxu0 0
      %4078 = vmatpush1.bf16.msra.mxu0 0
      %4079 = vmatprep.subr.bf16.mxu0 0
      %4080 = vmatpush1.bf16.msra.mxu0 0
      %4081 = vmatprep.subr.bf16.mxu0 0
      %4082 = vmatpush1.bf16.msra.mxu0 0
      %4083 = vmatprep.subr.bf16.mxu0 0
      %4084 = vmatpush1.bf16.msra.mxu0 0
      %4085 = vmatprep.subr.bf16.mxu0 0
      %4086 = vmatpush1.bf16.msra.mxu0 0
      %4087 = vmatprep.mubr.bf16.mxu0 0
      %4088 = vmatmul.mubr.bf16.gmra.mrb[0].mxu0 %v2454
      %v4089 = vpop.f32.mrb[0].mxu0
      %v4090 = vadd.f32 0.0, %v4089
      %v4091 = vpop.f32.mrb[0].mxu0
      %v4092 = vadd.f32 0.0, %v4091
      %v4093 = vpop.f32.mrb[0].mxu0
      %v4094 = vpop.f32.mrb[0].mxu0
      %4095 = vdwg.mxu0
      %4096 = vmatprep.subr.bf16.mxu0 %v1765
      %4097 = vmatpush1.bf16.msra.mxu0 %v1764
      %4098 = vmatprep.subr.bf16.mxu0 %v1893
      %4099 = vmatpush1.bf16.msra.mxu0 %v1892
      %4100 = vmatprep.subr.bf16.mxu0 %v2021
      %4101 = vmatpush1.bf16.msra.mxu0 %v2020
      %4102 = vmatprep.subr.bf16.mxu0 0
      %4103 = vmatpush1.bf16.msra.mxu0 0
      %4104 = vmatprep.subr.bf16.mxu0 0
      %4105 = vmatpush1.bf16.msra.mxu0 0
      %4106 = vmatprep.subr.bf16.mxu0 0
      %4107 = vmatpush1.bf16.msra.mxu0 0
      %4108 = vmatprep.subr.bf16.mxu0 0
      %4109 = vmatpush1.bf16.msra.mxu0 0
      %4110 = vmatprep.subr.bf16.mxu0 0
      %4111 = vmatpush1.bf16.msra.mxu0 0
      %4112 = vmatprep.subr.bf16.mxu0 0
      %4113 = vmatpush1.bf16.msra.mxu0 0
      %4114 = vmatprep.subr.bf16.mxu0 0
      %4115 = vmatpush1.bf16.msra.mxu0 0
      %4116 = vmatprep.subr.bf16.mxu0 0
      %4117 = vmatpush1.bf16.msra.mxu0 0
      %4118 = vmatprep.subr.bf16.mxu0 0
      %4119 = vmatpush1.bf16.msra.mxu0 0
      %4120 = vmatprep.subr.bf16.mxu0 0
      %4121 = vmatpush1.bf16.msra.mxu0 0
      %4122 = vmatprep.subr.bf16.mxu0 0
      %4123 = vmatpush1.bf16.msra.mxu0 0
      %4124 = vmatprep.subr.bf16.mxu0 0
      %4125 = vmatpush1.bf16.msra.mxu0 0
      %4126 = vmatprep.subr.bf16.mxu0 0
      %4127 = vmatpush1.bf16.msra.mxu0 0
      %4128 = vmatprep.mubr.bf16.mxu0 0
      %4129 = vmatmul.mubr.bf16.gmra.mrb[0].mxu0 %v2454
      %v4130 = vpop.f32.mrb[0].mxu0
      %v4131 = vadd.f32 0.0, %v4130
      %v4132 = vpop.f32.mrb[0].mxu0
      %v4133 = vadd.f32 0.0, %v4132
      %v4134 = vpop.f32.mrb[0].mxu0
      %v4135 = vpop.f32.mrb[0].mxu0
      %4136 = vdwg.mxu0
      %4137 = vmatprep.subr.bf16.mxu0 %v1767
      %4138 = vmatpush1.bf16.msra.mxu0 %v1766
      %4139 = vmatprep.subr.bf16.mxu0 %v1895
      %4140 = vmatpush1.bf16.msra.mxu0 %v1894
      %4141 = vmatprep.subr.bf16.mxu0 %v2023
      %4142 = vmatpush1.bf16.msra.mxu0 %v2022
      %4143 = vmatprep.subr.bf16.mxu0 0
      %4144 = vmatpush1.bf16.msra.mxu0 0
      %4145 = vmatprep.subr.bf16.mxu0 0
      %4146 = vmatpush1.bf16.msra.mxu0 0
      %4147 = vmatprep.subr.bf16.mxu0 0
      %4148 = vmatpush1.bf16.msra.mxu0 0
      %4149 = vmatprep.subr.bf16.mxu0 0
      %4150 = vmatpush1.bf16.msra.mxu0 0
      %4151 = vmatprep.subr.bf16.mxu0 0
      %4152 = vmatpush1.bf16.msra.mxu0 0
      %4153 = vmatprep.subr.bf16.mxu0 0
      %4154 = vmatpush1.bf16.msra.mxu0 0
      %4155 = vmatprep.subr.bf16.mxu0 0
      %4156 = vmatpush1.bf16.msra.mxu0 0
      %4157 = vmatprep.subr.bf16.mxu0 0
      %4158 = vmatpush1.bf16.msra.mxu0 0
      %4159 = vmatprep.subr.bf16.mxu0 0
      %4160 = vmatpush1.bf16.msra.mxu0 0
      %4161 = vmatprep.subr.bf16.mxu0 0
      %4162 = vmatpush1.bf16.msra.mxu0 0
      %4163 = vmatprep.subr.bf16.mxu0 0
      %4164 = vmatpush1.bf16.msra.mxu0 0
      %4165 = vmatprep.subr.bf16.mxu0 0
      %4166 = vmatpush1.bf16.msra.mxu0 0
      %4167 = vmatprep.subr.bf16.mxu0 0
      %4168 = vmatpush1.bf16.msra.mxu0 0
      %4169 = vmatprep.mubr.bf16.mxu0 0
      %4170 = vmatmul.mubr.bf16.gmra.mrb[0].mxu0 %v2454
      %v4171 = vpop.f32.mrb[0].mxu0
      %v4172 = vadd.f32 0.0, %v4171
      %v4173 = vpop.f32.mrb[0].mxu0
      %v4174 = vadd.f32 0.0, %v4173
      %v4175 = vpop.f32.mrb[0].mxu0
      %v4176 = vpop.f32.mrb[0].mxu0
      %4177 = vdwg.mxu0
      %4178 = vmatprep.subr.bf16.mxu0 %v1769
      %4179 = vmatpush1.bf16.msra.mxu0 %v1768
      %4180 = vmatprep.subr.bf16.mxu0 %v1897
      %4181 = vmatpush1.bf16.msra.mxu0 %v1896
      %4182 = vmatprep.subr.bf16.mxu0 %v2025
      %4183 = vmatpush1.bf16.msra.mxu0 %v2024
      %4184 = vmatprep.subr.bf16.mxu0 0
      %4185 = vmatpush1.bf16.msra.mxu0 0
      %4186 = vmatprep.subr.bf16.mxu0 0
      %4187 = vmatpush1.bf16.msra.mxu0 0
      %4188 = vmatprep.subr.bf16.mxu0 0
      %4189 = vmatpush1.bf16.msra.mxu0 0
      %4190 = vmatprep.subr.bf16.mxu0 0
      %4191 = vmatpush1.bf16.msra.mxu0 0
      %4192 = vmatprep.subr.bf16.mxu0 0
      %4193 = vmatpush1.bf16.msra.mxu0 0
      %4194 = vmatprep.subr.bf16.mxu0 0
      %4195 = vmatpush1.bf16.msra.mxu0 0
      %4196 = vmatprep.subr.bf16.mxu0 0
      %4197 = vmatpush1.bf16.msra.mxu0 0
      %4198 = vmatprep.subr.bf16.mxu0 0
      %4199 = vmatpush1.bf16.msra.mxu0 0
      %4200 = vmatprep.subr.bf16.mxu0 0
      %4201 = vmatpush1.bf16.msra.mxu0 0
      %4202 = vmatprep.subr.bf16.mxu0 0
      %4203 = vmatpush1.bf16.msra.mxu0 0
      %4204 = vmatprep.subr.bf16.mxu0 0
      %4205 = vmatpush1.bf16.msra.mxu0 0
      %4206 = vmatprep.subr.bf16.mxu0 0
      %4207 = vmatpush1.bf16.msra.mxu0 0
      %4208 = vmatprep.subr.bf16.mxu0 0
      %4209 = vmatpush1.bf16.msra.mxu0 0
      %4210 = vmatprep.mubr.bf16.mxu0 0
      %4211 = vmatmul.mubr.bf16.gmra.mrb[0].mxu0 %v2454
      %v4212 = vpop.f32.mrb[0].mxu0
      %v4213 = vadd.f32 0.0, %v4212
      %v4214 = vpop.f32.mrb[0].mxu0
      %v4215 = vadd.f32 0.0, %v4214
      %v4216 = vpop.f32.mrb[0].mxu0
      %v4217 = vpop.f32.mrb[0].mxu0
      %4218 = vdwg.mxu0
      %4219 = vmatprep.subr.bf16.mxu0 %v1771
      %4220 = vmatpush1.bf16.msra.mxu0 %v1770
      %4221 = vmatprep.subr.bf16.mxu0 %v1899
      %4222 = vmatpush1.bf16.msra.mxu0 %v1898
      %4223 = vmatprep.subr.bf16.mxu0 %v2027
      %4224 = vmatpush1.bf16.msra.mxu0 %v2026
      %4225 = vmatprep.subr.bf16.mxu0 0
      %4226 = vmatpush1.bf16.msra.mxu0 0
      %4227 = vmatprep.subr.bf16.mxu0 0
      %4228 = vmatpush1.bf16.msra.mxu0 0
      %4229 = vmatprep.subr.bf16.mxu0 0
      %4230 = vmatpush1.bf16.msra.mxu0 0
      %4231 = vmatprep.subr.bf16.mxu0 0
      %4232 = vmatpush1.bf16.msra.mxu0 0
      %4233 = vmatprep.subr.bf16.mxu0 0
      %4234 = vmatpush1.bf16.msra.mxu0 0
      %4235 = vmatprep.subr.bf16.mxu0 0
      %4236 = vmatpush1.bf16.msra.mxu0 0
      %4237 = vmatprep.subr.bf16.mxu0 0
      %4238 = vmatpush1.bf16.msra.mxu0 0
      %4239 = vmatprep.subr.bf16.mxu0 0
      %4240 = vmatpush1.bf16.msra.mxu0 0
      %4241 = vmatprep.subr.bf16.mxu0 0
      %4242 = vmatpush1.bf16.msra.mxu0 0
      %4243 = vmatprep.subr.bf16.mxu0 0
      %4244 = vmatpush1.bf16.msra.mxu0 0
      %4245 = vmatprep.subr.bf16.mxu0 0
      %4246 = vmatpush1.bf16.msra.mxu0 0
      %4247 = vmatprep.subr.bf16.mxu0 0
      %4248 = vmatpush1.bf16.msra.mxu0 0
      %4249 = vmatprep.subr.bf16.mxu0 0
      %4250 = vmatpush1.bf16.msra.mxu0 0
      %4251 = vmatprep.mubr.bf16.mxu0 0
      %4252 = vmatmul.mubr.bf16.gmra.mrb[0].mxu0 %v2454
      %v4253 = vpop.f32.mrb[0].mxu0
      %v4254 = vadd.f32 0.0, %v4253
      %v4255 = vpop.f32.mrb[0].mxu0
      %v4256 = vadd.f32 0.0, %v4255
      %v4257 = vpop.f32.mrb[0].mxu0
      %v4258 = vpop.f32.mrb[0].mxu0
      %4259 = vdwg.mxu0
      %4260 = vmatprep.subr.bf16.mxu0 %v1773
      %4261 = vmatpush1.bf16.msra.mxu0 %v1772
      %4262 = vmatprep.subr.bf16.mxu0 %v1901
      %4263 = vmatpush1.bf16.msra.mxu0 %v1900
      %4264 = vmatprep.subr.bf16.mxu0 %v2029
      %4265 = vmatpush1.bf16.msra.mxu0 %v2028
      %4266 = vmatprep.subr.bf16.mxu0 0
      %4267 = vmatpush1.bf16.msra.mxu0 0
      %4268 = vmatprep.subr.bf16.mxu0 0
      %4269 = vmatpush1.bf16.msra.mxu0 0
      %4270 = vmatprep.subr.bf16.mxu0 0
      %4271 = vmatpush1.bf16.msra.mxu0 0
      %4272 = vmatprep.subr.bf16.mxu0 0
      %4273 = vmatpush1.bf16.msra.mxu0 0
      %4274 = vmatprep.subr.bf16.mxu0 0
      %4275 = vmatpush1.bf16.msra.mxu0 0
      %4276 = vmatprep.subr.bf16.mxu0 0
      %4277 = vmatpush1.bf16.msra.mxu0 0
      %4278 = vmatprep.subr.bf16.mxu0 0
      %4279 = vmatpush1.bf16.msra.mxu0 0
      %4280 = vmatprep.subr.bf16.mxu0 0
      %4281 = vmatpush1.bf16.msra.mxu0 0
      %4282 = vmatprep.subr.bf16.mxu0 0
      %4283 = vmatpush1.bf16.msra.mxu0 0
      %4284 = vmatprep.subr.bf16.mxu0 0
      %4285 = vmatpush1.bf16.msra.mxu0 0
      %4286 = vmatprep.subr.bf16.mxu0 0
      %4287 = vmatpush1.bf16.msra.mxu0 0
      %4288 = vmatprep.subr.bf16.mxu0 0
      %4289 = vmatpush1.bf16.msra.mxu0 0
      %4290 = vmatprep.subr.bf16.mxu0 0
      %4291 = vmatpush1.bf16.msra.mxu0 0
      %4292 = vmatprep.mubr.bf16.mxu0 0
      %4293 = vmatmul.mubr.bf16.gmra.mrb[0].mxu0 %v2454
      %v4294 = vpop.f32.mrb[0].mxu0
      %v4295 = vadd.f32 0.0, %v4294
      %v4296 = vpop.f32.mrb[0].mxu0
      %v4297 = vadd.f32 0.0, %v4296
      %v4298 = vpop.f32.mrb[0].mxu0
      %v4299 = vpop.f32.mrb[0].mxu0
      %4300 = vdwg.mxu0
      %4301 = vmatprep.subr.bf16.mxu0 %v1775
      %4302 = vmatpush1.bf16.msra.mxu0 %v1774
      %4303 = vmatprep.subr.bf16.mxu0 %v1903
      %4304 = vmatpush1.bf16.msra.mxu0 %v1902
      %4305 = vmatprep.subr.bf16.mxu0 %v2031
      %4306 = vmatpush1.bf16.msra.mxu0 %v2030
      %4307 = vmatprep.subr.bf16.mxu0 0
      %4308 = vmatpush1.bf16.msra.mxu0 0
      %4309 = vmatprep.subr.bf16.mxu0 0
      %4310 = vmatpush1.bf16.msra.mxu0 0
      %4311 = vmatprep.subr.bf16.mxu0 0
      %4312 = vmatpush1.bf16.msra.mxu0 0
      %4313 = vmatprep.subr.bf16.mxu0 0
      %4314 = vmatpush1.bf16.msra.mxu0 0
      %4315 = vmatprep.subr.bf16.mxu0 0
      %4316 = vmatpush1.bf16.msra.mxu0 0
      %4317 = vmatprep.subr.bf16.mxu0 0
      %4318 = vmatpush1.bf16.msra.mxu0 0
      %4319 = vmatprep.subr.bf16.mxu0 0
      %4320 = vmatpush1.bf16.msra.mxu0 0
      %4321 = vmatprep.subr.bf16.mxu0 0
      %4322 = vmatpush1.bf16.msra.mxu0 0
      %4323 = vmatprep.subr.bf16.mxu0 0
      %4324 = vmatpush1.bf16.msra.mxu0 0
      %4325 = vmatprep.subr.bf16.mxu0 0
      %4326 = vmatpush1.bf16.msra.mxu0 0
      %4327 = vmatprep.subr.bf16.mxu0 0
      %4328 = vmatpush1.bf16.msra.mxu0 0
      %4329 = vmatprep.subr.bf16.mxu0 0
      %4330 = vmatpush1.bf16.msra.mxu0 0
      %4331 = vmatprep.subr.bf16.mxu0 0
      %4332 = vmatpush1.bf16.msra.mxu0 0
      %4333 = vmatprep.mubr.bf16.mxu0 0
      %4334 = vmatmul.mubr.bf16.gmra.mrb[0].mxu0 %v2454
      %v4335 = vpop.f32.mrb[0].mxu0
      %v4336 = vadd.f32 0.0, %v4335
      %v4337 = vpop.f32.mrb[0].mxu0
      %v4338 = vadd.f32 0.0, %v4337
      %v4339 = vpop.f32.mrb[0].mxu0
      %v4340 = vpop.f32.mrb[0].mxu0
      %4341 = vdwg.mxu0
      %4342 = vmatprep.subr.bf16.mxu0 %v1777
      %4343 = vmatpush1.bf16.msra.mxu0 %v1776
      %4344 = vmatprep.subr.bf16.mxu0 %v1905
      %4345 = vmatpush1.bf16.msra.mxu0 %v1904
      %4346 = vmatprep.subr.bf16.mxu0 %v2033
      %4347 = vmatpush1.bf16.msra.mxu0 %v2032
      %4348 = vmatprep.subr.bf16.mxu0 0
      %4349 = vmatpush1.bf16.msra.mxu0 0
      %4350 = vmatprep.subr.bf16.mxu0 0
      %4351 = vmatpush1.bf16.msra.mxu0 0
      %4352 = vmatprep.subr.bf16.mxu0 0
      %4353 = vmatpush1.bf16.msra.mxu0 0
      %4354 = vmatprep.subr.bf16.mxu0 0
      %4355 = vmatpush1.bf16.msra.mxu0 0
      %4356 = vmatprep.subr.bf16.mxu0 0
      %4357 = vmatpush1.bf16.msra.mxu0 0
      %4358 = vmatprep.subr.bf16.mxu0 0
      %4359 = vmatpush1.bf16.msra.mxu0 0
      %4360 = vmatprep.subr.bf16.mxu0 0
      %4361 = vmatpush1.bf16.msra.mxu0 0
      %4362 = vmatprep.subr.bf16.mxu0 0
      %4363 = vmatpush1.bf16.msra.mxu0 0
      %4364 = vmatprep.subr.bf16.mxu0 0
      %4365 = vmatpush1.bf16.msra.mxu0 0
      %4366 = vmatprep.subr.bf16.mxu0 0
      %4367 = vmatpush1.bf16.msra.mxu0 0
      %4368 = vmatprep.subr.bf16.mxu0 0
      %4369 = vmatpush1.bf16.msra.mxu0 0
      %4370 = vmatprep.subr.bf16.mxu0 0
      %4371 = vmatpush1.bf16.msra.mxu0 0
      %4372 = vmatprep.subr.bf16.mxu0 0
      %4373 = vmatpush1.bf16.msra.mxu0 0
      %4374 = vmatprep.mubr.bf16.mxu0 0
      %4375 = vmatmul.mubr.bf16.gmra.mrb[0].mxu0 %v2454
      %v4376 = vpop.f32.mrb[0].mxu0
      %v4377 = vadd.f32 0.0, %v4376
      %v4378 = vpop.f32.mrb[0].mxu0
      %v4379 = vadd.f32 0.0, %v4378
      %v4380 = vpop.f32.mrb[0].mxu0
      %v4381 = vpop.f32.mrb[0].mxu0
      %4382 = vdwg.mxu0
      %4383 = vmatprep.subr.bf16.mxu0 %v1779
      %4384 = vmatpush1.bf16.msra.mxu0 %v1778
      %4385 = vmatprep.subr.bf16.mxu0 %v1907
      %4386 = vmatpush1.bf16.msra.mxu0 %v1906
      %4387 = vmatprep.subr.bf16.mxu0 %v2035
      %4388 = vmatpush1.bf16.msra.mxu0 %v2034
      %4389 = vmatprep.subr.bf16.mxu0 0
      %4390 = vmatpush1.bf16.msra.mxu0 0
      %4391 = vmatprep.subr.bf16.mxu0 0
      %4392 = vmatpush1.bf16.msra.mxu0 0
      %4393 = vmatprep.subr.bf16.mxu0 0
      %4394 = vmatpush1.bf16.msra.mxu0 0
      %4395 = vmatprep.subr.bf16.mxu0 0
      %4396 = vmatpush1.bf16.msra.mxu0 0
      %4397 = vmatprep.subr.bf16.mxu0 0
      %4398 = vmatpush1.bf16.msra.mxu0 0
      %4399 = vmatprep.subr.bf16.mxu0 0
      %4400 = vmatpush1.bf16.msra.mxu0 0
      %4401 = vmatprep.subr.bf16.mxu0 0
      %4402 = vmatpush1.bf16.msra.mxu0 0
      %4403 = vmatprep.subr.bf16.mxu0 0
      %4404 = vmatpush1.bf16.msra.mxu0 0
      %4405 = vmatprep.subr.bf16.mxu0 0
      %4406 = vmatpush1.bf16.msra.mxu0 0
      %4407 = vmatprep.subr.bf16.mxu0 0
      %4408 = vmatpush1.bf16.msra.mxu0 0
      %4409 = vmatprep.subr.bf16.mxu0 0
      %4410 = vmatpush1.bf16.msra.mxu0 0
      %4411 = vmatprep.subr.bf16.mxu0 0
      %4412 = vmatpush1.bf16.msra.mxu0 0
      %4413 = vmatprep.subr.bf16.mxu0 0
      %4414 = vmatpush1.bf16.msra.mxu0 0
      %4415 = vmatprep.mubr.bf16.mxu0 0
      %4416 = vmatmul.mubr.bf16.gmra.mrb[0].mxu0 %v2454
      %v4417 = vpop.f32.mrb[0].mxu0
      %v4418 = vadd.f32 0.0, %v4417
      %v4419 = vpop.f32.mrb[0].mxu0
      %v4420 = vadd.f32 0.0, %v4419
      %v4421 = vpop.f32.mrb[0].mxu0
      %v4422 = vpop.f32.mrb[0].mxu0
      %4423 = vdwg.mxu0
      %4424 = vmatprep.subr.bf16.mxu0 %v1781
      %4425 = vmatpush1.bf16.msra.mxu0 %v1780
      %4426 = vmatprep.subr.bf16.mxu0 %v1909
      %4427 = vmatpush1.bf16.msra.mxu0 %v1908
      %4428 = vmatprep.subr.bf16.mxu0 %v2037
      %4429 = vmatpush1.bf16.msra.mxu0 %v2036
      %4430 = vmatprep.subr.bf16.mxu0 0
      %4431 = vmatpush1.bf16.msra.mxu0 0
      %4432 = vmatprep.subr.bf16.mxu0 0
      %4433 = vmatpush1.bf16.msra.mxu0 0
      %4434 = vmatprep.subr.bf16.mxu0 0
      %4435 = vmatpush1.bf16.msra.mxu0 0
      %4436 = vmatprep.subr.bf16.mxu0 0
      %4437 = vmatpush1.bf16.msra.mxu0 0
      %4438 = vmatprep.subr.bf16.mxu0 0
      %4439 = vmatpush1.bf16.msra.mxu0 0
      %4440 = vmatprep.subr.bf16.mxu0 0
      %4441 = vmatpush1.bf16.msra.mxu0 0
      %4442 = vmatprep.subr.bf16.mxu0 0
      %4443 = vmatpush1.bf16.msra.mxu0 0
      %4444 = vmatprep.subr.bf16.mxu0 0
      %4445 = vmatpush1.bf16.msra.mxu0 0
      %4446 = vmatprep.subr.bf16.mxu0 0
      %4447 = vmatpush1.bf16.msra.mxu0 0
      %4448 = vmatprep.subr.bf16.mxu0 0
      %4449 = vmatpush1.bf16.msra.mxu0 0
      %4450 = vmatprep.subr.bf16.mxu0 0
      %4451 = vmatpush1.bf16.msra.mxu0 0
      %4452 = vmatprep.subr.bf16.mxu0 0
      %4453 = vmatpush1.bf16.msra.mxu0 0
      %4454 = vmatprep.subr.bf16.mxu0 0
      %4455 = vmatpush1.bf16.msra.mxu0 0
      %4456 = vmatprep.mubr.bf16.mxu0 0
      %4457 = vmatmul.mubr.bf16.gmra.mrb[0].mxu0 %v2454
      %v4458 = vpop.f32.mrb[0].mxu0
      %v4459 = vadd.f32 0.0, %v4458
      %v4460 = vpop.f32.mrb[0].mxu0
      %v4461 = vadd.f32 0.0, %v4460
      %v4462 = vpop.f32.mrb[0].mxu0
      %v4463 = vpop.f32.mrb[0].mxu0
      %4464 = vdwg.mxu0
      %4465 = vmatprep.subr.bf16.mxu0 %v1783
      %4466 = vmatpush1.bf16.msra.mxu0 %v1782
      %4467 = vmatprep.subr.bf16.mxu0 %v1911
      %4468 = vmatpush1.bf16.msra.mxu0 %v1910
      %4469 = vmatprep.subr.bf16.mxu0 %v2039
      %4470 = vmatpush1.bf16.msra.mxu0 %v2038
      %4471 = vmatprep.subr.bf16.mxu0 0
      %4472 = vmatpush1.bf16.msra.mxu0 0
      %4473 = vmatprep.subr.bf16.mxu0 0
      %4474 = vmatpush1.bf16.msra.mxu0 0
      %4475 = vmatprep.subr.bf16.mxu0 0
      %4476 = vmatpush1.bf16.msra.mxu0 0
      %4477 = vmatprep.subr.bf16.mxu0 0
      %4478 = vmatpush1.bf16.msra.mxu0 0
      %4479 = vmatprep.subr.bf16.mxu0 0
      %4480 = vmatpush1.bf16.msra.mxu0 0
      %4481 = vmatprep.subr.bf16.mxu0 0
      %4482 = vmatpush1.bf16.msra.mxu0 0
      %4483 = vmatprep.subr.bf16.mxu0 0
      %4484 = vmatpush1.bf16.msra.mxu0 0
      %4485 = vmatprep.subr.bf16.mxu0 0
      %4486 = vmatpush1.bf16.msra.mxu0 0
      %4487 = vmatprep.subr.bf16.mxu0 0
      %4488 = vmatpush1.bf16.msra.mxu0 0
      %4489 = vmatprep.subr.bf16.mxu0 0
      %4490 = vmatpush1.bf16.msra.mxu0 0
      %4491 = vmatprep.subr.bf16.mxu0 0
      %4492 = vmatpush1.bf16.msra.mxu0 0
      %4493 = vmatprep.subr.bf16.mxu0 0
      %4494 = vmatpush1.bf16.msra.mxu0 0
      %4495 = vmatprep.subr.bf16.mxu0 0
      %4496 = vmatpush1.bf16.msra.mxu0 0
      %4497 = vmatprep.mubr.bf16.mxu0 0
      %4498 = vmatmul.mubr.bf16.gmra.mrb[0].mxu0 %v2454
      %v4499 = vpop.f32.mrb[0].mxu0
      %v4500 = vadd.f32 0.0, %v4499
      %v4501 = vpop.f32.mrb[0].mxu0
      %v4502 = vadd.f32 0.0, %v4501
      %v4503 = vpop.f32.mrb[0].mxu0
      %v4504 = vpop.f32.mrb[0].mxu0
      %4505 = vdwg.mxu0
      %4506 = vmatprep.subr.bf16.mxu0 %v1785
      %4507 = vmatpush1.bf16.msra.mxu0 %v1784
      %4508 = vmatprep.subr.bf16.mxu0 %v1913
      %4509 = vmatpush1.bf16.msra.mxu0 %v1912
      %4510 = vmatprep.subr.bf16.mxu0 %v2041
      %4511 = vmatpush1.bf16.msra.mxu0 %v2040
      %4512 = vmatprep.subr.bf16.mxu0 0
      %4513 = vmatpush1.bf16.msra.mxu0 0
      %4514 = vmatprep.subr.bf16.mxu0 0
      %4515 = vmatpush1.bf16.msra.mxu0 0
      %4516 = vmatprep.subr.bf16.mxu0 0
      %4517 = vmatpush1.bf16.msra.mxu0 0
      %4518 = vmatprep.subr.bf16.mxu0 0
      %4519 = vmatpush1.bf16.msra.mxu0 0
      %4520 = vmatprep.subr.bf16.mxu0 0
      %4521 = vmatpush1.bf16.msra.mxu0 0
      %4522 = vmatprep.subr.bf16.mxu0 0
      %4523 = vmatpush1.bf16.msra.mxu0 0
      %4524 = vmatprep.subr.bf16.mxu0 0
      %4525 = vmatpush1.bf16.msra.mxu0 0
      %4526 = vmatprep.subr.bf16.mxu0 0
      %4527 = vmatpush1.bf16.msra.mxu0 0
      %4528 = vmatprep.subr.bf16.mxu0 0
      %4529 = vmatpush1.bf16.msra.mxu0 0
      %4530 = vmatprep.subr.bf16.mxu0 0
      %4531 = vmatpush1.bf16.msra.mxu0 0
      %4532 = vmatprep.subr.bf16.mxu0 0
      %4533 = vmatpush1.bf16.msra.mxu0 0
      %4534 = vmatprep.subr.bf16.mxu0 0
      %4535 = vmatpush1.bf16.msra.mxu0 0
      %4536 = vmatprep.subr.bf16.mxu0 0
      %4537 = vmatpush1.bf16.msra.mxu0 0
      %4538 = vmatprep.mubr.bf16.mxu0 0
      %4539 = vmatmul.mubr.bf16.gmra.mrb[0].mxu0 %v2454
      %v4540 = vpop.f32.mrb[0].mxu0
      %v4541 = vadd.f32 0.0, %v4540
      %v4542 = vpop.f32.mrb[0].mxu0
      %v4543 = vadd.f32 0.0, %v4542
      %v4544 = vpop.f32.mrb[0].mxu0
      %v4545 = vpop.f32.mrb[0].mxu0
      %4546 = vdwg.mxu0
      %4547 = vmatprep.subr.bf16.mxu0 %v1787
      %4548 = vmatpush1.bf16.msra.mxu0 %v1786
      %4549 = vmatprep.subr.bf16.mxu0 %v1915
      %4550 = vmatpush1.bf16.msra.mxu0 %v1914
      %4551 = vmatprep.subr.bf16.mxu0 %v2043
      %4552 = vmatpush1.bf16.msra.mxu0 %v2042
      %4553 = vmatprep.subr.bf16.mxu0 0
      %4554 = vmatpush1.bf16.msra.mxu0 0
      %4555 = vmatprep.subr.bf16.mxu0 0
      %4556 = vmatpush1.bf16.msra.mxu0 0
      %4557 = vmatprep.subr.bf16.mxu0 0
      %4558 = vmatpush1.bf16.msra.mxu0 0
      %4559 = vmatprep.subr.bf16.mxu0 0
      %4560 = vmatpush1.bf16.msra.mxu0 0
      %4561 = vmatprep.subr.bf16.mxu0 0
      %4562 = vmatpush1.bf16.msra.mxu0 0
      %4563 = vmatprep.subr.bf16.mxu0 0
      %4564 = vmatpush1.bf16.msra.mxu0 0
      %4565 = vmatprep.subr.bf16.mxu0 0
      %4566 = vmatpush1.bf16.msra.mxu0 0
      %4567 = vmatprep.subr.bf16.mxu0 0
      %4568 = vmatpush1.bf16.msra.mxu0 0
      %4569 = vmatprep.subr.bf16.mxu0 0
      %4570 = vmatpush1.bf16.msra.mxu0 0
      %4571 = vmatprep.subr.bf16.mxu0 0
      %4572 = vmatpush1.bf16.msra.mxu0 0
      %4573 = vmatprep.subr.bf16.mxu0 0
      %4574 = vmatpush1.bf16.msra.mxu0 0
      %4575 = vmatprep.subr.bf16.mxu0 0
      %4576 = vmatpush1.bf16.msra.mxu0 0
      %4577 = vmatprep.subr.bf16.mxu0 0
      %4578 = vmatpush1.bf16.msra.mxu0 0
      %4579 = vmatprep.mubr.bf16.mxu0 0
      %4580 = vmatmul.mubr.bf16.gmra.mrb[0].mxu0 %v2454
      %v4581 = vpop.f32.mrb[0].mxu0
      %v4582 = vadd.f32 0.0, %v4581
      %v4583 = vpop.f32.mrb[0].mxu0
      %v4584 = vadd.f32 0.0, %v4583
      %v4585 = vpop.f32.mrb[0].mxu0
      %v4586 = vpop.f32.mrb[0].mxu0
      %4587 = vdwg.mxu0
      %4588 = vmatprep.subr.bf16.mxu0 %v1789
      %4589 = vmatpush1.bf16.msra.mxu0 %v1788
      %4590 = vmatprep.subr.bf16.mxu0 %v1917
      %4591 = vmatpush1.bf16.msra.mxu0 %v1916
      %4592 = vmatprep.subr.bf16.mxu0 %v2045
      %4593 = vmatpush1.bf16.msra.mxu0 %v2044
      %4594 = vmatprep.subr.bf16.mxu0 0
      %4595 = vmatpush1.bf16.msra.mxu0 0
      %4596 = vmatprep.subr.bf16.mxu0 0
      %4597 = vmatpush1.bf16.msra.mxu0 0
      %4598 = vmatprep.subr.bf16.mxu0 0
      %4599 = vmatpush1.bf16.msra.mxu0 0
      %4600 = vmatprep.subr.bf16.mxu0 0
      %4601 = vmatpush1.bf16.msra.mxu0 0
      %4602 = vmatprep.subr.bf16.mxu0 0
      %4603 = vmatpush1.bf16.msra.mxu0 0
      %4604 = vmatprep.subr.bf16.mxu0 0
      %4605 = vmatpush1.bf16.msra.mxu0 0
      %4606 = vmatprep.subr.bf16.mxu0 0
      %4607 = vmatpush1.bf16.msra.mxu0 0
      %4608 = vmatprep.subr.bf16.mxu0 0
      %4609 = vmatpush1.bf16.msra.mxu0 0
      %4610 = vmatprep.subr.bf16.mxu0 0
      %4611 = vmatpush1.bf16.msra.mxu0 0
      %4612 = vmatprep.subr.bf16.mxu0 0
      %4613 = vmatpush1.bf16.msra.mxu0 0
      %4614 = vmatprep.subr.bf16.mxu0 0
      %4615 = vmatpush1.bf16.msra.mxu0 0
      %4616 = vmatprep.subr.bf16.mxu0 0
      %4617 = vmatpush1.bf16.msra.mxu0 0
      %4618 = vmatprep.subr.bf16.mxu0 0
      %4619 = vmatpush1.bf16.msra.mxu0 0
      %4620 = vmatprep.mubr.bf16.mxu0 0
      %4621 = vmatmul.mubr.bf16.gmra.mrb[0].mxu0 %v2454
      %v4622 = vpop.f32.mrb[0].mxu0
      %v4623 = vadd.f32 0.0, %v4622
      %v4624 = vpop.f32.mrb[0].mxu0
      %v4625 = vadd.f32 0.0, %v4624
      %v4626 = vpop.f32.mrb[0].mxu0
      %v4627 = vpop.f32.mrb[0].mxu0
      %4628 = vdwg.mxu0
      %4629 = vmatprep.subr.bf16.mxu0 %v1791
      %4630 = vmatpush1.bf16.msra.mxu0 %v1790
      %4631 = vmatprep.subr.bf16.mxu0 %v1919
      %4632 = vmatpush1.bf16.msra.mxu0 %v1918
      %4633 = vmatprep.subr.bf16.mxu0 %v2047
      %4634 = vmatpush1.bf16.msra.mxu0 %v2046
      %4635 = vmatprep.subr.bf16.mxu0 0
      %4636 = vmatpush1.bf16.msra.mxu0 0
      %4637 = vmatprep.subr.bf16.mxu0 0
      %4638 = vmatpush1.bf16.msra.mxu0 0
      %4639 = vmatprep.subr.bf16.mxu0 0
      %4640 = vmatpush1.bf16.msra.mxu0 0
      %4641 = vmatprep.subr.bf16.mxu0 0
      %4642 = vmatpush1.bf16.msra.mxu0 0
      %4643 = vmatprep.subr.bf16.mxu0 0
      %4644 = vmatpush1.bf16.msra.mxu0 0
      %4645 = vmatprep.subr.bf16.mxu0 0
      %4646 = vmatpush1.bf16.msra.mxu0 0
      %4647 = vmatprep.subr.bf16.mxu0 0
      %4648 = vmatpush1.bf16.msra.mxu0 0
      %4649 = vmatprep.subr.bf16.mxu0 0
      %4650 = vmatpush1.bf16.msra.mxu0 0
      %4651 = vmatprep.subr.bf16.mxu0 0
      %4652 = vmatpush1.bf16.msra.mxu0 0
      %4653 = vmatprep.subr.bf16.mxu0 0
      %4654 = vmatpush1.bf16.msra.mxu0 0
      %4655 = vmatprep.subr.bf16.mxu0 0
      %4656 = vmatpush1.bf16.msra.mxu0 0
      %4657 = vmatprep.subr.bf16.mxu0 0
      %4658 = vmatpush1.bf16.msra.mxu0 0
      %4659 = vmatprep.subr.bf16.mxu0 0
      %4660 = vmatpush1.bf16.msra.mxu0 0
      %4661 = vmatprep.mubr.bf16.mxu0 0
      %4662 = vmatmul.mubr.bf16.gmra.mrb[0].mxu0 %v2454
      %v4663 = vpop.f32.mrb[0].mxu0
      %v4664 = vadd.f32 0.0, %v4663
      %v4665 = vpop.f32.mrb[0].mxu0
      %v4666 = vadd.f32 0.0, %v4665
      %v4667 = vpop.f32.mrb[0].mxu0
      %v4668 = vpop.f32.mrb[0].mxu0
      %4669 = vdwg.mxu0
      %4670 = vmatprep.subr.bf16.mxu0 %v1793
      %4671 = vmatpush1.bf16.msra.mxu0 %v1792
      %4672 = vmatprep.subr.bf16.mxu0 %v1921
      %4673 = vmatpush1.bf16.msra.mxu0 %v1920
      %4674 = vmatprep.subr.bf16.mxu0 %v2049
      %4675 = vmatpush1.bf16.msra.mxu0 %v2048
      %4676 = vmatprep.subr.bf16.mxu0 0
      %4677 = vmatpush1.bf16.msra.mxu0 0
      %4678 = vmatprep.subr.bf16.mxu0 0
      %4679 = vmatpush1.bf16.msra.mxu0 0
      %4680 = vmatprep.subr.bf16.mxu0 0
      %4681 = vmatpush1.bf16.msra.mxu0 0
      %4682 = vmatprep.subr.bf16.mxu0 0
      %4683 = vmatpush1.bf16.msra.mxu0 0
      %4684 = vmatprep.subr.bf16.mxu0 0
      %4685 = vmatpush1.bf16.msra.mxu0 0
      %4686 = vmatprep.subr.bf16.mxu0 0
      %4687 = vmatpush1.bf16.msra.mxu0 0
      %4688 = vmatprep.subr.bf16.mxu0 0
      %4689 = vmatpush1.bf16.msra.mxu0 0
      %4690 = vmatprep.subr.bf16.mxu0 0
      %4691 = vmatpush1.bf16.msra.mxu0 0
      %4692 = vmatprep.subr.bf16.mxu0 0
      %4693 = vmatpush1.bf16.msra.mxu0 0
      %4694 = vmatprep.subr.bf16.mxu0 0
      %4695 = vmatpush1.bf16.msra.mxu0 0
      %4696 = vmatprep.subr.bf16.mxu0 0
      %4697 = vmatpush1.bf16.msra.mxu0 0
      %4698 = vmatprep.subr.bf16.mxu0 0
      %4699 = vmatpush1.bf16.msra.mxu0 0
      %4700 = vmatprep.subr.bf16.mxu0 0
      %4701 = vmatpush1.bf16.msra.mxu0 0
      %4702 = vmatprep.mubr.bf16.mxu0 0
      %4703 = vmatmul.mubr.bf16.gmra.mrb[0].mxu0 %v2454
      %v4704 = vpop.f32.mrb[0].mxu0
      %v4705 = vadd.f32 0.0, %v4704
      %v4706 = vpop.f32.mrb[0].mxu0
      %v4707 = vadd.f32 0.0, %v4706
      %v4708 = vpop.f32.mrb[0].mxu0
      %v4709 = vpop.f32.mrb[0].mxu0
      %4710 = vdwg.mxu0
      %4711 = vmatprep.subr.bf16.mxu0 %v1795
      %4712 = vmatpush1.bf16.msra.mxu0 %v1794
      %4713 = vmatprep.subr.bf16.mxu0 %v1923
      %4714 = vmatpush1.bf16.msra.mxu0 %v1922
      %4715 = vmatprep.subr.bf16.mxu0 %v2051
      %4716 = vmatpush1.bf16.msra.mxu0 %v2050
      %4717 = vmatprep.subr.bf16.mxu0 0
      %4718 = vmatpush1.bf16.msra.mxu0 0
      %4719 = vmatprep.subr.bf16.mxu0 0
      %4720 = vmatpush1.bf16.msra.mxu0 0
      %4721 = vmatprep.subr.bf16.mxu0 0
      %4722 = vmatpush1.bf16.msra.mxu0 0
      %4723 = vmatprep.subr.bf16.mxu0 0
      %4724 = vmatpush1.bf16.msra.mxu0 0
      %4725 = vmatprep.subr.bf16.mxu0 0
      %4726 = vmatpush1.bf16.msra.mxu0 0
      %4727 = vmatprep.subr.bf16.mxu0 0
      %4728 = vmatpush1.bf16.msra.mxu0 0
      %4729 = vmatprep.subr.bf16.mxu0 0
      %4730 = vmatpush1.bf16.msra.mxu0 0
      %4731 = vmatprep.subr.bf16.mxu0 0
      %4732 = vmatpush1.bf16.msra.mxu0 0
      %4733 = vmatprep.subr.bf16.mxu0 0
      %4734 = vmatpush1.bf16.msra.mxu0 0
      %4735 = vmatprep.subr.bf16.mxu0 0
      %4736 = vmatpush1.bf16.msra.mxu0 0
      %4737 = vmatprep.subr.bf16.mxu0 0
      %4738 = vmatpush1.bf16.msra.mxu0 0
      %4739 = vmatprep.subr.bf16.mxu0 0
      %4740 = vmatpush1.bf16.msra.mxu0 0
      %4741 = vmatprep.subr.bf16.mxu0 0
      %4742 = vmatpush1.bf16.msra.mxu0 0
      %4743 = vmatprep.mubr.bf16.mxu0 0
      %4744 = vmatmul.mubr.bf16.gmra.mrb[0].mxu0 %v2454
      %v4745 = vpop.f32.mrb[0].mxu0
      %v4746 = vadd.f32 0.0, %v4745
      %v4747 = vpop.f32.mrb[0].mxu0
      %v4748 = vadd.f32 0.0, %v4747
      %v4749 = vpop.f32.mrb[0].mxu0
      %v4750 = vpop.f32.mrb[0].mxu0
      %4751 = vdwg.mxu0
      %4752 = vmatprep.subr.bf16.mxu0 %v1797
      %4753 = vmatpush1.bf16.msra.mxu0 %v1796
      %4754 = vmatprep.subr.bf16.mxu0 %v1925
      %4755 = vmatpush1.bf16.msra.mxu0 %v1924
      %4756 = vmatprep.subr.bf16.mxu0 %v2053
      %4757 = vmatpush1.bf16.msra.mxu0 %v2052
      %4758 = vmatprep.subr.bf16.mxu0 0
      %4759 = vmatpush1.bf16.msra.mxu0 0
      %4760 = vmatprep.subr.bf16.mxu0 0
      %4761 = vmatpush1.bf16.msra.mxu0 0
      %4762 = vmatprep.subr.bf16.mxu0 0
      %4763 = vmatpush1.bf16.msra.mxu0 0
      %4764 = vmatprep.subr.bf16.mxu0 0
      %4765 = vmatpush1.bf16.msra.mxu0 0
      %4766 = vmatprep.subr.bf16.mxu0 0
      %4767 = vmatpush1.bf16.msra.mxu0 0
      %4768 = vmatprep.subr.bf16.mxu0 0
      %4769 = vmatpush1.bf16.msra.mxu0 0
      %4770 = vmatprep.subr.bf16.mxu0 0
      %4771 = vmatpush1.bf16.msra.mxu0 0
      %4772 = vmatprep.subr.bf16.mxu0 0
      %4773 = vmatpush1.bf16.msra.mxu0 0
      %4774 = vmatprep.subr.bf16.mxu0 0
      %4775 = vmatpush1.bf16.msra.mxu0 0
      %4776 = vmatprep.subr.bf16.mxu0 0
      %4777 = vmatpush1.bf16.msra.mxu0 0
      %4778 = vmatprep.subr.bf16.mxu0 0
      %4779 = vmatpush1.bf16.msra.mxu0 0
      %4780 = vmatprep.subr.bf16.mxu0 0
      %4781 = vmatpush1.bf16.msra.mxu0 0
      %4782 = vmatprep.subr.bf16.mxu0 0
      %4783 = vmatpush1.bf16.msra.mxu0 0
      %4784 = vmatprep.mubr.bf16.mxu0 0
      %4785 = vmatmul.mubr.bf16.gmra.mrb[0].mxu0 %v2454
      %v4786 = vpop.f32.mrb[0].mxu0
      %v4787 = vadd.f32 0.0, %v4786
      %v4788 = vpop.f32.mrb[0].mxu0
      %v4789 = vadd.f32 0.0, %v4788
      %v4790 = vpop.f32.mrb[0].mxu0
      %v4791 = vpop.f32.mrb[0].mxu0
      %4792 = vdwg.mxu0
      %4793 = vmatprep.subr.bf16.mxu0 %v1799
      %4794 = vmatpush1.bf16.msra.mxu0 %v1798
      %4795 = vmatprep.subr.bf16.mxu0 %v1927
      %4796 = vmatpush1.bf16.msra.mxu0 %v1926
      %4797 = vmatprep.subr.bf16.mxu0 %v2055
      %4798 = vmatpush1.bf16.msra.mxu0 %v2054
      %4799 = vmatprep.subr.bf16.mxu0 0
      %4800 = vmatpush1.bf16.msra.mxu0 0
      %4801 = vmatprep.subr.bf16.mxu0 0
      %4802 = vmatpush1.bf16.msra.mxu0 0
      %4803 = vmatprep.subr.bf16.mxu0 0
      %4804 = vmatpush1.bf16.msra.mxu0 0
      %4805 = vmatprep.subr.bf16.mxu0 0
      %4806 = vmatpush1.bf16.msra.mxu0 0
      %4807 = vmatprep.subr.bf16.mxu0 0
      %4808 = vmatpush1.bf16.msra.mxu0 0
      %4809 = vmatprep.subr.bf16.mxu0 0
      %4810 = vmatpush1.bf16.msra.mxu0 0
      %4811 = vmatprep.subr.bf16.mxu0 0
      %4812 = vmatpush1.bf16.msra.mxu0 0
      %4813 = vmatprep.subr.bf16.mxu0 0
      %4814 = vmatpush1.bf16.msra.mxu0 0
      %4815 = vmatprep.subr.bf16.mxu0 0
      %4816 = vmatpush1.bf16.msra.mxu0 0
      %4817 = vmatprep.subr.bf16.mxu0 0
      %4818 = vmatpush1.bf16.msra.mxu0 0
      %4819 = vmatprep.subr.bf16.mxu0 0
      %4820 = vmatpush1.bf16.msra.mxu0 0
      %4821 = vmatprep.subr.bf16.mxu0 0
      %4822 = vmatpush1.bf16.msra.mxu0 0
      %4823 = vmatprep.subr.bf16.mxu0 0
      %4824 = vmatpush1.bf16.msra.mxu0 0
      %4825 = vmatprep.mubr.bf16.mxu0 0
      %4826 = vmatmul.mubr.bf16.gmra.mrb[0].mxu0 %v2454
      %v4827 = vpop.f32.mrb[0].mxu0
      %v4828 = vadd.f32 0.0, %v4827
      %v4829 = vpop.f32.mrb[0].mxu0
      %v4830 = vadd.f32 0.0, %v4829
      %v4831 = vpop.f32.mrb[0].mxu0
      %v4832 = vpop.f32.mrb[0].mxu0
      %4833 = vdwg.mxu0
      %4834 = vmatprep.subr.bf16.mxu0 %v1801
      %4835 = vmatpush1.bf16.msra.mxu0 %v1800
      %4836 = vmatprep.subr.bf16.mxu0 %v1929
      %4837 = vmatpush1.bf16.msra.mxu0 %v1928
      %4838 = vmatprep.subr.bf16.mxu0 %v2057
      %4839 = vmatpush1.bf16.msra.mxu0 %v2056
      %4840 = vmatprep.subr.bf16.mxu0 0
      %4841 = vmatpush1.bf16.msra.mxu0 0
      %4842 = vmatprep.subr.bf16.mxu0 0
      %4843 = vmatpush1.bf16.msra.mxu0 0
      %4844 = vmatprep.subr.bf16.mxu0 0
      %4845 = vmatpush1.bf16.msra.mxu0 0
      %4846 = vmatprep.subr.bf16.mxu0 0
      %4847 = vmatpush1.bf16.msra.mxu0 0
      %4848 = vmatprep.subr.bf16.mxu0 0
      %4849 = vmatpush1.bf16.msra.mxu0 0
      %4850 = vmatprep.subr.bf16.mxu0 0
      %4851 = vmatpush1.bf16.msra.mxu0 0
      %4852 = vmatprep.subr.bf16.mxu0 0
      %4853 = vmatpush1.bf16.msra.mxu0 0
      %4854 = vmatprep.subr.bf16.mxu0 0
      %4855 = vmatpush1.bf16.msra.mxu0 0
      %4856 = vmatprep.subr.bf16.mxu0 0
      %4857 = vmatpush1.bf16.msra.mxu0 0
      %4858 = vmatprep.subr.bf16.mxu0 0
      %4859 = vmatpush1.bf16.msra.mxu0 0
      %4860 = vmatprep.subr.bf16.mxu0 0
      %4861 = vmatpush1.bf16.msra.mxu0 0
      %4862 = vmatprep.subr.bf16.mxu0 0
      %4863 = vmatpush1.bf16.msra.mxu0 0
      %4864 = vmatprep.subr.bf16.mxu0 0
      %4865 = vmatpush1.bf16.msra.mxu0 0
      %4866 = vmatprep.mubr.bf16.mxu0 0
      %4867 = vmatmul.mubr.bf16.gmra.mrb[0].mxu0 %v2454
      %v4868 = vpop.f32.mrb[0].mxu0
      %v4869 = vadd.f32 0.0, %v4868
      %v4870 = vpop.f32.mrb[0].mxu0
      %v4871 = vadd.f32 0.0, %v4870
      %v4872 = vpop.f32.mrb[0].mxu0
      %v4873 = vpop.f32.mrb[0].mxu0
      %4874 = vdwg.mxu0
      %4875 = vmatprep.subr.bf16.mxu0 %v1803
      %4876 = vmatpush1.bf16.msra.mxu0 %v1802
      %4877 = vmatprep.subr.bf16.mxu0 %v1931
      %4878 = vmatpush1.bf16.msra.mxu0 %v1930
      %4879 = vmatprep.subr.bf16.mxu0 %v2059
      %4880 = vmatpush1.bf16.msra.mxu0 %v2058
      %4881 = vmatprep.subr.bf16.mxu0 0
      %4882 = vmatpush1.bf16.msra.mxu0 0
      %4883 = vmatprep.subr.bf16.mxu0 0
      %4884 = vmatpush1.bf16.msra.mxu0 0
      %4885 = vmatprep.subr.bf16.mxu0 0
      %4886 = vmatpush1.bf16.msra.mxu0 0
      %4887 = vmatprep.subr.bf16.mxu0 0
      %4888 = vmatpush1.bf16.msra.mxu0 0
      %4889 = vmatprep.subr.bf16.mxu0 0
      %4890 = vmatpush1.bf16.msra.mxu0 0
      %4891 = vmatprep.subr.bf16.mxu0 0
      %4892 = vmatpush1.bf16.msra.mxu0 0
      %4893 = vmatprep.subr.bf16.mxu0 0
      %4894 = vmatpush1.bf16.msra.mxu0 0
      %4895 = vmatprep.subr.bf16.mxu0 0
      %4896 = vmatpush1.bf16.msra.mxu0 0
      %4897 = vmatprep.subr.bf16.mxu0 0
      %4898 = vmatpush1.bf16.msra.mxu0 0
      %4899 = vmatprep.subr.bf16.mxu0 0
      %4900 = vmatpush1.bf16.msra.mxu0 0
      %4901 = vmatprep.subr.bf16.mxu0 0
      %4902 = vmatpush1.bf16.msra.mxu0 0
      %4903 = vmatprep.subr.bf16.mxu0 0
      %4904 = vmatpush1.bf16.msra.mxu0 0
      %4905 = vmatprep.subr.bf16.mxu0 0
      %4906 = vmatpush1.bf16.msra.mxu0 0
      %4907 = vmatprep.mubr.bf16.mxu0 0
      %4908 = vmatmul.mubr.bf16.gmra.mrb[0].mxu0 %v2454
      %v4909 = vpop.f32.mrb[0].mxu0
      %v4910 = vadd.f32 0.0, %v4909
      %v4911 = vpop.f32.mrb[0].mxu0
      %v4912 = vadd.f32 0.0, %v4911
      %v4913 = vpop.f32.mrb[0].mxu0
      %v4914 = vpop.f32.mrb[0].mxu0
      %4915 = vdwg.mxu0
      %4916 = vmatprep.subr.bf16.mxu0 %v1805
      %4917 = vmatpush1.bf16.msra.mxu0 %v1804
      %4918 = vmatprep.subr.bf16.mxu0 %v1933
      %4919 = vmatpush1.bf16.msra.mxu0 %v1932
      %4920 = vmatprep.subr.bf16.mxu0 %v2061
      %4921 = vmatpush1.bf16.msra.mxu0 %v2060
      %4922 = vmatprep.subr.bf16.mxu0 0
      %4923 = vmatpush1.bf16.msra.mxu0 0
      %4924 = vmatprep.subr.bf16.mxu0 0
      %4925 = vmatpush1.bf16.msra.mxu0 0
      %4926 = vmatprep.subr.bf16.mxu0 0
      %4927 = vmatpush1.bf16.msra.mxu0 0
      %4928 = vmatprep.subr.bf16.mxu0 0
      %4929 = vmatpush1.bf16.msra.mxu0 0
      %4930 = vmatprep.subr.bf16.mxu0 0
      %4931 = vmatpush1.bf16.msra.mxu0 0
      %4932 = vmatprep.subr.bf16.mxu0 0
      %4933 = vmatpush1.bf16.msra.mxu0 0
      %4934 = vmatprep.subr.bf16.mxu0 0
      %4935 = vmatpush1.bf16.msra.mxu0 0
      %4936 = vmatprep.subr.bf16.mxu0 0
      %4937 = vmatpush1.bf16.msra.mxu0 0
      %4938 = vmatprep.subr.bf16.mxu0 0
      %4939 = vmatpush1.bf16.msra.mxu0 0
      %4940 = vmatprep.subr.bf16.mxu0 0
      %4941 = vmatpush1.bf16.msra.mxu0 0
      %4942 = vmatprep.subr.bf16.mxu0 0
      %4943 = vmatpush1.bf16.msra.mxu0 0
      %4944 = vmatprep.subr.bf16.mxu0 0
      %4945 = vmatpush1.bf16.msra.mxu0 0
      %4946 = vmatprep.subr.bf16.mxu0 0
      %4947 = vmatpush1.bf16.msra.mxu0 0
      %4948 = vmatprep.mubr.bf16.mxu0 0
      %4949 = vmatmul.mubr.bf16.gmra.mrb[0].mxu0 %v2454
      %v4950 = vpop.f32.mrb[0].mxu0
      %v4951 = vadd.f32 0.0, %v4950
      %v4952 = vpop.f32.mrb[0].mxu0
      %v4953 = vadd.f32 0.0, %v4952
      %v4954 = vpop.f32.mrb[0].mxu0
      %v4955 = vpop.f32.mrb[0].mxu0
      %4956 = vdwg.mxu0
      %4957 = vmatprep.subr.bf16.mxu0 %v1807
      %4958 = vmatpush1.bf16.msra.mxu0 %v1806
      %4959 = vmatprep.subr.bf16.mxu0 %v1935
      %4960 = vmatpush1.bf16.msra.mxu0 %v1934
      %4961 = vmatprep.subr.bf16.mxu0 %v2063
      %4962 = vmatpush1.bf16.msra.mxu0 %v2062
      %4963 = vmatprep.subr.bf16.mxu0 0
      %4964 = vmatpush1.bf16.msra.mxu0 0
      %4965 = vmatprep.subr.bf16.mxu0 0
      %4966 = vmatpush1.bf16.msra.mxu0 0
      %4967 = vmatprep.subr.bf16.mxu0 0
      %4968 = vmatpush1.bf16.msra.mxu0 0
      %4969 = vmatprep.subr.bf16.mxu0 0
      %4970 = vmatpush1.bf16.msra.mxu0 0
      %4971 = vmatprep.subr.bf16.mxu0 0
      %4972 = vmatpush1.bf16.msra.mxu0 0
      %4973 = vmatprep.subr.bf16.mxu0 0
      %4974 = vmatpush1.bf16.msra.mxu0 0
      %4975 = vmatprep.subr.bf16.mxu0 0
      %4976 = vmatpush1.bf16.msra.mxu0 0
      %4977 = vmatprep.subr.bf16.mxu0 0
      %4978 = vmatpush1.bf16.msra.mxu0 0
      %4979 = vmatprep.subr.bf16.mxu0 0
      %4980 = vmatpush1.bf16.msra.mxu0 0
      %4981 = vmatprep.subr.bf16.mxu0 0
      %4982 = vmatpush1.bf16.msra.mxu0 0
      %4983 = vmatprep.subr.bf16.mxu0 0
      %4984 = vmatpush1.bf16.msra.mxu0 0
      %4985 = vmatprep.subr.bf16.mxu0 0
      %4986 = vmatpush1.bf16.msra.mxu0 0
      %4987 = vmatprep.subr.bf16.mxu0 0
      %4988 = vmatpush1.bf16.msra.mxu0 0
      %4989 = vmatprep.mubr.bf16.mxu0 0
      %4990 = vmatmul.mubr.bf16.gmra.mrb[0].mxu0 %v2454
      %v4991 = vpop.f32.mrb[0].mxu0
      %v4992 = vadd.f32 0.0, %v4991
      %v4993 = vpop.f32.mrb[0].mxu0
      %v4994 = vadd.f32 0.0, %v4993
      %v4995 = vpop.f32.mrb[0].mxu0
      %v4996 = vpop.f32.mrb[0].mxu0
      %4997 = vdwg.mxu0
      %4998 = vmatprep.subr.bf16.mxu0 %v1809
      %4999 = vmatpush1.bf16.msra.mxu0 %v1808
      %5000 = vmatprep.subr.bf16.mxu0 %v1937
      %5001 = vmatpush1.bf16.msra.mxu0 %v1936
      %5002 = vmatprep.subr.bf16.mxu0 %v2065
      %5003 = vmatpush1.bf16.msra.mxu0 %v2064
      %5004 = vmatprep.subr.bf16.mxu0 0
      %5005 = vmatpush1.bf16.msra.mxu0 0
      %5006 = vmatprep.subr.bf16.mxu0 0
      %5007 = vmatpush1.bf16.msra.mxu0 0
      %5008 = vmatprep.subr.bf16.mxu0 0
      %5009 = vmatpush1.bf16.msra.mxu0 0
      %5010 = vmatprep.subr.bf16.mxu0 0
      %5011 = vmatpush1.bf16.msra.mxu0 0
      %5012 = vmatprep.subr.bf16.mxu0 0
      %5013 = vmatpush1.bf16.msra.mxu0 0
      %5014 = vmatprep.subr.bf16.mxu0 0
      %5015 = vmatpush1.bf16.msra.mxu0 0
      %5016 = vmatprep.subr.bf16.mxu0 0
      %5017 = vmatpush1.bf16.msra.mxu0 0
      %5018 = vmatprep.subr.bf16.mxu0 0
      %5019 = vmatpush1.bf16.msra.mxu0 0
      %5020 = vmatprep.subr.bf16.mxu0 0
      %5021 = vmatpush1.bf16.msra.mxu0 0
      %5022 = vmatprep.subr.bf16.mxu0 0
      %5023 = vmatpush1.bf16.msra.mxu0 0
      %5024 = vmatprep.subr.bf16.mxu0 0
      %5025 = vmatpush1.bf16.msra.mxu0 0
      %5026 = vmatprep.subr.bf16.mxu0 0
      %5027 = vmatpush1.bf16.msra.mxu0 0
      %5028 = vmatprep.subr.bf16.mxu0 0
      %5029 = vmatpush1.bf16.msra.mxu0 0
      %5030 = vmatprep.mubr.bf16.mxu0 0
      %5031 = vmatmul.mubr.bf16.gmra.mrb[0].mxu0 %v2454
      %v5032 = vpop.f32.mrb[0].mxu0
      %v5033 = vadd.f32 0.0, %v5032
      %v5034 = vpop.f32.mrb[0].mxu0
      %v5035 = vadd.f32 0.0, %v5034
      %v5036 = vpop.f32.mrb[0].mxu0
      %v5037 = vpop.f32.mrb[0].mxu0
      %5038 = vdwg.mxu0
      %5039 = vmatprep.subr.bf16.mxu0 %v1811
      %5040 = vmatpush1.bf16.msra.mxu0 %v1810
      %5041 = vmatprep.subr.bf16.mxu0 %v1939
      %5042 = vmatpush1.bf16.msra.mxu0 %v1938
      %5043 = vmatprep.subr.bf16.mxu0 %v2067
      %5044 = vmatpush1.bf16.msra.mxu0 %v2066
      %5045 = vmatprep.subr.bf16.mxu0 0
      %5046 = vmatpush1.bf16.msra.mxu0 0
      %5047 = vmatprep.subr.bf16.mxu0 0
      %5048 = vmatpush1.bf16.msra.mxu0 0
      %5049 = vmatprep.subr.bf16.mxu0 0
      %5050 = vmatpush1.bf16.msra.mxu0 0
      %5051 = vmatprep.subr.bf16.mxu0 0
      %5052 = vmatpush1.bf16.msra.mxu0 0
      %5053 = vmatprep.subr.bf16.mxu0 0
      %5054 = vmatpush1.bf16.msra.mxu0 0
      %5055 = vmatprep.subr.bf16.mxu0 0
      %5056 = vmatpush1.bf16.msra.mxu0 0
      %5057 = vmatprep.subr.bf16.mxu0 0
      %5058 = vmatpush1.bf16.msra.mxu0 0
      %5059 = vmatprep.subr.bf16.mxu0 0
      %5060 = vmatpush1.bf16.msra.mxu0 0
      %5061 = vmatprep.subr.bf16.mxu0 0
      %5062 = vmatpush1.bf16.msra.mxu0 0
      %5063 = vmatprep.subr.bf16.mxu0 0
      %5064 = vmatpush1.bf16.msra.mxu0 0
      %5065 = vmatprep.subr.bf16.mxu0 0
      %5066 = vmatpush1.bf16.msra.mxu0 0
      %5067 = vmatprep.subr.bf16.mxu0 0
      %5068 = vmatpush1.bf16.msra.mxu0 0
      %5069 = vmatprep.subr.bf16.mxu0 0
      %5070 = vmatpush1.bf16.msra.mxu0 0
      %5071 = vmatprep.mubr.bf16.mxu0 0
      %5072 = vmatmul.mubr.bf16.gmra.mrb[0].mxu0 %v2454
      %v5073 = vpop.f32.mrb[0].mxu0
      %v5074 = vadd.f32 0.0, %v5073
      %v5075 = vpop.f32.mrb[0].mxu0
      %v5076 = vadd.f32 0.0, %v5075
      %v5077 = vpop.f32.mrb[0].mxu0
      %v5078 = vpop.f32.mrb[0].mxu0
      %5079 = vdwg.mxu0
      %v5080 = vmax.f32 %v2491, %v2532
      %v5081 = vmax.f32 %v2493, %v2534
      %v5082 = vmax.f32 %v2573, %v2614
      %v5083 = vmax.f32 %v2575, %v2616
      %v5084 = vmax.f32 %v2655, %v2696
      %v5085 = vmax.f32 %v2657, %v2698
      %v5086 = vmax.f32 %v2737, %v2778
      %v5087 = vmax.f32 %v2739, %v2780
      %v5088 = vmax.f32 %v2819, %v2860
      %v5089 = vmax.f32 %v2821, %v2862
      %v5090 = vmax.f32 %v2901, %v2942
      %v5091 = vmax.f32 %v2903, %v2944
      %v5092 = vmax.f32 %v2983, %v3024
      %v5093 = vmax.f32 %v2985, %v3026
      %v5094 = vmax.f32 %v3065, %v3106
      %v5095 = vmax.f32 %v3067, %v3108
      %v5096 = vmax.f32 %v3147, %v3188
      %v5097 = vmax.f32 %v3149, %v3190
      %v5098 = vmax.f32 %v3229, %v3270
      %v5099 = vmax.f32 %v3231, %v3272
      %v5100 = vmax.f32 %v3311, %v3352
      %v5101 = vmax.f32 %v3313, %v3354
      %v5102 = vmax.f32 %v3393, %v3434
      %v5103 = vmax.f32 %v3395, %v3436
      %v5104 = vmax.f32 %v3475, %v3516
      %v5105 = vmax.f32 %v3477, %v3518
      %v5106 = vmax.f32 %v3557, %v3598
      %v5107 = vmax.f32 %v3559, %v3600
      %v5108 = vmax.f32 %v3639, %v3680
      %v5109 = vmax.f32 %v3641, %v3682
      %v5110 = vmax.f32 %v3721, %v3762
      %v5111 = vmax.f32 %v3723, %v3764
      %v5112 = vmax.f32 %v3803, %v3844
      %v5113 = vmax.f32 %v3805, %v3846
      %v5114 = vmax.f32 %v3885, %v3926
      %v5115 = vmax.f32 %v3887, %v3928
      %v5116 = vmax.f32 %v3967, %v4008
      %v5117 = vmax.f32 %v3969, %v4010
      %v5118 = vmax.f32 %v4049, %v4090
      %v5119 = vmax.f32 %v4051, %v4092
      %v5120 = vmax.f32 %v4131, %v4172
      %v5121 = vmax.f32 %v4133, %v4174
      %v5122 = vmax.f32 %v4213, %v4254
      %v5123 = vmax.f32 %v4215, %v4256
      %v5124 = vmax.f32 %v4295, %v4336
      %v5125 = vmax.f32 %v4297, %v4338
      %v5126 = vmax.f32 %v4377, %v4418
      %v5127 = vmax.f32 %v4379, %v4420
      %v5128 = vmax.f32 %v4459, %v4500
      %v5129 = vmax.f32 %v4461, %v4502
      %v5130 = vmax.f32 %v4541, %v4582
      %v5131 = vmax.f32 %v4543, %v4584
      %v5132 = vmax.f32 %v4623, %v4664
      %v5133 = vmax.f32 %v4625, %v4666
      %v5134 = vmax.f32 %v4705, %v4746
      %v5135 = vmax.f32 %v4707, %v4748
      %v5136 = vmax.f32 %v4787, %v4828
      %v5137 = vmax.f32 %v4789, %v4830
      %v5138 = vmax.f32 %v4869, %v4910
      %v5139 = vmax.f32 %v4871, %v4912
      %v5140 = vmax.f32 %v4951, %v4992
      %v5141 = vmax.f32 %v4953, %v4994
      %v5142 = vmax.f32 %v5033, %v5074
      %v5143 = vmax.f32 %v5035, %v5076
      %v5144 = vmax.f32 %v5080, %v5082
      %v5145 = vmax.f32 %v5081, %v5083
      %v5146 = vmax.f32 %v5084, %v5086
      %v5147 = vmax.f32 %v5085, %v5087
      %v5148 = vmax.f32 %v5088, %v5090
      %v5149 = vmax.f32 %v5089, %v5091
      %v5150 = vmax.f32 %v5092, %v5094
      %v5151 = vmax.f32 %v5093, %v5095
      %v5152 = vmax.f32 %v5096, %v5098
      %v5153 = vmax.f32 %v5097, %v5099
      %v5154 = vmax.f32 %v5100, %v5102
      %v5155 = vmax.f32 %v5101, %v5103
      %v5156 = vmax.f32 %v5104, %v5106
      %v5157 = vmax.f32 %v5105, %v5107
      %v5158 = vmax.f32 %v5108, %v5110
      %v5159 = vmax.f32 %v5109, %v5111
      %v5160 = vmax.f32 %v5112, %v5114
      %v5161 = vmax.f32 %v5113, %v5115
      %v5162 = vmax.f32 %v5116, %v5118
      %v5163 = vmax.f32 %v5117, %v5119
      %v5164 = vmax.f32 %v5120, %v5122
      %v5165 = vmax.f32 %v5121, %v5123
      %v5166 = vmax.f32 %v5124, %v5126
      %v5167 = vmax.f32 %v5125, %v5127
      %v5168 = vmax.f32 %v5128, %v5130
      %v5169 = vmax.f32 %v5129, %v5131
      %v5170 = vmax.f32 %v5132, %v5134
      %v5171 = vmax.f32 %v5133, %v5135
      %v5172 = vmax.f32 %v5136, %v5138
      %v5173 = vmax.f32 %v5137, %v5139
      %v5174 = vmax.f32 %v5140, %v5142
      %v5175 = vmax.f32 %v5141, %v5143
      %v5176 = vmax.f32 %v5144, %v5146
      %v5177 = vmax.f32 %v5145, %v5147
      %v5178 = vmax.f32 %v5148, %v5150
      %v5179 = vmax.f32 %v5149, %v5151
      %v5180 = vmax.f32 %v5152, %v5154
      %v5181 = vmax.f32 %v5153, %v5155
      %v5182 = vmax.f32 %v5156, %v5158
      %v5183 = vmax.f32 %v5157, %v5159
      %v5184 = vmax.f32 %v5160, %v5162
      %v5185 = vmax.f32 %v5161, %v5163
      %v5186 = vmax.f32 %v5164, %v5166
      %v5187 = vmax.f32 %v5165, %v5167
      %v5188 = vmax.f32 %v5168, %v5170
      %v5189 = vmax.f32 %v5169, %v5171
      %v5190 = vmax.f32 %v5172, %v5174
      %v5191 = vmax.f32 %v5173, %v5175
      %v5192 = vmax.f32 %v5176, %v5178
      %v5193 = vmax.f32 %v5177, %v5179
      %v5194 = vmax.f32 %v5180, %v5182
      %v5195 = vmax.f32 %v5181, %v5183
      %v5196 = vmax.f32 %v5184, %v5186
      %v5197 = vmax.f32 %v5185, %v5187
      %v5198 = vmax.f32 %v5188, %v5190
      %v5199 = vmax.f32 %v5189, %v5191
      %v5200 = vmax.f32 %v5192, %v5194
      %v5201 = vmax.f32 %v5193, %v5195
      %v5202 = vmax.f32 %v5196, %v5198
      %v5203 = vmax.f32 %v5197, %v5199
      %v5204 = vmax.f32 %v5200, %v5202
      %v5205 = vmax.f32 %v5201, %v5203
      %5207 = vset.pattern.permute.xlu0 48
      %5208 = vperm.xlu0 %5207, %v143
      %v5209 = vpop.permute.xlu0 %5208
      %v5211 = vadd.f32 %v5204, %v5209
      %v5212 = vadd.f32 %v5205, %v5209
      %v5213 = vmul.f32 %v5211, 0.05
      %v5214 = vmul.f32 %v5212, 0.05
      %v5215 = vmax.f32 %v5211, %v5213
      %v5216 = vmax.f32 %v5212, %v5214
      %5219 = vrot.lane.b32.xlu0 %v5215, 118
      %v5220 = vpop.permute.xlu0 %5219
      %5221 = vrot.lane.b32.xlu0 %v5216, 118
      %v5222 = vpop.permute.xlu0 %5221
      %vm5223 = vcmask 965632
      %v5224 = vsel %vm5223, %v5220, %v5222
      %5227 = vrot.lane.b32.xlu0 %v5215, 112
      %v5228 = vpop.permute.xlu0 %5227
      %vm5230 = vcmask 916480
      %v5231 = vsel %vm5230, %v5222, %v5228
      %5232 = vrot.lane.b32.xlu0 %v5215, 78
      %v5233 = vpop.permute.xlu0 %5232
      %5234 = vrot.lane.b32.xlu0 %v5216, 78
      %v5235 = vpop.permute.xlu0 %5234
      %vm5236 = vcmask 637952
      %v5237 = vsel %vm5236, %v5233, %v5235
      %5240 = vrot.lane.b32.xlu0 %v5215, 72
      %v5241 = vpop.permute.xlu0 %5240
      %vm5243 = vcmask 588800
      %v5244 = vsel %vm5243, %v5235, %v5241
      %5245 = vrot.lane.b32.xlu0 %v5215, 68
      %v5246 = vpop.permute.xlu0 %5245
      %5247 = vrot.lane.b32.xlu0 %v5216, 68
      %v5248 = vpop.permute.xlu0 %5247
      %vm5249 = vcmask 556032
      %v5250 = vsel %vm5249, %v5246, %v5248
      %5253 = vrot.lane.b32.xlu0 %v5215, 62
      %v5254 = vpop.permute.xlu0 %5253
      %vm5256 = vcmask 506880
      %v5257 = vsel %vm5256, %v5248, %v5254
      %vm5258 = vcmask 261120
      %v5260 = vsel %vm5258, %v144, 0
      %v5263 = vsel %vm5258, %v145, 0
      %5265 = vmatprep.subr.mxu0 %v5216
      %5266 = vmatpush1.msra.mxu0 %v5215
      %5267 = vmatprep.subr.mxu0 %v5231
      %5268 = vmatpush1.msra.mxu0 %v5224
      %5269 = vmatprep.subr.mxu0 %v5244
      %5270 = vmatpush1.msra.mxu0 %v5237
      %5271 = vmatprep.subr.mxu0 %v5257
      %5272 = vmatpush1.msra.mxu0 %v5250
      %5273 = vmatprep.subr.mxu0 0.0
      %5274 = vmatpush1.msra.mxu0 0.0
      %5275 = vmatprep.subr.mxu0 0.0
      %5276 = vmatpush1.msra.mxu0 0.0
      %5277 = vmatprep.subr.mxu0 0.0
      %5278 = vmatpush1.msra.mxu0 0.0
      %5279 = vmatprep.subr.mxu0 0.0
      %5280 = vmatpush1.msra.mxu0 0.0
      %5281 = vmatprep.subr.mxu0 0.0
      %5282 = vmatpush1.msra.mxu0 0.0
      %5283 = vmatprep.subr.mxu0 0.0
      %5284 = vmatpush1.msra.mxu0 0.0
      %5285 = vmatprep.subr.mxu0 0.0
      %5286 = vmatpush1.msra.mxu0 0.0
      %5287 = vmatprep.subr.mxu0 0.0
      %5288 = vmatpush1.msra.mxu0 0.0
      %5289 = vmatprep.subr.mxu0 0.0
      %5290 = vmatpush1.msra.mxu0 0.0
      %5291 = vmatprep.subr.mxu0 0.0
      %5292 = vmatpush1.msra.mxu0 0.0
      %5293 = vmatprep.subr.mxu0 0.0
      %5294 = vmatpush1.msra.mxu0 0.0
      %5295 = vmatprep.subr.mxu0 0.0
      %5296 = vmatpush1.msra.mxu0 0.0
      %5297 = vmatprep.subr.mxu0 0.0
      %5298 = vmatpush1.msra.mxu0 0.0
      %5299 = vmatprep.subr.mxu0 0.0
      %5300 = vmatpush1.msra.mxu0 0.0
      %5301 = vmatprep.subr.mxu0 0.0
      %5302 = vmatpush1.msra.mxu0 0.0
      %5303 = vmatprep.subr.mxu0 0.0
      %5304 = vmatpush1.msra.mxu0 0.0
      %5305 = vmatprep.subr.mxu0 0.0
      %5306 = vmatpush1.msra.mxu0 0.0
      %5307 = vmatprep.subr.mxu0 0.0
      %5308 = vmatpush1.msra.mxu0 0.0
      %5309 = vmatprep.subr.mxu0 0.0
      %5310 = vmatpush1.msra.mxu0 0.0
      %5311 = vmatprep.subr.mxu0 0.0
      %5312 = vmatpush1.msra.mxu0 0.0
      %5313 = vmatprep.subr.mxu0 0.0
      %5314 = vmatpush1.msra.mxu0 0.0
      %5315 = vmatprep.subr.mxu0 0.0
      %5316 = vmatpush1.msra.mxu0 0.0
      %5317 = vmatprep.subr.mxu0 0.0
      %5318 = vmatpush1.msra.mxu0 0.0
      %5319 = vmatprep.subr.mxu0 0.0
      %5320 = vmatpush1.msra.mxu0 0.0
      %5321 = vmatprep.subr.mxu0 0.0
      %5322 = vmatpush1.msra.mxu0 0.0
      %5323 = vmatprep.subr.mxu0 0.0
      %5324 = vmatpush1.msra.mxu0 0.0
      %5325 = vmatprep.subr.mxu0 0.0
      %5326 = vmatpush1.msra.mxu0 0.0
      %5327 = vmatprep.subr.mxu0 0.0
      %5328 = vmatpush1.msra.mxu0 0.0
      %5329 = vmatprep.mubr.f32.mxu0 0.0
      %5330 = vmatmul.mubr.f32.gmra.mrb[0].mxu0 %v5260
      %v5331 = vpop.f32.mrb[0].mxu0
      %v5332 = vadd.f32 0.0, %v5331
      %v5333 = vpop.f32.mrb[0].mxu0
      %v5334 = vadd.f32 0.0, %v5333
      %5335 = vmatprep.mubr.f32.mxu0 0.0
      %5336 = vmatmul.mubr.f32.gmra.mrb[0].mxu0 %v5263
      %v5337 = vpop.f32.mrb[0].mxu0
      %v5338 = vadd.f32 0.0, %v5337
      %v5339 = vpop.f32.mrb[0].mxu0
      %v5340 = vadd.f32 0.0, %v5339
      %5341 = vdwg.mxu0
      %5346 = vrot.lane.b32.xlu0 %v5332, 118
      %v5347 = vpop.permute.xlu0 %5346
      %5348 = vrot.lane.b32.xlu0 %v5334, 118
      %v5349 = vpop.permute.xlu0 %5348
      %5350 = vrot.lane.b32.xlu0 %v5338, 118
      %v5351 = vpop.permute.xlu0 %5350
      %5352 = vrot.lane.b32.xlu0 %v5340, 118
      %v5353 = vpop.permute.xlu0 %5352
      %v5354 = vsel %vm5223, %v5347, %v5349
      %v5355 = vsel %vm5223, %v5351, %v5353
      %5360 = vrot.lane.b32.xlu0 %v5332, 112
      %v5361 = vpop.permute.xlu0 %5360
      %5362 = vrot.lane.b32.xlu0 %v5338, 112
      %v5363 = vpop.permute.xlu0 %5362
      %v5366 = vsel %vm5230, %v5349, %v5361
      %v5367 = vsel %vm5230, %v5353, %v5363
      %v5368 = vmax.f32 %v5332, %v5354
      %v5369 = vmax.f32 %v5334, %v5366
      %v5370 = vmax.f32 %v5338, %v5355
      %v5371 = vmax.f32 %v5340, %v5367
      %5376 = vrot.lane.b32.xlu0 %v5368, 108
      %v5377 = vpop.permute.xlu0 %5376
      %5378 = vrot.lane.b32.xlu0 %v5369, 108
      %v5379 = vpop.permute.xlu0 %5378
      %5380 = vrot.lane.b32.xlu0 %v5370, 108
      %v5381 = vpop.permute.xlu0 %5380
      %5382 = vrot.lane.b32.xlu0 %v5371, 108
      %v5383 = vpop.permute.xlu0 %5382
      %vm5384 = vcmask 883712
      %v5385 = vsel %vm5384, %v5377, %v5379
      %v5386 = vsel %vm5384, %v5381, %v5383
      %5391 = vrot.lane.b32.xlu0 %v5368, 102
      %v5392 = vpop.permute.xlu0 %5391
      %5393 = vrot.lane.b32.xlu0 %v5370, 102
      %v5394 = vpop.permute.xlu0 %5393
      %vm5397 = vcmask 834560
      %v5398 = vsel %vm5397, %v5379, %v5392
      %v5399 = vsel %vm5397, %v5383, %v5394
      %v5400 = vmax.f32 %v5368, %v5385
      %v5401 = vmax.f32 %v5369, %v5398
      %v5402 = vmax.f32 %v5370, %v5386
      %v5403 = vmax.f32 %v5371, %v5399
      %5408 = vrot.lane.b32.xlu0 %v5400, 78
      %v5409 = vpop.permute.xlu0 %5408
      %5410 = vrot.lane.b32.xlu0 %v5401, 78
      %v5411 = vpop.permute.xlu0 %5410
      %5412 = vrot.lane.b32.xlu0 %v5402, 78
      %v5413 = vpop.permute.xlu0 %5412
      %5414 = vrot.lane.b32.xlu0 %v5403, 78
      %v5415 = vpop.permute.xlu0 %5414
      %v5416 = vsel %vm5236, %v5409, %v5411
      %v5417 = vsel %vm5236, %v5413, %v5415
      %5422 = vrot.lane.b32.xlu0 %v5400, 72
      %v5423 = vpop.permute.xlu0 %5422
      %5424 = vrot.lane.b32.xlu0 %v5402, 72
      %v5425 = vpop.permute.xlu0 %5424
      %v5428 = vsel %vm5243, %v5411, %v5423
      %v5429 = vsel %vm5243, %v5415, %v5425
      %v5430 = vmax.f32 %v5400, %v5416
      %v5431 = vmax.f32 %v5401, %v5428
      %v5432 = vmax.f32 %v5402, %v5417
      %v5433 = vmax.f32 %v5403, %v5429
      %5438 = vrot.lane.b32.xlu0 %v5430, 28
      %v5439 = vpop.permute.xlu0 %5438
      %5440 = vrot.lane.b32.xlu0 %v5431, 28
      %v5441 = vpop.permute.xlu0 %5440
      %5442 = vrot.lane.b32.xlu0 %v5432, 28
      %v5443 = vpop.permute.xlu0 %5442
      %5444 = vrot.lane.b32.xlu0 %v5433, 28
      %v5445 = vpop.permute.xlu0 %5444
      %vm5446 = vcmask 228352
      %v5447 = vsel %vm5446, %v5439, %v5441
      %v5448 = vsel %vm5446, %v5443, %v5445
      %v5451 = vmax.f32 %v5430, %v5447
      %v5452 = vmax.f32 %v5432, %v5448
      %5453 = vset.pattern.permute.xlu0 32
      %5454 = vperm.xlu0 %5453, %v144
      %v5455 = vpop.permute.xlu0 %5454
      %5457 = vset.pattern.permute.xlu0 32
      %5458 = vperm.xlu0 %5457, %v145
      %v5459 = vpop.permute.xlu0 %5458
      %v5461 = vadd.f32 %v5451, %v5455
      %v5462 = vadd.f32 %v5452, %v5459
      %v5463 = vmul.f32 %v5461, 0.05
      %v5464 = vmul.f32 %v5462, 0.05
      %v5465 = vmax.f32 %v5461, %v5463
      %v5466 = vmax.f32 %v5462, %v5464
      %5468 = vset.pattern.permute.xlu0 16
      %5469 = vperm.xlu0 %5468, %v146
      %v5470 = vpop.permute.xlu0 %5469
      %vm5472 = vcmask 130048
      %v5473 = vsel %vm5472, %v146, 0
      %5475 = vmatprep.subr.mxu0 0.0
      %5476 = vmatpush1.msra.mxu0 %v5465
      %5477 = vmatprep.subr.mxu0 0.0
      %5478 = vmatpush1.msra.mxu0 %v5466
      %5479 = vmatprep.subr.mxu0 0.0
      %5480 = vmatpush1.msra.mxu0 0.0
      %5481 = vmatprep.subr.mxu0 0.0
      %5482 = vmatpush1.msra.mxu0 0.0
      %5483 = vmatprep.subr.mxu0 0.0
      %5484 = vmatpush1.msra.mxu0 0.0
      %5485 = vmatprep.subr.mxu0 0.0
      %5486 = vmatpush1.msra.mxu0 0.0
      %5487 = vmatprep.subr.mxu0 0.0
      %5488 = vmatpush1.msra.mxu0 0.0
      %5489 = vmatprep.subr.mxu0 0.0
      %5490 = vmatpush1.msra.mxu0 0.0
      %5491 = vmatprep.subr.mxu0 0.0
      %5492 = vmatpush1.msra.mxu0 0.0
      %5493 = vmatprep.subr.mxu0 0.0
      %5494 = vmatpush1.msra.mxu0 0.0
      %5495 = vmatprep.subr.mxu0 0.0
      %5496 = vmatpush1.msra.mxu0 0.0
      %5497 = vmatprep.subr.mxu0 0.0
      %5498 = vmatpush1.msra.mxu0 0.0
      %5499 = vmatprep.subr.mxu0 0.0
      %5500 = vmatpush1.msra.mxu0 0.0
      %5501 = vmatprep.subr.mxu0 0.0
      %5502 = vmatpush1.msra.mxu0 0.0
      %5503 = vmatprep.subr.mxu0 0.0
      %5504 = vmatpush1.msra.mxu0 0.0
      %5505 = vmatprep.subr.mxu0 0.0
      %5506 = vmatpush1.msra.mxu0 0.0
      %5507 = vmatprep.subr.mxu0 0.0
      %5508 = vmatpush1.msra.mxu0 0.0
      %5509 = vmatprep.subr.mxu0 0.0
      %5510 = vmatpush1.msra.mxu0 0.0
      %5511 = vmatprep.subr.mxu0 0.0
      %5512 = vmatpush1.msra.mxu0 0.0
      %5513 = vmatprep.subr.mxu0 0.0
      %5514 = vmatpush1.msra.mxu0 0.0
      %5515 = vmatprep.subr.mxu0 0.0
      %5516 = vmatpush1.msra.mxu0 0.0
      %5517 = vmatprep.subr.mxu0 0.0
      %5518 = vmatpush1.msra.mxu0 0.0
      %5519 = vmatprep.subr.mxu0 0.0
      %5520 = vmatpush1.msra.mxu0 0.0
      %5521 = vmatprep.subr.mxu0 0.0
      %5522 = vmatpush1.msra.mxu0 0.0
      %5523 = vmatprep.subr.mxu0 0.0
      %5524 = vmatpush1.msra.mxu0 0.0
      %5525 = vmatprep.subr.mxu0 0.0
      %5526 = vmatpush1.msra.mxu0 0.0
      %5527 = vmatprep.subr.mxu0 0.0
      %5528 = vmatpush1.msra.mxu0 0.0
      %5529 = vmatprep.subr.mxu0 0.0
      %5530 = vmatpush1.msra.mxu0 0.0
      %5531 = vmatprep.subr.mxu0 0.0
      %5532 = vmatpush1.msra.mxu0 0.0
      %5533 = vmatprep.subr.mxu0 0.0
      %5534 = vmatpush1.msra.mxu0 0.0
      %5535 = vmatprep.subr.mxu0 0.0
      %5536 = vmatpush1.msra.mxu0 0.0
      %5537 = vmatprep.subr.mxu0 0.0
      %5538 = vmatpush1.msra.mxu0 0.0
      %5539 = vmatprep.mubr.f32.mxu0 0.0
      %5540 = vmatmul.mubr.f32.gmra.mrb[0].mxu0 %v5473
      %v5541 = vpop.f32.mrb[0].mxu0
      %v5542 = vadd.f32 %v5470, %v5541
      %v5543 = vpop.f32.mrb[0].mxu0
      %5544 = vdwg.mxu0
      %vm5545 = vcmask 78848
      %5546 = vst.msk [vmem:[%s141] sm:$0x3f] %vm5545, %v5542
      %p5547 = scmp.lt.s32.totalorder %s13, 1
      %s5548 = scalar_select %p5547, %s13, 1
      %s5549 = smul.addr %s5548, 8
      %s5550 = scalar_lea.vmem %s2, %s5549
      // Predicated region
      $region29: #{cnn_forward.1} parent=27 // pred_check
        %p5551 = pneg %p78
      $region30: #{cnn_forward.1} parent=27 // pred_check_branch
        %5553 = sbr.rel (%p5551) target = $region32
      $region31: #{cnn_forward.1} parent=27 // pred_region
        _
      $region32: #{cnn_forward.1} parent=27 // pred_fallthru
        _
    $region28: #{cnn_forward.1} parent=5 // pred_fallthru
      _
    %p5554 = scmp.le.s32.totalorder 2, %s8
    // Predicated region
    $region33: #{cnn_forward.1} parent=5 // pred_check
      %p5555 = pneg %p5554
    $region34: #{cnn_forward.1} parent=5 // pred_check_branch
      %5557 = sbr.rel (%p5555) target = $region36
    $region35: #{cnn_forward.1} parent=5 // pred_region
      %s5558 = ssub.s32 %s8, 2
      // Predicated region
      $region37: #{cnn_forward.1} parent=35 // pred_check
        %p5559 = pneg %p84
      $region38: #{cnn_forward.1} parent=35 // pred_check_branch
        %5561 = sbr.rel (%p5559) target = $region40
      $region39: #{cnn_forward.1} parent=35 // pred_region
        %p5562 = scmp.lt.s32.totalorder %s14, 1
        %s5563 = scalar_select %p5562, %s14, 1
        %s5564 = smul.addr %s5563, 8
        %s5565 = scalar_lea.vmem %s2, %s5564
      $region40: #{cnn_forward.1} parent=35 // pred_fallthru
        _
    $region36: #{cnn_forward.1} parent=5 // pred_fallthru
      _
  $region6: #{cnn_forward.1} parent=0 // loop_footer
    %s12 = sadd.s32 1, %s8
  $region7: #{cnn_forward.1} parent=0 // loop_footer_branch
    %7 = sbr.rel target = $region3
  $region8: #{cnn_forward.1} parent=0 // loop_exit
    _

</llo_original>
